<compile_context>
chip_gen: v7x
topology: tpu7x:2x2x1
jax: 0.10.0
libtpu: 0.0.40
codegen_flags: <defaults>
</compile_context>

<pallas_src>
import math

import jax
import jax.numpy as jnp
from jax import lax
from jax.experimental import pallas as pl
from jax.experimental.pallas import tpu as pltpu

# ---- small-but-consistent model config (module defaults scaled down) ----
CIN = 8        # input_channels
T = 128        # time_steps
LATENT = 32    # latent_dim
NCLASS = 2     # num_classes
H1 = 64        # encoder conv1 / decoder convT1 output channels (fixed by module)
H2 = 32        # encoder conv2 / decoder convT1 input channels (fixed by module)
CH = 64        # classifier hidden width (fixed by module)
F = H2 * T     # flattened feature dim (32 * time_steps)


# --------------------------- fused kernel ---------------------------

def _fused_kernel(x_ref,
                  we1_ref, be1_ref, we2_ref, be2_ref,
                  wfc_ref, bfc_ref, wdec_ref, bdec_ref,
                  wd1_ref, bd1_ref, wd2_ref, bd2_ref,
                  wc1_ref, bc1_ref, wc2_ref, bc2_ref,
                  logits_ref, recon_ref, z_ref,
                  hflat_s, dec_s):
    B, cin, tt = x_ref.shape
    n = B * tt                     # batch packed along lanes
    h2c = dec_s.shape[0]           # bottleneck channel count (32)

    # --- pack batch along the lane axis: (Ci, B*T) ---
    x_p = jnp.concatenate([x_ref[b] for b in range(B)], axis=1)

    # --- 'same'-padding boundary masks, hoisted once for all 4 conv layers ---
    col = lax.broadcasted_iota(jnp.int32, (1, n), 1)
    left = col == 0
    right = col == tt - 1
    for b in range(1, B):
        left = left | (col == b * tt)
        right = right | (col == b * tt + tt - 1)

    def conv3(xp, w_ref, b_ref, relu):
        # xp: (Ci, n);  w_ref: (Co, 3*Ci) tap-concatenated [t-1 | t | t+1]
        x_tm1 = jnp.where(left, 0.0, pltpu.roll(xp, shift=1, axis=1))
        x_tp1 = jnp.where(right, 0.0, pltpu.roll(xp, shift=n - 1, axis=1))
        x_cat = jnp.concatenate([x_tm1, xp, x_tp1], axis=0)          # (3*Ci, n)
        y = jnp.dot(w_ref[...], x_cat, preferred_element_type=jnp.float32)
        y = y + b_ref[...]
        return jnp.maximum(y, 0.0) if relu else y

    # --- encoder: Conv1d -> ReLU -> Conv1d -> ReLU ---
    h1 = conv3(x_p, we1_ref, be1_ref, True)       # (H1, n)
    h2 = conv3(h1, we2_ref, be2_ref, True)        # (H2, n)

    # --- nn.Flatten (channel-major per batch) via VMEM scratch ---
    for b in range(B):
        for c in range(h2c):
            hflat_s[b:b + 1, c * tt:(c + 1) * tt] = h2[c:c + 1, b * tt:(b + 1) * tt]
    hflat = hflat_s[...]                          # (B, F) f32

    # --- latent FC: bf16 weights (lane-dense (LATENT, F)), f32 accumulation ---
    z = lax.dot_general(hflat.astype(jnp.bfloat16), wfc_ref[...],
                        (((1,), (1,)), ((), ())),
                        preferred_element_type=jnp.float32) + bfc_ref[...]
    z_ref[...] = z                                # (B, LATENT)

    # --- classifier head (f32) ---
    c1 = jnp.maximum(
        jnp.dot(z, wc1_ref[...], preferred_element_type=jnp.float32) + bc1_ref[...],
        0.0)
    logits_ref[...] = (jnp.dot(c1, wc2_ref[...], preferred_element_type=jnp.float32)
                       + bc2_ref[...])            # (B, NCLASS)

    # --- decoder FC: bf16 weights, f32 accumulation ---
    dec_flat = (jnp.dot(z.astype(jnp.bfloat16), wdec_ref[...],
                        preferred_element_type=jnp.float32)
                + bdec_ref[...])                  # (B, F)

    # --- nn.Unflatten(1, (32, T)) back to the packed conv layout (H2, B*T) ---
    for b in range(B):
        for c in range(h2c):
            dec_s[c:c + 1, b * tt:(b + 1) * tt] = dec_flat[b:b + 1, c * tt:(c + 1) * tt]
    dec_p = dec_s[...]                            # (H2, n)

    # --- decoder: ConvT1d -> ReLU -> ConvT1d  (lowered to fwd convs) ---
    d1 = conv3(dec_p, wd1_ref, bd1_ref, True)     # (H1, n)
    rec = conv3(d1, wd2_ref, bd2_ref, False)      # (CIN, n)

    # --- unpack batch from lanes into the (B, CIN, T) output ---
    for b in range(B):
        recon_ref[b] = rec[:, b * tt:(b + 1) * tt]


# --------------------------- weight repacking (JAX glue) ---------------------------

def _conv_w_cat(W):    # Conv1d weight (Co, Ci, 3) -> (Co, 3*Ci), taps [t-1 | t | t+1]
    return jnp.concatenate([W[:, :, 0], W[:, :, 1], W[:, :, 2]], axis=1)


def _convT_w_cat(W):   # ConvTranspose1d (Ci, Co, 3) -> equivalent fwd-conv (Co, 3*Ci)
    return jnp.concatenate([W[:, :, 2].T, W[:, :, 1].T, W[:, :, 0].T], axis=1)


# --------------------------- wrapper ---------------------------

def forward(params, x):
    """Returns (logits, recon, z) exactly like the PyTorch module."""
    B = x.shape[0]
    args = (
        x,
        _conv_w_cat(params["enc1_w"]),   params["enc1_b"].reshape(H1, 1),
        _conv_w_cat(params["enc2_w"]),   params["enc2_b"].reshape(H2, 1),
        params["fc_w"].astype(jnp.bfloat16),          params["fc_b"].reshape(1, LATENT),
        params["dec_fc_w"].T.astype(jnp.bfloat16),    params["dec_fc_b"].reshape(1, F),
        _convT_w_cat(params["dect1_w"]), params["dect1_b"].reshape(H1, 1),
        _convT_w_cat(params["dect2_w"]), params["dect2_b"].reshape(CIN, 1),
        params["clf1_w"].T,              params["clf1_b"].reshape(1, CH),
        params["clf2_w"].T,              params["clf2_b"].reshape(1, NCLASS),
    )
    out_shapes = (
        jax.ShapeDtypeStruct((B, NCLASS), jnp.float32),   # logits
        jax.ShapeDtypeStruct((B, CIN, T), jnp.float32),   # recon
        jax.ShapeDtypeStruct((B, LATENT), jnp.float32),   # z
    )

    n = B * T
    flops = 2 * n * (H1 * 3 * CIN + H2 * 3 * H1 + H1 * 3 * H2 + CIN * 3 * H1)
    flops += 2 * B * (F * LATENT + LATENT * F + LATENT * CH + CH * NCLASS)
    in_bytes = sum(int(a.size) * a.dtype.itemsize for a in args)
    out_bytes = sum(math.prod(s.shape) * jnp.dtype(s.dtype).itemsize for s in out_shapes)

    vmem = pl.BlockSpec(memory_space=pltpu.MemorySpace.VMEM)
    logits, recon, z = pl.pallas_call(
        _fused_kernel,
        out_shape=out_shapes,
        in_specs=[vmem] * len(args),
        out_specs=tuple(vmem for _ in out_shapes),
        scratch_shapes=[
            pltpu.VMEM((B, F), jnp.float32),        # Flatten buffer
            pltpu.VMEM((H2, B * T), jnp.float32),   # Unflatten buffer
        ],
        cost_estimate=pl.CostEstimate(
            flops=flops, transcendentals=0, bytes_accessed=in_bytes + out_bytes),
    )(*args)
    return logits, recon, z


# --------------------------- params ---------------------------

def init_params(key):
    """Deterministic parameters in the original PyTorch shapes."""
    ks = jax.random.split(key, 16)
    w = lambda k, s: (0.05 * jax.random.normal(k, s)).astype(jnp.float32)
    return {
        "enc1_w": w(ks[0], (H1, CIN, 3)),   "enc1_b": w(ks[1], (H1,)),
        "enc2_w": w(ks[2], (H2, H1, 3)),    "enc2_b": w(ks[3], (H2,)),
        "fc_w":   w(ks[4], (LATENT, F)),    "fc_b":   w(ks[5], (LATENT,)),
        "dec_fc_w": w(ks[6], (F, LATENT)),  "dec_fc_b": w(ks[7], (F,)),
        "dect1_w": w(ks[8], (H2, H1, 3)),   "dect1_b": w(ks[9], (H1,)),     # ConvTranspose1d(32,64,3)
        "dect2_w": w(ks[10], (H1, CIN, 3)), "dect2_b": w(ks[11], (CIN,)),   # ConvTranspose1d(64,CIN,3)
        "clf1_w": w(ks[12], (CH, LATENT)),  "clf1_b": w(ks[13], (CH,)),
        "clf2_w": w(ks[14], (NCLASS, CH)),  "clf2_b": w(ks[15], (NCLASS,)),
    }


# --------------------------- pure-JAX reference ---------------------------

def _ref_conv1d(x, W, b):   # x (B,Ci,T), W (Co,Ci,3), padding=1
    xp = jnp.pad(x, ((0, 0), (0, 0), (1, 1)))
    tt = x.shape[-1]
    y = sum(jnp.einsum("oc,bct->bot", W[:, :, k], xp[:, :, k:k + tt],
                       precision="highest") for k in range(3))
    return y + b[None, :, None]


def _ref_convT1d(x, W, b):  # x (B,Ci,T), W (Ci,Co,3), stride=1, padding=1
    xp = jnp.pad(x, ((0, 0), (0, 0), (1, 1)))
    tt = x.shape[-1]
    y = sum(jnp.einsum("co,bct->bot", W[:, :, k], xp[:, :, 2 - k:2 - k + tt],
                       precision="highest") for k in range(3))
    return y + b[None, :, None]


def ref_forward(params, x):
    B = x.shape[0]
    h1 = jax.nn.relu(_ref_conv1d(x, params["enc1_w"], params["enc1_b"]))
    h2 = jax.nn.relu(_ref_conv1d(h1, params["enc2_w"], params["enc2_b"]))
    hf = h2.reshape(B, F)
    z = jnp.dot(hf, params["fc_w"].T, precision="highest") + params["fc_b"]
    d = jnp.dot(z, params["dec_fc_w"].T, precision="highest") + params["dec_fc_b"]
    d = d.reshape(B, H2, T)
    d1 = jax.nn.relu(_ref_convT1d(d, params["dect1_w"], params["dect1_b"]))
    recon = _ref_convT1d(d1, params["dect2_w"], params["dect2_b"])
    c1 = jax.nn.relu(jnp.dot(z, params["clf1_w"].T, precision="highest") + params["clf1_b"])
    logits = jnp.dot(c1, params["clf2_w"].T, precision="highest") + params["clf2_b"]
    return logits, recon, z


# --------------------------- main ---------------------------

if __name__ == "__main__":
    key = jax.random.PRNGKey(0)
    pkey, xkey = jax.random.split(key)
    params = init_params(pkey)
    x = jax.random.normal(xkey, (2, CIN, T), dtype=jnp.float32)

    logits, recon, z = jax.block_until_ready(forward(params, x))

    assert logits.shape == (2, NCLASS)
    assert recon.shape == (2, CIN, T)
    assert z.shape == (2, LATENT)

    r_logits, r_recon, r_z = ref_forward(params, x)
    for got, ref in ((logits, r_logits), (recon, r_recon), (z, r_z)):
        rel = jnp.max(jnp.abs(got - ref)) / (jnp.max(jnp.abs(ref)) + 1e-6)
        assert float(rel) < 5e-2, f"mismatch: rel err {float(rel)}"

    print("KERNEL_OK")
</pallas_src>

<mosaic_0001>
module attributes {stable_mosaic.version = 11 : i64} {
  func.func @_fused_kernel(%arg0: memref<2x8x128xf32, #tpu.memory_space<vmem>>, %arg1: memref<64x24xf32, #tpu.memory_space<vmem>>, %arg2: memref<64x1xf32, #tpu.memory_space<vmem>>, %arg3: memref<32x192xf32, #tpu.memory_space<vmem>>, %arg4: memref<32x1xf32, #tpu.memory_space<vmem>>, %arg5: memref<32x4096xbf16, #tpu.memory_space<vmem>>, %arg6: memref<1x32xf32, #tpu.memory_space<vmem>>, %arg7: memref<32x4096xbf16, #tpu.memory_space<vmem>>, %arg8: memref<1x4096xf32, #tpu.memory_space<vmem>>, %arg9: memref<64x96xf32, #tpu.memory_space<vmem>>, %arg10: memref<64x1xf32, #tpu.memory_space<vmem>>, %arg11: memref<8x192xf32, #tpu.memory_space<vmem>>, %arg12: memref<8x1xf32, #tpu.memory_space<vmem>>, %arg13: memref<32x64xf32, #tpu.memory_space<vmem>>, %arg14: memref<1x64xf32, #tpu.memory_space<vmem>>, %arg15: memref<64x2xf32, #tpu.memory_space<vmem>>, %arg16: memref<1x2xf32, #tpu.memory_space<vmem>>, %arg17: memref<2x2xf32, #tpu.memory_space<vmem>>, %arg18: memref<2x8x128xf32, #tpu.memory_space<vmem>>, %arg19: memref<2x32xf32, #tpu.memory_space<vmem>>, %arg20: memref<2x4096xf32, #tpu.memory_space<vmem>>, %arg21: memref<32x256xf32, #tpu.memory_space<vmem>>) attributes {dimension_semantics = [], scalar_prefetch = 0 : i64, scratch_operands = 2 : i64, tpu.core_type = #tpu.core_type<tc>} {
    %c0 = arith.constant 0 : index
    %c0_0 = arith.constant 0 : index
    %c0_1 = arith.constant 0 : index
    %0 = vector.load %arg0[%c0, %c0_0, %c0_1] : memref<2x8x128xf32, #tpu.memory_space<vmem>>, vector<1x8x128xf32>
    %1 = vector.shape_cast %0 : vector<1x8x128xf32> to vector<8x128xf32>
    %c1 = arith.constant 1 : index
    %c0_2 = arith.constant 0 : index
    %c0_3 = arith.constant 0 : index
    %2 = vector.load %arg0[%c1, %c0_2, %c0_3] : memref<2x8x128xf32, #tpu.memory_space<vmem>>, vector<1x8x128xf32>
    %3 = vector.shape_cast %2 : vector<1x8x128xf32> to vector<8x128xf32>
    %4 = tpu.concatenate %1, %3 in 1 : vector<8x128xf32>, vector<8x128xf32> -> vector<8x256xf32>
    %5 = tpu.iota {dimensions = array<i32: 1>} : vector<1x256xi32>
    %c0_i32 = arith.constant 0 : i32
    %6 = vector.broadcast %c0_i32 : i32 to vector<1x256xi32>
    %7 = arith.cmpi eq, %5, %6 : vector<1x256xi32>
    %c127_i32 = arith.constant 127 : i32
    %8 = vector.broadcast %c127_i32 : i32 to vector<1x256xi32>
    %9 = arith.cmpi eq, %5, %8 : vector<1x256xi32>
    %c128_i32 = arith.constant 128 : i32
    %10 = vector.broadcast %c128_i32 : i32 to vector<1x256xi32>
    %11 = arith.cmpi eq, %5, %10 : vector<1x256xi32>
    %12 = arith.ori %7, %11 : vector<1x256xi1>
    %c255_i32 = arith.constant 255 : i32
    %13 = vector.broadcast %c255_i32 : i32 to vector<1x256xi32>
    %14 = arith.cmpi eq, %5, %13 : vector<1x256xi32>
    %15 = arith.ori %9, %14 : vector<1x256xi1>
    %c1_i32 = arith.constant 1 : i32
    %16 = tpu.dynamic_rotate %4 by %c1_i32 dim 1 : vector<8x256xf32>, i32 -> vector<8x256xf32>
    %cst = arith.constant 0.000000e+00 : f32
    %17 = vector.shape_cast %12 : vector<1x256xi1> to vector<1x256xi1>
    %18 = vector.broadcast %17 : vector<1x256xi1> to vector<8x256xi1>
    %19 = vector.broadcast %cst : f32 to vector<8x256xf32>
    %20 = arith.select %18, %19, %16 : vector<8x256xi1>, vector<8x256xf32>
    %c255_i32_4 = arith.constant 255 : i32
    %21 = tpu.dynamic_rotate %4 by %c255_i32_4 dim 1 : vector<8x256xf32>, i32 -> vector<8x256xf32>
    %cst_5 = arith.constant 0.000000e+00 : f32
    %22 = vector.shape_cast %15 : vector<1x256xi1> to vector<1x256xi1>
    %23 = vector.broadcast %22 : vector<1x256xi1> to vector<8x256xi1>
    %24 = vector.broadcast %cst_5 : f32 to vector<8x256xf32>
    %25 = arith.select %23, %24, %21 : vector<8x256xi1>, vector<8x256xf32>
    %26 = tpu.concatenate %20, %4, %25 in 0 : vector<8x256xf32>, vector<8x256xf32>, vector<8x256xf32> -> vector<24x256xf32>
    %c0_6 = arith.constant 0 : index
    %c0_7 = arith.constant 0 : index
    %27 = vector.load %arg1[%c0_6, %c0_7] : memref<64x24xf32, #tpu.memory_space<vmem>>, vector<64x24xf32>
    %cst_8 = arith.constant dense<0.000000e+00> : vector<64x256xf32>
    %28 = tpu.matmul %27, %26, %cst_8 {dimension_numbers = #tpu.dot_dimension_numbers<[1], [0], [0], [1], [0, 0, 1, 1], [], []>} : vector<64x24xf32>, vector<24x256xf32>, vector<64x256xf32> -> vector<64x256xf32>
    %c0_9 = arith.constant 0 : index
    %c0_10 = arith.constant 0 : index
    %29 = vector.load %arg2[%c0_9, %c0_10] : memref<64x1xf32, #tpu.memory_space<vmem>>, vector<64x1xf32>
    %30 = vector.broadcast %29 : vector<64x1xf32> to vector<64x256xf32>
    %31 = arith.addf %28, %30 : vector<64x256xf32>
    %cst_11 = arith.constant 0.000000e+00 : f32
    %32 = vector.broadcast %cst_11 : f32 to vector<64x256xf32>
    %33 = arith.maximumf %31, %32 : vector<64x256xf32>
    %c1_i32_12 = arith.constant 1 : i32
    %34 = tpu.dynamic_rotate %33 by %c1_i32_12 dim 1 : vector<64x256xf32>, i32 -> vector<64x256xf32>
    %cst_13 = arith.constant 0.000000e+00 : f32
    %35 = vector.shape_cast %12 : vector<1x256xi1> to vector<1x256xi1>
    %36 = vector.broadcast %35 : vector<1x256xi1> to vector<64x256xi1>
    %37 = vector.broadcast %cst_13 : f32 to vector<64x256xf32>
    %38 = arith.select %36, %37, %34 : vector<64x256xi1>, vector<64x256xf32>
    %c255_i32_14 = arith.constant 255 : i32
    %39 = tpu.dynamic_rotate %33 by %c255_i32_14 dim 1 : vector<64x256xf32>, i32 -> vector<64x256xf32>
    %cst_15 = arith.constant 0.000000e+00 : f32
    %40 = vector.shape_cast %15 : vector<1x256xi1> to vector<1x256xi1>
    %41 = vector.broadcast %40 : vector<1x256xi1> to vector<64x256xi1>
    %42 = vector.broadcast %cst_15 : f32 to vector<64x256xf32>
    %43 = arith.select %41, %42, %39 : vector<64x256xi1>, vector<64x256xf32>
    %44 = tpu.concatenate %38, %33, %43 in 0 : vector<64x256xf32>, vector<64x256xf32>, vector<64x256xf32> -> vector<192x256xf32>
    %c0_16 = arith.constant 0 : index
    %c0_17 = arith.constant 0 : index
    %45 = vector.load %arg3[%c0_16, %c0_17] : memref<32x192xf32, #tpu.memory_space<vmem>>, vector<32x192xf32>
    %cst_18 = arith.constant dense<0.000000e+00> : vector<32x256xf32>
    %46 = tpu.matmul %45, %44, %cst_18 {dimension_numbers = #tpu.dot_dimension_numbers<[1], [0], [0], [1], [0, 0, 1, 1], [], []>} : vector<32x192xf32>, vector<192x256xf32>, vector<32x256xf32> -> vector<32x256xf32>
    %c0_19 = arith.constant 0 : index
    %c0_20 = arith.constant 0 : index
    %47 = vector.load %arg4[%c0_19, %c0_20] : memref<32x1xf32, #tpu.memory_space<vmem>>, vector<32x1xf32>
    %48 = vector.broadcast %47 : vector<32x1xf32> to vector<32x256xf32>
    %49 = arith.addf %46, %48 : vector<32x256xf32>
    %cst_21 = arith.constant 0.000000e+00 : f32
    %50 = vector.broadcast %cst_21 : f32 to vector<32x256xf32>
    %51 = arith.maximumf %49, %50 : vector<32x256xf32>
    %52 = vector.extract_strided_slice %51 {offsets = [0, 0], sizes = [1, 128], strides = [1, 1]} : vector<32x256xf32> to vector<1x128xf32>
    %c0_22 = arith.constant 0 : index
    %c0_23 = arith.constant 0 : index
    %53 = vector.load %arg20[%c0_22, %c0_23] : memref<2x4096xf32, #tpu.memory_space<vmem>>, vector<1x128xf32>
    tpu.vector_store %arg20[%c0_22, %c0_23], %52 {strides = array<i32>} : memref<2x4096xf32, #tpu.memory_space<vmem>>, vector<1x128xf32>,
    %54 = vector.extract_strided_slice %51 {offsets = [1, 0], sizes = [1, 128], strides = [1, 1]} : vector<32x256xf32> to vector<1x128xf32>
    %c0_24 = arith.constant 0 : index
    %c128 = arith.constant 128 : index
    %55 = vector.load %arg20[%c0_24, %c128] : memref<2x4096xf32, #tpu.memory_space<vmem>>, vector<1x128xf32>
    tpu.vector_store %arg20[%c0_24, %c128], %54 {strides = array<i32>} : memref<2x4096xf32, #tpu.memory_space<vmem>>, vector<1x128xf32>,
    %56 = vector.extract_strided_slice %51 {offsets = [2, 0], sizes = [1, 128], strides = [1, 1]} : vector<32x256xf32> to vector<1x128xf32>
    %c0_25 = arith.constant 0 : index
    %c256 = arith.constant 256 : index
    %57 = vector.load %arg20[%c0_25, %c256] : memref<2x4096xf32, #tpu.memory_space<vmem>>, vector<1x128xf32>
    tpu.vector_store %arg20[%c0_25, %c256], %56 {strides = array<i32>} : memref<2x4096xf32, #tpu.memory_space<vmem>>, vector<1x128xf32>,
    %58 = vector.extract_strided_slice %51 {offsets = [3, 0], sizes = [1, 128], strides = [1, 1]} : vector<32x256xf32> to vector<1x128xf32>
    %c0_26 = arith.constant 0 : index
    %c384 = arith.constant 384 : index
    %59 = vector.load %arg20[%c0_26, %c384] : memref<2x4096xf32, #tpu.memory_space<vmem>>, vector<1x128xf32>
    tpu.vector_store %arg20[%c0_26, %c384], %58 {strides = array<i32>} : memref<2x4096xf32, #tpu.memory_space<vmem>>, vector<1x128xf32>,
    %60 = vector.extract_strided_slice %51 {offsets = [4, 0], sizes = [1, 128], strides = [1, 1]} : vector<32x256xf32> to vector<1x128xf32>
    %c0_27 = arith.constant 0 : index
    %c512 = arith.constant 512 : index
    %61 = vector.load %arg20[%c0_27, %c512] : memref<2x4096xf32, #tpu.memory_space<vmem>>, vector<1x128xf32>
    tpu.vector_store %arg20[%c0_27, %c512], %60 {strides = array<i32>} : memref<2x4096xf32, #tpu.memory_space<vmem>>, vector<1x128xf32>,
    %62 = vector.extract_strided_slice %51 {offsets = [5, 0], sizes = [1, 128], strides = [1, 1]} : vector<32x256xf32> to vector<1x128xf32>
    %c0_28 = arith.constant 0 : index
    %c640 = arith.constant 640 : index
    %63 = vector.load %arg20[%c0_28, %c640] : memref<2x4096xf32, #tpu.memory_space<vmem>>, vector<1x128xf32>
    tpu.vector_store %arg20[%c0_28, %c640], %62 {strides = array<i32>} : memref<2x4096xf32, #tpu.memory_space<vmem>>, vector<1x128xf32>,
    %64 = vector.extract_strided_slice %51 {offsets = [6, 0], sizes = [1, 128], strides = [1, 1]} : vector<32x256xf32> to vector<1x128xf32>
    %c0_29 = arith.constant 0 : index
    %c768 = arith.constant 768 : index
    %65 = vector.load %arg20[%c0_29, %c768] : memref<2x4096xf32, #tpu.memory_space<vmem>>, vector<1x128xf32>
    tpu.vector_store %arg20[%c0_29, %c768], %64 {strides = array<i32>} : memref<2x4096xf32, #tpu.memory_space<vmem>>, vector<1x128xf32>,
    %66 = vector.extract_strided_slice %51 {offsets = [7, 0], sizes = [1, 128], strides = [1, 1]} : vector<32x256xf32> to vector<1x128xf32>
    %c0_30 = arith.constant 0 : index
    %c896 = arith.constant 896 : index
    %67 = vector.load %arg20[%c0_30, %c896] : memref<2x4096xf32, #tpu.memory_space<vmem>>, vector<1x128xf32>
    tpu.vector_store %arg20[%c0_30, %c896], %66 {strides = array<i32>} : memref<2x4096xf32, #tpu.memory_space<vmem>>, vector<1x128xf32>,
    %68 = vector.extract_strided_slice %51 {offsets = [8, 0], sizes = [1, 128], strides = [1, 1]} : vector<32x256xf32> to vector<1x128xf32>
    %c0_31 = arith.constant 0 : index
    %c1024 = arith.constant 1024 : index
    %69 = vector.load %arg20[%c0_31, %c1024] : memref<2x4096xf32, #tpu.memory_space<vmem>>, vector<1x128xf32>
    tpu.vector_store %arg20[%c0_31, %c1024], %68 {strides = array<i32>} : memref<2x4096xf32, #tpu.memory_space<vmem>>, vector<1x128xf32>,
    %70 = vector.extract_strided_slice %51 {offsets = [9, 0], sizes = [1, 128], strides = [1, 1]} : vector<32x256xf32> to vector<1x128xf32>
    %c0_32 = arith.constant 0 : index
    %c1152 = arith.constant 1152 : index
    %71 = vector.load %arg20[%c0_32, %c1152] : memref<2x4096xf32, #tpu.memory_space<vmem>>, vector<1x128xf32>
    tpu.vector_store %arg20[%c0_32, %c1152], %70 {strides = array<i32>} : memref<2x4096xf32, #tpu.memory_space<vmem>>, vector<1x128xf32>,
    %72 = vector.extract_strided_slice %51 {offsets = [10, 0], sizes = [1, 128], strides = [1, 1]} : vector<32x256xf32> to vector<1x128xf32>
    %c0_33 = arith.constant 0 : index
    %c1280 = arith.constant 1280 : index
    %73 = vector.load %arg20[%c0_33, %c1280] : memref<2x4096xf32, #tpu.memory_space<vmem>>, vector<1x128xf32>
    tpu.vector_store %arg20[%c0_33, %c1280], %72 {strides = array<i32>} : memref<2x4096xf32, #tpu.memory_space<vmem>>, vector<1x128xf32>,
    %74 = vector.extract_strided_slice %51 {offsets = [11, 0], sizes = [1, 128], strides = [1, 1]} : vector<32x256xf32> to vector<1x128xf32>
    %c0_34 = arith.constant 0 : index
    %c1408 = arith.constant 1408 : index
    %75 = vector.load %arg20[%c0_34, %c1408] : memref<2x4096xf32, #tpu.memory_space<vmem>>, vector<1x128xf32>
    tpu.vector_store %arg20[%c0_34, %c1408], %74 {strides = array<i32>} : memref<2x4096xf32, #tpu.memory_space<vmem>>, vector<1x128xf32>,
    %76 = vector.extract_strided_slice %51 {offsets = [12, 0], sizes = [1, 128], strides = [1, 1]} : vector<32x256xf32> to vector<1x128xf32>
    %c0_35 = arith.constant 0 : index
    %c1536 = arith.constant 1536 : index
    %77 = vector.load %arg20[%c0_35, %c1536] : memref<2x4096xf32, #tpu.memory_space<vmem>>, vector<1x128xf32>
    tpu.vector_store %arg20[%c0_35, %c1536], %76 {strides = array<i32>} : memref<2x4096xf32, #tpu.memory_space<vmem>>, vector<1x128xf32>,
    %78 = vector.extract_strided_slice %51 {offsets = [13, 0], sizes = [1, 128], strides = [1, 1]} : vector<32x256xf32> to vector<1x128xf32>
    %c0_36 = arith.constant 0 : index
    %c1664 = arith.constant 1664 : index
    %79 = vector.load %arg20[%c0_36, %c1664] : memref<2x4096xf32, #tpu.memory_space<vmem>>, vector<1x128xf32>
    tpu.vector_store %arg20[%c0_36, %c1664], %78 {strides = array<i32>} : memref<2x4096xf32, #tpu.memory_space<vmem>>, vector<1x128xf32>,
    %80 = vector.extract_strided_slice %51 {offsets = [14, 0], sizes = [1, 128], strides = [1, 1]} : vector<32x256xf32> to vector<1x128xf32>
    %c0_37 = arith.constant 0 : index
    %c1792 = arith.constant 1792 : index
    %81 = vector.load %arg20[%c0_37, %c1792] : memref<2x4096xf32, #tpu.memory_space<vmem>>, vector<1x128xf32>
    tpu.vector_store %arg20[%c0_37, %c1792], %80 {strides = array<i32>} : memref<2x4096xf32, #tpu.memory_space<vmem>>, vector<1x128xf32>,
    %82 = vector.extract_strided_slice %51 {offsets = [15, 0], sizes = [1, 128], strides = [1, 1]} : vector<32x256xf32> to vector<1x128xf32>
    %c0_38 = arith.constant 0 : index
    %c1920 = arith.constant 1920 : index
    %83 = vector.load %arg20[%c0_38, %c1920] : memref<2x4096xf32, #tpu.memory_space<vmem>>, vector<1x128xf32>
    tpu.vector_store %arg20[%c0_38, %c1920], %82 {strides = array<i32>} : memref<2x4096xf32, #tpu.memory_space<vmem>>, vector<1x128xf32>,
    %84 = vector.extract_strided_slice %51 {offsets = [16, 0], sizes = [1, 128], strides = [1, 1]} : vector<32x256xf32> to vector<1x128xf32>
    %c0_39 = arith.constant 0 : index
    %c2048 = arith.constant 2048 : index
    %85 = vector.load %arg20[%c0_39, %c2048] : memref<2x4096xf32, #tpu.memory_space<vmem>>, vector<1x128xf32>
    tpu.vector_store %arg20[%c0_39, %c2048], %84 {strides = array<i32>} : memref<2x4096xf32, #tpu.memory_space<vmem>>, vector<1x128xf32>,
    %86 = vector.extract_strided_slice %51 {offsets = [17, 0], sizes = [1, 128], strides = [1, 1]} : vector<32x256xf32> to vector<1x128xf32>
    %c0_40 = arith.constant 0 : index
    %c2176 = arith.constant 2176 : index
    %87 = vector.load %arg20[%c0_40, %c2176] : memref<2x4096xf32, #tpu.memory_space<vmem>>, vector<1x128xf32>
    tpu.vector_store %arg20[%c0_40, %c2176], %86 {strides = array<i32>} : memref<2x4096xf32, #tpu.memory_space<vmem>>, vector<1x128xf32>,
    %88 = vector.extract_strided_slice %51 {offsets = [18, 0], sizes = [1, 128], strides = [1, 1]} : vector<32x256xf32> to vector<1x128xf32>
    %c0_41 = arith.constant 0 : index
    %c2304 = arith.constant 2304 : index
    %89 = vector.load %arg20[%c0_41, %c2304] : memref<2x4096xf32, #tpu.memory_space<vmem>>, vector<1x128xf32>
    tpu.vector_store %arg20[%c0_41, %c2304], %88 {strides = array<i32>} : memref<2x4096xf32, #tpu.memory_space<vmem>>, vector<1x128xf32>,
    %90 = vector.extract_strided_slice %51 {offsets = [19, 0], sizes = [1, 128], strides = [1, 1]} : vector<32x256xf32> to vector<1x128xf32>
    %c0_42 = arith.constant 0 : index
    %c2432 = arith.constant 2432 : index
    %91 = vector.load %arg20[%c0_42, %c2432] : memref<2x4096xf32, #tpu.memory_space<vmem>>, vector<1x128xf32>
    tpu.vector_store %arg20[%c0_42, %c2432], %90 {strides = array<i32>} : memref<2x4096xf32, #tpu.memory_space<vmem>>, vector<1x128xf32>,
    %92 = vector.extract_strided_slice %51 {offsets = [20, 0], sizes = [1, 128], strides = [1, 1]} : vector<32x256xf32> to vector<1x128xf32>
    %c0_43 = arith.constant 0 : index
    %c2560 = arith.constant 2560 : index
    %93 = vector.load %arg20[%c0_43, %c2560] : memref<2x4096xf32, #tpu.memory_space<vmem>>, vector<1x128xf32>
    tpu.vector_store %arg20[%c0_43, %c2560], %92 {strides = array<i32>} : memref<2x4096xf32, #tpu.memory_space<vmem>>, vector<1x128xf32>,
    %94 = vector.extract_strided_slice %51 {offsets = [21, 0], sizes = [1, 128], strides = [1, 1]} : vector<32x256xf32> to vector<1x128xf32>
    %c0_44 = arith.constant 0 : index
    %c2688 = arith.constant 2688 : index
    %95 = vector.load %arg20[%c0_44, %c2688] : memref<2x4096xf32, #tpu.memory_space<vmem>>, vector<1x128xf32>
    tpu.vector_store %arg20[%c0_44, %c2688], %94 {strides = array<i32>} : memref<2x4096xf32, #tpu.memory_space<vmem>>, vector<1x128xf32>,
    %96 = vector.extract_strided_slice %51 {offsets = [22, 0], sizes = [1, 128], strides = [1, 1]} : vector<32x256xf32> to vector<1x128xf32>
    %c0_45 = arith.constant 0 : index
    %c2816 = arith.constant 2816 : index
    %97 = vector.load %arg20[%c0_45, %c2816] : memref<2x4096xf32, #tpu.memory_space<vmem>>, vector<1x128xf32>
    tpu.vector_store %arg20[%c0_45, %c2816], %96 {strides = array<i32>} : memref<2x4096xf32, #tpu.memory_space<vmem>>, vector<1x128xf32>,
    %98 = vector.extract_strided_slice %51 {offsets = [23, 0], sizes = [1, 128], strides = [1, 1]} : vector<32x256xf32> to vector<1x128xf32>
    %c0_46 = arith.constant 0 : index
    %c2944 = arith.constant 2944 : index
    %99 = vector.load %arg20[%c0_46, %c2944] : memref<2x4096xf32, #tpu.memory_space<vmem>>, vector<1x128xf32>
    tpu.vector_store %arg20[%c0_46, %c2944], %98 {strides = array<i32>} : memref<2x4096xf32, #tpu.memory_space<vmem>>, vector<1x128xf32>,
    %100 = vector.extract_strided_slice %51 {offsets = [24, 0], sizes = [1, 128], strides = [1, 1]} : vector<32x256xf32> to vector<1x128xf32>
    %c0_47 = arith.constant 0 : index
    %c3072 = arith.constant 3072 : index
    %101 = vector.load %arg20[%c0_47, %c3072] : memref<2x4096xf32, #tpu.memory_space<vmem>>, vector<1x128xf32>
    tpu.vector_store %arg20[%c0_47, %c3072], %100 {strides = array<i32>} : memref<2x4096xf32, #tpu.memory_space<vmem>>, vector<1x128xf32>,
    %102 = vector.extract_strided_slice %51 {offsets = [25, 0], sizes = [1, 128], strides = [1, 1]} : vector<32x256xf32> to vector<1x128xf32>
    %c0_48 = arith.constant 0 : index
    %c3200 = arith.constant 3200 : index
    %103 = vector.load %arg20[%c0_48, %c3200] : memref<2x4096xf32, #tpu.memory_space<vmem>>, vector<1x128xf32>
    tpu.vector_store %arg20[%c0_48, %c3200], %102 {strides = array<i32>} : memref<2x4096xf32, #tpu.memory_space<vmem>>, vector<1x128xf32>,
    %104 = vector.extract_strided_slice %51 {offsets = [26, 0], sizes = [1, 128], strides = [1, 1]} : vector<32x256xf32> to vector<1x128xf32>
    %c0_49 = arith.constant 0 : index
    %c3328 = arith.constant 3328 : index
    %105 = vector.load %arg20[%c0_49, %c3328] : memref<2x4096xf32, #tpu.memory_space<vmem>>, vector<1x128xf32>
    tpu.vector_store %arg20[%c0_49, %c3328], %104 {strides = array<i32>} : memref<2x4096xf32, #tpu.memory_space<vmem>>, vector<1x128xf32>,
    %106 = vector.extract_strided_slice %51 {offsets = [27, 0], sizes = [1, 128], strides = [1, 1]} : vector<32x256xf32> to vector<1x128xf32>
    %c0_50 = arith.constant 0 : index
    %c3456 = arith.constant 3456 : index
    %107 = vector.load %arg20[%c0_50, %c3456] : memref<2x4096xf32, #tpu.memory_space<vmem>>, vector<1x128xf32>
    tpu.vector_store %arg20[%c0_50, %c3456], %106 {strides = array<i32>} : memref<2x4096xf32, #tpu.memory_space<vmem>>, vector<1x128xf32>,
    %108 = vector.extract_strided_slice %51 {offsets = [28, 0], sizes = [1, 128], strides = [1, 1]} : vector<32x256xf32> to vector<1x128xf32>
    %c0_51 = arith.constant 0 : index
    %c3584 = arith.constant 3584 : index
    %109 = vector.load %arg20[%c0_51, %c3584] : memref<2x4096xf32, #tpu.memory_space<vmem>>, vector<1x128xf32>
    tpu.vector_store %arg20[%c0_51, %c3584], %108 {strides = array<i32>} : memref<2x4096xf32, #tpu.memory_space<vmem>>, vector<1x128xf32>,
    %110 = vector.extract_strided_slice %51 {offsets = [29, 0], sizes = [1, 128], strides = [1, 1]} : vector<32x256xf32> to vector<1x128xf32>
    %c0_52 = arith.constant 0 : index
    %c3712 = arith.constant 3712 : index
    %111 = vector.load %arg20[%c0_52, %c3712] : memref<2x4096xf32, #tpu.memory_space<vmem>>, vector<1x128xf32>
    tpu.vector_store %arg20[%c0_52, %c3712], %110 {strides = array<i32>} : memref<2x4096xf32, #tpu.memory_space<vmem>>, vector<1x128xf32>,
    %112 = vector.extract_strided_slice %51 {offsets = [30, 0], sizes = [1, 128], strides = [1, 1]} : vector<32x256xf32> to vector<1x128xf32>
    %c0_53 = arith.constant 0 : index
    %c3840 = arith.constant 3840 : index
    %113 = vector.load %arg20[%c0_53, %c3840] : memref<2x4096xf32, #tpu.memory_space<vmem>>, vector<1x128xf32>
    tpu.vector_store %arg20[%c0_53, %c3840], %112 {strides = array<i32>} : memref<2x4096xf32, #tpu.memory_space<vmem>>, vector<1x128xf32>,
    %114 = vector.extract_strided_slice %51 {offsets = [31, 0], sizes = [1, 128], strides = [1, 1]} : vector<32x256xf32> to vector<1x128xf32>
    %c0_54 = arith.constant 0 : index
    %c3968 = arith.constant 3968 : index
    %115 = vector.load %arg20[%c0_54, %c3968] : memref<2x4096xf32, #tpu.memory_space<vmem>>, vector<1x128xf32>
    tpu.vector_store %arg20[%c0_54, %c3968], %114 {strides = array<i32>} : memref<2x4096xf32, #tpu.memory_space<vmem>>, vector<1x128xf32>,
    %116 = vector.extract_strided_slice %51 {offsets = [0, 128], sizes = [1, 128], strides = [1, 1]} : vector<32x256xf32> to vector<1x128xf32>
    %c1_55 = arith.constant 1 : index
    %c0_56 = arith.constant 0 : index
    %117 = vector.load %arg20[%c1_55, %c0_56] : memref<2x4096xf32, #tpu.memory_space<vmem>>, vector<1x128xf32>
    tpu.vector_store %arg20[%c1_55, %c0_56], %116 {strides = array<i32>} : memref<2x4096xf32, #tpu.memory_space<vmem>>, vector<1x128xf32>,
    %118 = vector.extract_strided_slice %51 {offsets = [1, 128], sizes = [1, 128], strides = [1, 1]} : vector<32x256xf32> to vector<1x128xf32>
    %c1_57 = arith.constant 1 : index
    %c128_58 = arith.constant 128 : index
    %119 = vector.load %arg20[%c1_57, %c128_58] : memref<2x4096xf32, #tpu.memory_space<vmem>>, vector<1x128xf32>
    tpu.vector_store %arg20[%c1_57, %c128_58], %118 {strides = array<i32>} : memref<2x4096xf32, #tpu.memory_space<vmem>>, vector<1x128xf32>,
    %120 = vector.extract_strided_slice %51 {offsets = [2, 128], sizes = [1, 128], strides = [1, 1]} : vector<32x256xf32> to vector<1x128xf32>
    %c1_59 = arith.constant 1 : index
    %c256_60 = arith.constant 256 : index
    %121 = vector.load %arg20[%c1_59, %c256_60] : memref<2x4096xf32, #tpu.memory_space<vmem>>, vector<1x128xf32>
    tpu.vector_store %arg20[%c1_59, %c256_60], %120 {strides = array<i32>} : memref<2x4096xf32, #tpu.memory_space<vmem>>, vector<1x128xf32>,
    %122 = vector.extract_strided_slice %51 {offsets = [3, 128], sizes = [1, 128], strides = [1, 1]} : vector<32x256xf32> to vector<1x128xf32>
    %c1_61 = arith.constant 1 : index
    %c384_62 = arith.constant 384 : index
    %123 = vector.load %arg20[%c1_61, %c384_62] : memref<2x4096xf32, #tpu.memory_space<vmem>>, vector<1x128xf32>
    tpu.vector_store %arg20[%c1_61, %c384_62], %122 {strides = array<i32>} : memref<2x4096xf32, #tpu.memory_space<vmem>>, vector<1x128xf32>,
    %124 = vector.extract_strided_slice %51 {offsets = [4, 128], sizes = [1, 128], strides = [1, 1]} : vector<32x256xf32> to vector<1x128xf32>
    %c1_63 = arith.constant 1 : index
    %c512_64 = arith.constant 512 : index
    %125 = vector.load %arg20[%c1_63, %c512_64] : memref<2x4096xf32, #tpu.memory_space<vmem>>, vector<1x128xf32>
    tpu.vector_store %arg20[%c1_63, %c512_64], %124 {strides = array<i32>} : memref<2x4096xf32, #tpu.memory_space<vmem>>, vector<1x128xf32>,
    %126 = vector.extract_strided_slice %51 {offsets = [5, 128], sizes = [1, 128], strides = [1, 1]} : vector<32x256xf32> to vector<1x128xf32>
    %c1_65 = arith.constant 1 : index
    %c640_66 = arith.constant 640 : index
    %127 = vector.load %arg20[%c1_65, %c640_66] : memref<2x4096xf32, #tpu.memory_space<vmem>>, vector<1x128xf32>
    tpu.vector_store %arg20[%c1_65, %c640_66], %126 {strides = array<i32>} : memref<2x4096xf32, #tpu.memory_space<vmem>>, vector<1x128xf32>,
    %128 = vector.extract_strided_slice %51 {offsets = [6, 128], sizes = [1, 128], strides = [1, 1]} : vector<32x256xf32> to vector<1x128xf32>
    %c1_67 = arith.constant 1 : index
    %c768_68 = arith.constant 768 : index
    %129 = vector.load %arg20[%c1_67, %c768_68] : memref<2x4096xf32, #tpu.memory_space<vmem>>, vector<1x128xf32>
    tpu.vector_store %arg20[%c1_67, %c768_68], %128 {strides = array<i32>} : memref<2x4096xf32, #tpu.memory_space<vmem>>, vector<1x128xf32>,
    %130 = vector.extract_strided_slice %51 {offsets = [7, 128], sizes = [1, 128], strides = [1, 1]} : vector<32x256xf32> to vector<1x128xf32>
    %c1_69 = arith.constant 1 : index
    %c896_70 = arith.constant 896 : index
    %131 = vector.load %arg20[%c1_69, %c896_70] : memref<2x4096xf32, #tpu.memory_space<vmem>>, vector<1x128xf32>
    tpu.vector_store %arg20[%c1_69, %c896_70], %130 {strides = array<i32>} : memref<2x4096xf32, #tpu.memory_space<vmem>>, vector<1x128xf32>,
    %132 = vector.extract_strided_slice %51 {offsets = [8, 128], sizes = [1, 128], strides = [1, 1]} : vector<32x256xf32> to vector<1x128xf32>
    %c1_71 = arith.constant 1 : index
    %c1024_72 = arith.constant 1024 : index
    %133 = vector.load %arg20[%c1_71, %c1024_72] : memref<2x4096xf32, #tpu.memory_space<vmem>>, vector<1x128xf32>
    tpu.vector_store %arg20[%c1_71, %c1024_72], %132 {strides = array<i32>} : memref<2x4096xf32, #tpu.memory_space<vmem>>, vector<1x128xf32>,
    %134 = vector.extract_strided_slice %51 {offsets = [9, 128], sizes = [1, 128], strides = [1, 1]} : vector<32x256xf32> to vector<1x128xf32>
    %c1_73 = arith.constant 1 : index
    %c1152_74 = arith.constant 1152 : index
    %135 = vector.load %arg20[%c1_73, %c1152_74] : memref<2x4096xf32, #tpu.memory_space<vmem>>, vector<1x128xf32>
    tpu.vector_store %arg20[%c1_73, %c1152_74], %134 {strides = array<i32>} : memref<2x4096xf32, #tpu.memory_space<vmem>>, vector<1x128xf32>,
    %136 = vector.extract_strided_slice %51 {offsets = [10, 128], sizes = [1, 128], strides = [1, 1]} : vector<32x256xf32> to vector<1x128xf32>
    %c1_75 = arith.constant 1 : index
    %c1280_76 = arith.constant 1280 : index
    %137 = vector.load %arg20[%c1_75, %c1280_76] : memref<2x4096xf32, #tpu.memory_space<vmem>>, vector<1x128xf32>
    tpu.vector_store %arg20[%c1_75, %c1280_76], %136 {strides = array<i32>} : memref<2x4096xf32, #tpu.memory_space<vmem>>, vector<1x128xf32>,
    %138 = vector.extract_strided_slice %51 {offsets = [11, 128], sizes = [1, 128], strides = [1, 1]} : vector<32x256xf32> to vector<1x128xf32>
    %c1_77 = arith.constant 1 : index
    %c1408_78 = arith.constant 1408 : index
    %139 = vector.load %arg20[%c1_77, %c1408_78] : memref<2x4096xf32, #tpu.memory_space<vmem>>, vector<1x128xf32>
    tpu.vector_store %arg20[%c1_77, %c1408_78], %138 {strides = array<i32>} : memref<2x4096xf32, #tpu.memory_space<vmem>>, vector<1x128xf32>,
    %140 = vector.extract_strided_slice %51 {offsets = [12, 128], sizes = [1, 128], strides = [1, 1]} : vector<32x256xf32> to vector<1x128xf32>
    %c1_79 = arith.constant 1 : index
    %c1536_80 = arith.constant 1536 : index
    %141 = vector.load %arg20[%c1_79, %c1536_80] : memref<2x4096xf32, #tpu.memory_space<vmem>>, vector<1x128xf32>
    tpu.vector_store %arg20[%c1_79, %c1536_80], %140 {strides = array<i32>} : memref<2x4096xf32, #tpu.memory_space<vmem>>, vector<1x128xf32>,
    %142 = vector.extract_strided_slice %51 {offsets = [13, 128], sizes = [1, 128], strides = [1, 1]} : vector<32x256xf32> to vector<1x128xf32>
    %c1_81 = arith.constant 1 : index
    %c1664_82 = arith.constant 1664 : index
    %143 = vector.load %arg20[%c1_81, %c1664_82] : memref<2x4096xf32, #tpu.memory_space<vmem>>, vector<1x128xf32>
    tpu.vector_store %arg20[%c1_81, %c1664_82], %142 {strides = array<i32>} : memref<2x4096xf32, #tpu.memory_space<vmem>>, vector<1x128xf32>,
    %144 = vector.extract_strided_slice %51 {offsets = [14, 128], sizes = [1, 128], strides = [1, 1]} : vector<32x256xf32> to vector<1x128xf32>
    %c1_83 = arith.constant 1 : index
    %c1792_84 = arith.constant 1792 : index
    %145 = vector.load %arg20[%c1_83, %c1792_84] : memref<2x4096xf32, #tpu.memory_space<vmem>>, vector<1x128xf32>
    tpu.vector_store %arg20[%c1_83, %c1792_84], %144 {strides = array<i32>} : memref<2x4096xf32, #tpu.memory_space<vmem>>, vector<1x128xf32>,
    %146 = vector.extract_strided_slice %51 {offsets = [15, 128], sizes = [1, 128], strides = [1, 1]} : vector<32x256xf32> to vector<1x128xf32>
    %c1_85 = arith.constant 1 : index
    %c1920_86 = arith.constant 1920 : index
    %147 = vector.load %arg20[%c1_85, %c1920_86] : memref<2x4096xf32, #tpu.memory_space<vmem>>, vector<1x128xf32>
    tpu.vector_store %arg20[%c1_85, %c1920_86], %146 {strides = array<i32>} : memref<2x4096xf32, #tpu.memory_space<vmem>>, vector<1x128xf32>,
    %148 = vector.extract_strided_slice %51 {offsets = [16, 128], sizes = [1, 128], strides = [1, 1]} : vector<32x256xf32> to vector<1x128xf32>
    %c1_87 = arith.constant 1 : index
    %c2048_88 = arith.constant 2048 : index
    %149 = vector.load %arg20[%c1_87, %c2048_88] : memref<2x4096xf32, #tpu.memory_space<vmem>>, vector<1x128xf32>
    tpu.vector_store %arg20[%c1_87, %c2048_88], %148 {strides = array<i32>} : memref<2x4096xf32, #tpu.memory_space<vmem>>, vector<1x128xf32>,
    %150 = vector.extract_strided_slice %51 {offsets = [17, 128], sizes = [1, 128], strides = [1, 1]} : vector<32x256xf32> to vector<1x128xf32>
    %c1_89 = arith.constant 1 : index
    %c2176_90 = arith.constant 2176 : index
    %151 = vector.load %arg20[%c1_89, %c2176_90] : memref<2x4096xf32, #tpu.memory_space<vmem>>, vector<1x128xf32>
    tpu.vector_store %arg20[%c1_89, %c2176_90], %150 {strides = array<i32>} : memref<2x4096xf32, #tpu.memory_space<vmem>>, vector<1x128xf32>,
    %152 = vector.extract_strided_slice %51 {offsets = [18, 128], sizes = [1, 128], strides = [1, 1]} : vector<32x256xf32> to vector<1x128xf32>
    %c1_91 = arith.constant 1 : index
    %c2304_92 = arith.constant 2304 : index
    %153 = vector.load %arg20[%c1_91, %c2304_92] : memref<2x4096xf32, #tpu.memory_space<vmem>>, vector<1x128xf32>
    tpu.vector_store %arg20[%c1_91, %c2304_92], %152 {strides = array<i32>} : memref<2x4096xf32, #tpu.memory_space<vmem>>, vector<1x128xf32>,
    %154 = vector.extract_strided_slice %51 {offsets = [19, 128], sizes = [1, 128], strides = [1, 1]} : vector<32x256xf32> to vector<1x128xf32>
    %c1_93 = arith.constant 1 : index
    %c2432_94 = arith.constant 2432 : index
    %155 = vector.load %arg20[%c1_93, %c2432_94] : memref<2x4096xf32, #tpu.memory_space<vmem>>, vector<1x128xf32>
    tpu.vector_store %arg20[%c1_93, %c2432_94], %154 {strides = array<i32>} : memref<2x4096xf32, #tpu.memory_space<vmem>>, vector<1x128xf32>,
    %156 = vector.extract_strided_slice %51 {offsets = [20, 128], sizes = [1, 128], strides = [1, 1]} : vector<32x256xf32> to vector<1x128xf32>
    %c1_95 = arith.constant 1 : index
    %c2560_96 = arith.constant 2560 : index
    %157 = vector.load %arg20[%c1_95, %c2560_96] : memref<2x4096xf32, #tpu.memory_space<vmem>>, vector<1x128xf32>
    tpu.vector_store %arg20[%c1_95, %c2560_96], %156 {strides = array<i32>} : memref<2x4096xf32, #tpu.memory_space<vmem>>, vector<1x128xf32>,
    %158 = vector.extract_strided_slice %51 {offsets = [21, 128], sizes = [1, 128], strides = [1, 1]} : vector<32x256xf32> to vector<1x128xf32>
    %c1_97 = arith.constant 1 : index
    %c2688_98 = arith.constant 2688 : index
    %159 = vector.load %arg20[%c1_97, %c2688_98] : memref<2x4096xf32, #tpu.memory_space<vmem>>, vector<1x128xf32>
    tpu.vector_store %arg20[%c1_97, %c2688_98], %158 {strides = array<i32>} : memref<2x4096xf32, #tpu.memory_space<vmem>>, vector<1x128xf32>,
    %160 = vector.extract_strided_slice %51 {offsets = [22, 128], sizes = [1, 128], strides = [1, 1]} : vector<32x256xf32> to vector<1x128xf32>
    %c1_99 = arith.constant 1 : index
    %c2816_100 = arith.constant 2816 : index
    %161 = vector.load %arg20[%c1_99, %c2816_100] : memref<2x4096xf32, #tpu.memory_space<vmem>>, vector<1x128xf32>
    tpu.vector_store %arg20[%c1_99, %c2816_100], %160 {strides = array<i32>} : memref<2x4096xf32, #tpu.memory_space<vmem>>, vector<1x128xf32>,
    %162 = vector.extract_strided_slice %51 {offsets = [23, 128], sizes = [1, 128], strides = [1, 1]} : vector<32x256xf32> to vector<1x128xf32>
    %c1_101 = arith.constant 1 : index
    %c2944_102 = arith.constant 2944 : index
    %163 = vector.load %arg20[%c1_101, %c2944_102] : memref<2x4096xf32, #tpu.memory_space<vmem>>, vector<1x128xf32>
    tpu.vector_store %arg20[%c1_101, %c2944_102], %162 {strides = array<i32>} : memref<2x4096xf32, #tpu.memory_space<vmem>>, vector<1x128xf32>,
    %164 = vector.extract_strided_slice %51 {offsets = [24, 128], sizes = [1, 128], strides = [1, 1]} : vector<32x256xf32> to vector<1x128xf32>
    %c1_103 = arith.constant 1 : index
    %c3072_104 = arith.constant 3072 : index
    %165 = vector.load %arg20[%c1_103, %c3072_104] : memref<2x4096xf32, #tpu.memory_space<vmem>>, vector<1x128xf32>
    tpu.vector_store %arg20[%c1_103, %c3072_104], %164 {strides = array<i32>} : memref<2x4096xf32, #tpu.memory_space<vmem>>, vector<1x128xf32>,
    %166 = vector.extract_strided_slice %51 {offsets = [25, 128], sizes = [1, 128], strides = [1, 1]} : vector<32x256xf32> to vector<1x128xf32>
    %c1_105 = arith.constant 1 : index
    %c3200_106 = arith.constant 3200 : index
    %167 = vector.load %arg20[%c1_105, %c3200_106] : memref<2x4096xf32, #tpu.memory_space<vmem>>, vector<1x128xf32>
    tpu.vector_store %arg20[%c1_105, %c3200_106], %166 {strides = array<i32>} : memref<2x4096xf32, #tpu.memory_space<vmem>>, vector<1x128xf32>,
    %168 = vector.extract_strided_slice %51 {offsets = [26, 128], sizes = [1, 128], strides = [1, 1]} : vector<32x256xf32> to vector<1x128xf32>
    %c1_107 = arith.constant 1 : index
    %c3328_108 = arith.constant 3328 : index
    %169 = vector.load %arg20[%c1_107, %c3328_108] : memref<2x4096xf32, #tpu.memory_space<vmem>>, vector<1x128xf32>
    tpu.vector_store %arg20[%c1_107, %c3328_108], %168 {strides = array<i32>} : memref<2x4096xf32, #tpu.memory_space<vmem>>, vector<1x128xf32>,
    %170 = vector.extract_strided_slice %51 {offsets = [27, 128], sizes = [1, 128], strides = [1, 1]} : vector<32x256xf32> to vector<1x128xf32>
    %c1_109 = arith.constant 1 : index
    %c3456_110 = arith.constant 3456 : index
    %171 = vector.load %arg20[%c1_109, %c3456_110] : memref<2x4096xf32, #tpu.memory_space<vmem>>, vector<1x128xf32>
    tpu.vector_store %arg20[%c1_109, %c3456_110], %170 {strides = array<i32>} : memref<2x4096xf32, #tpu.memory_space<vmem>>, vector<1x128xf32>,
    %172 = vector.extract_strided_slice %51 {offsets = [28, 128], sizes = [1, 128], strides = [1, 1]} : vector<32x256xf32> to vector<1x128xf32>
    %c1_111 = arith.constant 1 : index
    %c3584_112 = arith.constant 3584 : index
    %173 = vector.load %arg20[%c1_111, %c3584_112] : memref<2x4096xf32, #tpu.memory_space<vmem>>, vector<1x128xf32>
    tpu.vector_store %arg20[%c1_111, %c3584_112], %172 {strides = array<i32>} : memref<2x4096xf32, #tpu.memory_space<vmem>>, vector<1x128xf32>,
    %174 = vector.extract_strided_slice %51 {offsets = [29, 128], sizes = [1, 128], strides = [1, 1]} : vector<32x256xf32> to vector<1x128xf32>
    %c1_113 = arith.constant 1 : index
    %c3712_114 = arith.constant 3712 : index
    %175 = vector.load %arg20[%c1_113, %c3712_114] : memref<2x4096xf32, #tpu.memory_space<vmem>>, vector<1x128xf32>
    tpu.vector_store %arg20[%c1_113, %c3712_114], %174 {strides = array<i32>} : memref<2x4096xf32, #tpu.memory_space<vmem>>, vector<1x128xf32>,
    %176 = vector.extract_strided_slice %51 {offsets = [30, 128], sizes = [1, 128], strides = [1, 1]} : vector<32x256xf32> to vector<1x128xf32>
    %c1_115 = arith.constant 1 : index
    %c3840_116 = arith.constant 3840 : index
    %177 = vector.load %arg20[%c1_115, %c3840_116] : memref<2x4096xf32, #tpu.memory_space<vmem>>, vector<1x128xf32>
    tpu.vector_store %arg20[%c1_115, %c3840_116], %176 {strides = array<i32>} : memref<2x4096xf32, #tpu.memory_space<vmem>>, vector<1x128xf32>,
    %178 = vector.extract_strided_slice %51 {offsets = [31, 128], sizes = [1, 128], strides = [1, 1]} : vector<32x256xf32> to vector<1x128xf32>
    %c1_117 = arith.constant 1 : index
    %c3968_118 = arith.constant 3968 : index
    %179 = vector.load %arg20[%c1_117, %c3968_118] : memref<2x4096xf32, #tpu.memory_space<vmem>>, vector<1x128xf32>
    tpu.vector_store %arg20[%c1_117, %c3968_118], %178 {strides = array<i32>} : memref<2x4096xf32, #tpu.memory_space<vmem>>, vector<1x128xf32>,
    %c0_119 = arith.constant 0 : index
    %c0_120 = arith.constant 0 : index
    %180 = vector.load %arg20[%c0_119, %c0_120] : memref<2x4096xf32, #tpu.memory_space<vmem>>, vector<2x4096xf32>
    %181 = arith.truncf %180 : vector<2x4096xf32> to vector<2x4096xbf16>
    %c0_121 = arith.constant 0 : index
    %c0_122 = arith.constant 0 : index
    %182 = vector.load %arg5[%c0_121, %c0_122] : memref<32x4096xbf16, #tpu.memory_space<vmem>>, vector<32x4096xbf16>
    %cst_123 = arith.constant dense<0.000000e+00> : vector<2x32xf32>
    %183 = tpu.matmul %181, %182, %cst_123 {dimension_numbers = #tpu.dot_dimension_numbers<[1], [1], [0], [0], [0, 0, 1, 0], [], []>} : vector<2x4096xbf16>, vector<32x4096xbf16>, vector<2x32xf32> -> vector<2x32xf32>
    %c0_124 = arith.constant 0 : index
    %c0_125 = arith.constant 0 : index
    %184 = vector.load %arg6[%c0_124, %c0_125] : memref<1x32xf32, #tpu.memory_space<vmem>>, vector<1x32xf32>
    %185 = vector.broadcast %184 : vector<1x32xf32> to vector<2x32xf32>
    %186 = arith.addf %183, %185 : vector<2x32xf32>
    %c0_126 = arith.constant 0 : index
    %c0_127 = arith.constant 0 : index
    %187 = vector.load %arg19[%c0_126, %c0_127] : memref<2x32xf32, #tpu.memory_space<vmem>>, vector<2x32xf32>
    tpu.vector_store %arg19[%c0_126, %c0_127], %186 {strides = array<i32>} : memref<2x32xf32, #tpu.memory_space<vmem>>, vector<2x32xf32>,
    %c0_128 = arith.constant 0 : index
    %c0_129 = arith.constant 0 : index
    %188 = vector.load %arg13[%c0_128, %c0_129] : memref<32x64xf32, #tpu.memory_space<vmem>>, vector<32x64xf32>
    %cst_130 = arith.constant dense<0.000000e+00> : vector<2x64xf32>
    %189 = tpu.matmul %186, %188, %cst_130 {dimension_numbers = #tpu.dot_dimension_numbers<[1], [0], [0], [1], [0, 0, 1, 1], [], []>} : vector<2x32xf32>, vector<32x64xf32>, vector<2x64xf32> -> vector<2x64xf32>
    %c0_131 = arith.constant 0 : index
    %c0_132 = arith.constant 0 : index
    %190 = vector.load %arg14[%c0_131, %c0_132] : memref<1x64xf32, #tpu.memory_space<vmem>>, vector<1x64xf32>
    %191 = vector.broadcast %190 : vector<1x64xf32> to vector<2x64xf32>
    %192 = arith.addf %189, %191 : vector<2x64xf32>
    %cst_133 = arith.constant 0.000000e+00 : f32
    %193 = vector.broadcast %cst_133 : f32 to vector<2x64xf32>
    %194 = arith.maximumf %192, %193 : vector<2x64xf32>
    %c0_134 = arith.constant 0 : index
    %c0_135 = arith.constant 0 : index
    %195 = vector.load %arg15[%c0_134, %c0_135] : memref<64x2xf32, #tpu.memory_space<vmem>>, vector<64x2xf32>
    %cst_136 = arith.constant dense<0.000000e+00> : vector<2x2xf32>
    %196 = tpu.matmul %194, %195, %cst_136 {dimension_numbers = #tpu.dot_dimension_numbers<[1], [0], [0], [1], [0, 0, 1, 1], [], []>} : vector<2x64xf32>, vector<64x2xf32>, vector<2x2xf32> -> vector<2x2xf32>
    %c0_137 = arith.constant 0 : index
    %c0_138 = arith.constant 0 : index
    %197 = vector.load %arg16[%c0_137, %c0_138] : memref<1x2xf32, #tpu.memory_space<vmem>>, vector<1x2xf32>
    %198 = vector.broadcast %197 : vector<1x2xf32> to vector<2x2xf32>
    %199 = arith.addf %196, %198 : vector<2x2xf32>
    %c0_139 = arith.constant 0 : index
    %c0_140 = arith.constant 0 : index
    %200 = vector.load %arg17[%c0_139, %c0_140] : memref<2x2xf32, #tpu.memory_space<vmem>>, vector<2x2xf32>
    tpu.vector_store %arg17[%c0_139, %c0_140], %199 {strides = array<i32>} : memref<2x2xf32, #tpu.memory_space<vmem>>, vector<2x2xf32>,
    %201 = arith.truncf %186 : vector<2x32xf32> to vector<2x32xbf16>
    %c0_141 = arith.constant 0 : index
    %c0_142 = arith.constant 0 : index
    %202 = vector.load %arg7[%c0_141, %c0_142] : memref<32x4096xbf16, #tpu.memory_space<vmem>>, vector<32x4096xbf16>
    %cst_143 = arith.constant dense<0.000000e+00> : vector<2x4096xf32>
    %203 = tpu.matmul %201, %202, %cst_143 {dimension_numbers = #tpu.dot_dimension_numbers<[1], [0], [0], [1], [0, 0, 1, 1], [], []>} : vector<2x32xbf16>, vector<32x4096xbf16>, vector<2x4096xf32> -> vector<2x4096xf32>
    %c0_144 = arith.constant 0 : index
    %c0_145 = arith.constant 0 : index
    %204 = vector.load %arg8[%c0_144, %c0_145] : memref<1x4096xf32, #tpu.memory_space<vmem>>, vector<1x4096xf32>
    %205 = vector.broadcast %204 : vector<1x4096xf32> to vector<2x4096xf32>
    %206 = arith.addf %203, %205 : vector<2x4096xf32>
    %207 = vector.extract_strided_slice %206 {offsets = [0, 0], sizes = [1, 128], strides = [1, 1]} : vector<2x4096xf32> to vector<1x128xf32>
    %c0_146 = arith.constant 0 : index
    %c0_147 = arith.constant 0 : index
    %208 = vector.load %arg21[%c0_146, %c0_147] : memref<32x256xf32, #tpu.memory_space<vmem>>, vector<1x128xf32>
    tpu.vector_store %arg21[%c0_146, %c0_147], %207 {strides = array<i32>} : memref<32x256xf32, #tpu.memory_space<vmem>>, vector<1x128xf32>,
    %209 = vector.extract_strided_slice %206 {offsets = [0, 128], sizes = [1, 128], strides = [1, 1]} : vector<2x4096xf32> to vector<1x128xf32>
    %c1_148 = arith.constant 1 : index
    %c0_149 = arith.constant 0 : index
    %210 = vector.load %arg21[%c1_148, %c0_149] : memref<32x256xf32, #tpu.memory_space<vmem>>, vector<1x128xf32>
    tpu.vector_store %arg21[%c1_148, %c0_149], %209 {strides = array<i32>} : memref<32x256xf32, #tpu.memory_space<vmem>>, vector<1x128xf32>,
    %211 = vector.extract_strided_slice %206 {offsets = [0, 256], sizes = [1, 128], strides = [1, 1]} : vector<2x4096xf32> to vector<1x128xf32>
    %c2 = arith.constant 2 : index
    %c0_150 = arith.constant 0 : index
    %212 = vector.load %arg21[%c2, %c0_150] : memref<32x256xf32, #tpu.memory_space<vmem>>, vector<1x128xf32>
    tpu.vector_store %arg21[%c2, %c0_150], %211 {strides = array<i32>} : memref<32x256xf32, #tpu.memory_space<vmem>>, vector<1x128xf32>,
    %213 = vector.extract_strided_slice %206 {offsets = [0, 384], sizes = [1, 128], strides = [1, 1]} : vector<2x4096xf32> to vector<1x128xf32>
    %c3 = arith.constant 3 : index
    %c0_151 = arith.constant 0 : index
    %214 = vector.load %arg21[%c3, %c0_151] : memref<32x256xf32, #tpu.memory_space<vmem>>, vector<1x128xf32>
    tpu.vector_store %arg21[%c3, %c0_151], %213 {strides = array<i32>} : memref<32x256xf32, #tpu.memory_space<vmem>>, vector<1x128xf32>,
    %215 = vector.extract_strided_slice %206 {offsets = [0, 512], sizes = [1, 128], strides = [1, 1]} : vector<2x4096xf32> to vector<1x128xf32>
    %c4 = arith.constant 4 : index
    %c0_152 = arith.constant 0 : index
    %216 = vector.load %arg21[%c4, %c0_152] : memref<32x256xf32, #tpu.memory_space<vmem>>, vector<1x128xf32>
    tpu.vector_store %arg21[%c4, %c0_152], %215 {strides = array<i32>} : memref<32x256xf32, #tpu.memory_space<vmem>>, vector<1x128xf32>,
    %217 = vector.extract_strided_slice %206 {offsets = [0, 640], sizes = [1, 128], strides = [1, 1]} : vector<2x4096xf32> to vector<1x128xf32>
    %c5 = arith.constant 5 : index
    %c0_153 = arith.constant 0 : index
    %218 = vector.load %arg21[%c5, %c0_153] : memref<32x256xf32, #tpu.memory_space<vmem>>, vector<1x128xf32>
    tpu.vector_store %arg21[%c5, %c0_153], %217 {strides = array<i32>} : memref<32x256xf32, #tpu.memory_space<vmem>>, vector<1x128xf32>,
    %219 = vector.extract_strided_slice %206 {offsets = [0, 768], sizes = [1, 128], strides = [1, 1]} : vector<2x4096xf32> to vector<1x128xf32>
    %c6 = arith.constant 6 : index
    %c0_154 = arith.constant 0 : index
    %220 = vector.load %arg21[%c6, %c0_154] : memref<32x256xf32, #tpu.memory_space<vmem>>, vector<1x128xf32>
    tpu.vector_store %arg21[%c6, %c0_154], %219 {strides = array<i32>} : memref<32x256xf32, #tpu.memory_space<vmem>>, vector<1x128xf32>,
    %221 = vector.extract_strided_slice %206 {offsets = [0, 896], sizes = [1, 128], strides = [1, 1]} : vector<2x4096xf32> to vector<1x128xf32>
    %c7 = arith.constant 7 : index
    %c0_155 = arith.constant 0 : index
    %222 = vector.load %arg21[%c7, %c0_155] : memref<32x256xf32, #tpu.memory_space<vmem>>, vector<1x128xf32>
    tpu.vector_store %arg21[%c7, %c0_155], %221 {strides = array<i32>} : memref<32x256xf32, #tpu.memory_space<vmem>>, vector<1x128xf32>,
    %223 = vector.extract_strided_slice %206 {offsets = [0, 1024], sizes = [1, 128], strides = [1, 1]} : vector<2x4096xf32> to vector<1x128xf32>
    %c8 = arith.constant 8 : index
    %c0_156 = arith.constant 0 : index
    %224 = vector.load %arg21[%c8, %c0_156] : memref<32x256xf32, #tpu.memory_space<vmem>>, vector<1x128xf32>
    tpu.vector_store %arg21[%c8, %c0_156], %223 {strides = array<i32>} : memref<32x256xf32, #tpu.memory_space<vmem>>, vector<1x128xf32>,
    %225 = vector.extract_strided_slice %206 {offsets = [0, 1152], sizes = [1, 128], strides = [1, 1]} : vector<2x4096xf32> to vector<1x128xf32>
    %c9 = arith.constant 9 : index
    %c0_157 = arith.constant 0 : index
    %226 = vector.load %arg21[%c9, %c0_157] : memref<32x256xf32, #tpu.memory_space<vmem>>, vector<1x128xf32>
    tpu.vector_store %arg21[%c9, %c0_157], %225 {strides = array<i32>} : memref<32x256xf32, #tpu.memory_space<vmem>>, vector<1x128xf32>,
    %227 = vector.extract_strided_slice %206 {offsets = [0, 1280], sizes = [1, 128], strides = [1, 1]} : vector<2x4096xf32> to vector<1x128xf32>
    %c10 = arith.constant 10 : index
    %c0_158 = arith.constant 0 : index
    %228 = vector.load %arg21[%c10, %c0_158] : memref<32x256xf32, #tpu.memory_space<vmem>>, vector<1x128xf32>
    tpu.vector_store %arg21[%c10, %c0_158], %227 {strides = array<i32>} : memref<32x256xf32, #tpu.memory_space<vmem>>, vector<1x128xf32>,
    %229 = vector.extract_strided_slice %206 {offsets = [0, 1408], sizes = [1, 128], strides = [1, 1]} : vector<2x4096xf32> to vector<1x128xf32>
    %c11 = arith.constant 11 : index
    %c0_159 = arith.constant 0 : index
    %230 = vector.load %arg21[%c11, %c0_159] : memref<32x256xf32, #tpu.memory_space<vmem>>, vector<1x128xf32>
    tpu.vector_store %arg21[%c11, %c0_159], %229 {strides = array<i32>} : memref<32x256xf32, #tpu.memory_space<vmem>>, vector<1x128xf32>,
    %231 = vector.extract_strided_slice %206 {offsets = [0, 1536], sizes = [1, 128], strides = [1, 1]} : vector<2x4096xf32> to vector<1x128xf32>
    %c12 = arith.constant 12 : index
    %c0_160 = arith.constant 0 : index
    %232 = vector.load %arg21[%c12, %c0_160] : memref<32x256xf32, #tpu.memory_space<vmem>>, vector<1x128xf32>
    tpu.vector_store %arg21[%c12, %c0_160], %231 {strides = array<i32>} : memref<32x256xf32, #tpu.memory_space<vmem>>, vector<1x128xf32>,
    %233 = vector.extract_strided_slice %206 {offsets = [0, 1664], sizes = [1, 128], strides = [1, 1]} : vector<2x4096xf32> to vector<1x128xf32>
    %c13 = arith.constant 13 : index
    %c0_161 = arith.constant 0 : index
    %234 = vector.load %arg21[%c13, %c0_161] : memref<32x256xf32, #tpu.memory_space<vmem>>, vector<1x128xf32>
    tpu.vector_store %arg21[%c13, %c0_161], %233 {strides = array<i32>} : memref<32x256xf32, #tpu.memory_space<vmem>>, vector<1x128xf32>,
    %235 = vector.extract_strided_slice %206 {offsets = [0, 1792], sizes = [1, 128], strides = [1, 1]} : vector<2x4096xf32> to vector<1x128xf32>
    %c14 = arith.constant 14 : index
    %c0_162 = arith.constant 0 : index
    %236 = vector.load %arg21[%c14, %c0_162] : memref<32x256xf32, #tpu.memory_space<vmem>>, vector<1x128xf32>
    tpu.vector_store %arg21[%c14, %c0_162], %235 {strides = array<i32>} : memref<32x256xf32, #tpu.memory_space<vmem>>, vector<1x128xf32>,
    %237 = vector.extract_strided_slice %206 {offsets = [0, 1920], sizes = [1, 128], strides = [1, 1]} : vector<2x4096xf32> to vector<1x128xf32>
    %c15 = arith.constant 15 : index
    %c0_163 = arith.constant 0 : index
    %238 = vector.load %arg21[%c15, %c0_163] : memref<32x256xf32, #tpu.memory_space<vmem>>, vector<1x128xf32>
    tpu.vector_store %arg21[%c15, %c0_163], %237 {strides = array<i32>} : memref<32x256xf32, #tpu.memory_space<vmem>>, vector<1x128xf32>,
    %239 = vector.extract_strided_slice %206 {offsets = [0, 2048], sizes = [1, 128], strides = [1, 1]} : vector<2x4096xf32> to vector<1x128xf32>
    %c16 = arith.constant 16 : index
    %c0_164 = arith.constant 0 : index
    %240 = vector.load %arg21[%c16, %c0_164] : memref<32x256xf32, #tpu.memory_space<vmem>>, vector<1x128xf32>
    tpu.vector_store %arg21[%c16, %c0_164], %239 {strides = array<i32>} : memref<32x256xf32, #tpu.memory_space<vmem>>, vector<1x128xf32>,
    %241 = vector.extract_strided_slice %206 {offsets = [0, 2176], sizes = [1, 128], strides = [1, 1]} : vector<2x4096xf32> to vector<1x128xf32>
    %c17 = arith.constant 17 : index
    %c0_165 = arith.constant 0 : index
    %242 = vector.load %arg21[%c17, %c0_165] : memref<32x256xf32, #tpu.memory_space<vmem>>, vector<1x128xf32>
    tpu.vector_store %arg21[%c17, %c0_165], %241 {strides = array<i32>} : memref<32x256xf32, #tpu.memory_space<vmem>>, vector<1x128xf32>,
    %243 = vector.extract_strided_slice %206 {offsets = [0, 2304], sizes = [1, 128], strides = [1, 1]} : vector<2x4096xf32> to vector<1x128xf32>
    %c18 = arith.constant 18 : index
    %c0_166 = arith.constant 0 : index
    %244 = vector.load %arg21[%c18, %c0_166] : memref<32x256xf32, #tpu.memory_space<vmem>>, vector<1x128xf32>
    tpu.vector_store %arg21[%c18, %c0_166], %243 {strides = array<i32>} : memref<32x256xf32, #tpu.memory_space<vmem>>, vector<1x128xf32>,
    %245 = vector.extract_strided_slice %206 {offsets = [0, 2432], sizes = [1, 128], strides = [1, 1]} : vector<2x4096xf32> to vector<1x128xf32>
    %c19 = arith.constant 19 : index
    %c0_167 = arith.constant 0 : index
    %246 = vector.load %arg21[%c19, %c0_167] : memref<32x256xf32, #tpu.memory_space<vmem>>, vector<1x128xf32>
    tpu.vector_store %arg21[%c19, %c0_167], %245 {strides = array<i32>} : memref<32x256xf32, #tpu.memory_space<vmem>>, vector<1x128xf32>,
    %247 = vector.extract_strided_slice %206 {offsets = [0, 2560], sizes = [1, 128], strides = [1, 1]} : vector<2x4096xf32> to vector<1x128xf32>
    %c20 = arith.constant 20 : index
    %c0_168 = arith.constant 0 : index
    %248 = vector.load %arg21[%c20, %c0_168] : memref<32x256xf32, #tpu.memory_space<vmem>>, vector<1x128xf32>
    tpu.vector_store %arg21[%c20, %c0_168], %247 {strides = array<i32>} : memref<32x256xf32, #tpu.memory_space<vmem>>, vector<1x128xf32>,
    %249 = vector.extract_strided_slice %206 {offsets = [0, 2688], sizes = [1, 128], strides = [1, 1]} : vector<2x4096xf32> to vector<1x128xf32>
    %c21 = arith.constant 21 : index
    %c0_169 = arith.constant 0 : index
    %250 = vector.load %arg21[%c21, %c0_169] : memref<32x256xf32, #tpu.memory_space<vmem>>, vector<1x128xf32>
    tpu.vector_store %arg21[%c21, %c0_169], %249 {strides = array<i32>} : memref<32x256xf32, #tpu.memory_space<vmem>>, vector<1x128xf32>,
    %251 = vector.extract_strided_slice %206 {offsets = [0, 2816], sizes = [1, 128], strides = [1, 1]} : vector<2x4096xf32> to vector<1x128xf32>
    %c22 = arith.constant 22 : index
    %c0_170 = arith.constant 0 : index
    %252 = vector.load %arg21[%c22, %c0_170] : memref<32x256xf32, #tpu.memory_space<vmem>>, vector<1x128xf32>
    tpu.vector_store %arg21[%c22, %c0_170], %251 {strides = array<i32>} : memref<32x256xf32, #tpu.memory_space<vmem>>, vector<1x128xf32>,
    %253 = vector.extract_strided_slice %206 {offsets = [0, 2944], sizes = [1, 128], strides = [1, 1]} : vector<2x4096xf32> to vector<1x128xf32>
    %c23 = arith.constant 23 : index
    %c0_171 = arith.constant 0 : index
    %254 = vector.load %arg21[%c23, %c0_171] : memref<32x256xf32, #tpu.memory_space<vmem>>, vector<1x128xf32>
    tpu.vector_store %arg21[%c23, %c0_171], %253 {strides = array<i32>} : memref<32x256xf32, #tpu.memory_space<vmem>>, vector<1x128xf32>,
    %255 = vector.extract_strided_slice %206 {offsets = [0, 3072], sizes = [1, 128], strides = [1, 1]} : vector<2x4096xf32> to vector<1x128xf32>
    %c24 = arith.constant 24 : index
    %c0_172 = arith.constant 0 : index
    %256 = vector.load %arg21[%c24, %c0_172] : memref<32x256xf32, #tpu.memory_space<vmem>>, vector<1x128xf32>
    tpu.vector_store %arg21[%c24, %c0_172], %255 {strides = array<i32>} : memref<32x256xf32, #tpu.memory_space<vmem>>, vector<1x128xf32>,
    %257 = vector.extract_strided_slice %206 {offsets = [0, 3200], sizes = [1, 128], strides = [1, 1]} : vector<2x4096xf32> to vector<1x128xf32>
    %c25 = arith.constant 25 : index
    %c0_173 = arith.constant 0 : index
    %258 = vector.load %arg21[%c25, %c0_173] : memref<32x256xf32, #tpu.memory_space<vmem>>, vector<1x128xf32>
    tpu.vector_store %arg21[%c25, %c0_173], %257 {strides = array<i32>} : memref<32x256xf32, #tpu.memory_space<vmem>>, vector<1x128xf32>,
    %259 = vector.extract_strided_slice %206 {offsets = [0, 3328], sizes = [1, 128], strides = [1, 1]} : vector<2x4096xf32> to vector<1x128xf32>
    %c26 = arith.constant 26 : index
    %c0_174 = arith.constant 0 : index
    %260 = vector.load %arg21[%c26, %c0_174] : memref<32x256xf32, #tpu.memory_space<vmem>>, vector<1x128xf32>
    tpu.vector_store %arg21[%c26, %c0_174], %259 {strides = array<i32>} : memref<32x256xf32, #tpu.memory_space<vmem>>, vector<1x128xf32>,
    %261 = vector.extract_strided_slice %206 {offsets = [0, 3456], sizes = [1, 128], strides = [1, 1]} : vector<2x4096xf32> to vector<1x128xf32>
    %c27 = arith.constant 27 : index
    %c0_175 = arith.constant 0 : index
    %262 = vector.load %arg21[%c27, %c0_175] : memref<32x256xf32, #tpu.memory_space<vmem>>, vector<1x128xf32>
    tpu.vector_store %arg21[%c27, %c0_175], %261 {strides = array<i32>} : memref<32x256xf32, #tpu.memory_space<vmem>>, vector<1x128xf32>,
    %263 = vector.extract_strided_slice %206 {offsets = [0, 3584], sizes = [1, 128], strides = [1, 1]} : vector<2x4096xf32> to vector<1x128xf32>
    %c28 = arith.constant 28 : index
    %c0_176 = arith.constant 0 : index
    %264 = vector.load %arg21[%c28, %c0_176] : memref<32x256xf32, #tpu.memory_space<vmem>>, vector<1x128xf32>
    tpu.vector_store %arg21[%c28, %c0_176], %263 {strides = array<i32>} : memref<32x256xf32, #tpu.memory_space<vmem>>, vector<1x128xf32>,
    %265 = vector.extract_strided_slice %206 {offsets = [0, 3712], sizes = [1, 128], strides = [1, 1]} : vector<2x4096xf32> to vector<1x128xf32>
    %c29 = arith.constant 29 : index
    %c0_177 = arith.constant 0 : index
    %266 = vector.load %arg21[%c29, %c0_177] : memref<32x256xf32, #tpu.memory_space<vmem>>, vector<1x128xf32>
    tpu.vector_store %arg21[%c29, %c0_177], %265 {strides = array<i32>} : memref<32x256xf32, #tpu.memory_space<vmem>>, vector<1x128xf32>,
    %267 = vector.extract_strided_slice %206 {offsets = [0, 3840], sizes = [1, 128], strides = [1, 1]} : vector<2x4096xf32> to vector<1x128xf32>
    %c30 = arith.constant 30 : index
    %c0_178 = arith.constant 0 : index
    %268 = vector.load %arg21[%c30, %c0_178] : memref<32x256xf32, #tpu.memory_space<vmem>>, vector<1x128xf32>
    tpu.vector_store %arg21[%c30, %c0_178], %267 {strides = array<i32>} : memref<32x256xf32, #tpu.memory_space<vmem>>, vector<1x128xf32>,
    %269 = vector.extract_strided_slice %206 {offsets = [0, 3968], sizes = [1, 128], strides = [1, 1]} : vector<2x4096xf32> to vector<1x128xf32>
    %c31 = arith.constant 31 : index
    %c0_179 = arith.constant 0 : index
    %270 = vector.load %arg21[%c31, %c0_179] : memref<32x256xf32, #tpu.memory_space<vmem>>, vector<1x128xf32>
    tpu.vector_store %arg21[%c31, %c0_179], %269 {strides = array<i32>} : memref<32x256xf32, #tpu.memory_space<vmem>>, vector<1x128xf32>,
    %271 = vector.extract_strided_slice %206 {offsets = [1, 0], sizes = [1, 128], strides = [1, 1]} : vector<2x4096xf32> to vector<1x128xf32>
    %c0_180 = arith.constant 0 : index
    %c128_181 = arith.constant 128 : index
    %272 = vector.load %arg21[%c0_180, %c128_181] : memref<32x256xf32, #tpu.memory_space<vmem>>, vector<1x128xf32>
    tpu.vector_store %arg21[%c0_180, %c128_181], %271 {strides = array<i32>} : memref<32x256xf32, #tpu.memory_space<vmem>>, vector<1x128xf32>,
    %273 = vector.extract_strided_slice %206 {offsets = [1, 128], sizes = [1, 128], strides = [1, 1]} : vector<2x4096xf32> to vector<1x128xf32>
    %c1_182 = arith.constant 1 : index
    %c128_183 = arith.constant 128 : index
    %274 = vector.load %arg21[%c1_182, %c128_183] : memref<32x256xf32, #tpu.memory_space<vmem>>, vector<1x128xf32>
    tpu.vector_store %arg21[%c1_182, %c128_183], %273 {strides = array<i32>} : memref<32x256xf32, #tpu.memory_space<vmem>>, vector<1x128xf32>,
    %275 = vector.extract_strided_slice %206 {offsets = [1, 256], sizes = [1, 128], strides = [1, 1]} : vector<2x4096xf32> to vector<1x128xf32>
    %c2_184 = arith.constant 2 : index
    %c128_185 = arith.constant 128 : index
    %276 = vector.load %arg21[%c2_184, %c128_185] : memref<32x256xf32, #tpu.memory_space<vmem>>, vector<1x128xf32>
    tpu.vector_store %arg21[%c2_184, %c128_185], %275 {strides = array<i32>} : memref<32x256xf32, #tpu.memory_space<vmem>>, vector<1x128xf32>,
    %277 = vector.extract_strided_slice %206 {offsets = [1, 384], sizes = [1, 128], strides = [1, 1]} : vector<2x4096xf32> to vector<1x128xf32>
    %c3_186 = arith.constant 3 : index
    %c128_187 = arith.constant 128 : index
    %278 = vector.load %arg21[%c3_186, %c128_187] : memref<32x256xf32, #tpu.memory_space<vmem>>, vector<1x128xf32>
    tpu.vector_store %arg21[%c3_186, %c128_187], %277 {strides = array<i32>} : memref<32x256xf32, #tpu.memory_space<vmem>>, vector<1x128xf32>,
    %279 = vector.extract_strided_slice %206 {offsets = [1, 512], sizes = [1, 128], strides = [1, 1]} : vector<2x4096xf32> to vector<1x128xf32>
    %c4_188 = arith.constant 4 : index
    %c128_189 = arith.constant 128 : index
    %280 = vector.load %arg21[%c4_188, %c128_189] : memref<32x256xf32, #tpu.memory_space<vmem>>, vector<1x128xf32>
    tpu.vector_store %arg21[%c4_188, %c128_189], %279 {strides = array<i32>} : memref<32x256xf32, #tpu.memory_space<vmem>>, vector<1x128xf32>,
    %281 = vector.extract_strided_slice %206 {offsets = [1, 640], sizes = [1, 128], strides = [1, 1]} : vector<2x4096xf32> to vector<1x128xf32>
    %c5_190 = arith.constant 5 : index
    %c128_191 = arith.constant 128 : index
    %282 = vector.load %arg21[%c5_190, %c128_191] : memref<32x256xf32, #tpu.memory_space<vmem>>, vector<1x128xf32>
    tpu.vector_store %arg21[%c5_190, %c128_191], %281 {strides = array<i32>} : memref<32x256xf32, #tpu.memory_space<vmem>>, vector<1x128xf32>,
    %283 = vector.extract_strided_slice %206 {offsets = [1, 768], sizes = [1, 128], strides = [1, 1]} : vector<2x4096xf32> to vector<1x128xf32>
    %c6_192 = arith.constant 6 : index
    %c128_193 = arith.constant 128 : index
    %284 = vector.load %arg21[%c6_192, %c128_193] : memref<32x256xf32, #tpu.memory_space<vmem>>, vector<1x128xf32>
    tpu.vector_store %arg21[%c6_192, %c128_193], %283 {strides = array<i32>} : memref<32x256xf32, #tpu.memory_space<vmem>>, vector<1x128xf32>,
    %285 = vector.extract_strided_slice %206 {offsets = [1, 896], sizes = [1, 128], strides = [1, 1]} : vector<2x4096xf32> to vector<1x128xf32>
    %c7_194 = arith.constant 7 : index
    %c128_195 = arith.constant 128 : index
    %286 = vector.load %arg21[%c7_194, %c128_195] : memref<32x256xf32, #tpu.memory_space<vmem>>, vector<1x128xf32>
    tpu.vector_store %arg21[%c7_194, %c128_195], %285 {strides = array<i32>} : memref<32x256xf32, #tpu.memory_space<vmem>>, vector<1x128xf32>,
    %287 = vector.extract_strided_slice %206 {offsets = [1, 1024], sizes = [1, 128], strides = [1, 1]} : vector<2x4096xf32> to vector<1x128xf32>
    %c8_196 = arith.constant 8 : index
    %c128_197 = arith.constant 128 : index
    %288 = vector.load %arg21[%c8_196, %c128_197] : memref<32x256xf32, #tpu.memory_space<vmem>>, vector<1x128xf32>
    tpu.vector_store %arg21[%c8_196, %c128_197], %287 {strides = array<i32>} : memref<32x256xf32, #tpu.memory_space<vmem>>, vector<1x128xf32>,
    %289 = vector.extract_strided_slice %206 {offsets = [1, 1152], sizes = [1, 128], strides = [1, 1]} : vector<2x4096xf32> to vector<1x128xf32>
    %c9_198 = arith.constant 9 : index
    %c128_199 = arith.constant 128 : index
    %290 = vector.load %arg21[%c9_198, %c128_199] : memref<32x256xf32, #tpu.memory_space<vmem>>, vector<1x128xf32>
    tpu.vector_store %arg21[%c9_198, %c128_199], %289 {strides = array<i32>} : memref<32x256xf32, #tpu.memory_space<vmem>>, vector<1x128xf32>,
    %291 = vector.extract_strided_slice %206 {offsets = [1, 1280], sizes = [1, 128], strides = [1, 1]} : vector<2x4096xf32> to vector<1x128xf32>
    %c10_200 = arith.constant 10 : index
    %c128_201 = arith.constant 128 : index
    %292 = vector.load %arg21[%c10_200, %c128_201] : memref<32x256xf32, #tpu.memory_space<vmem>>, vector<1x128xf32>
    tpu.vector_store %arg21[%c10_200, %c128_201], %291 {strides = array<i32>} : memref<32x256xf32, #tpu.memory_space<vmem>>, vector<1x128xf32>,
    %293 = vector.extract_strided_slice %206 {offsets = [1, 1408], sizes = [1, 128], strides = [1, 1]} : vector<2x4096xf32> to vector<1x128xf32>
    %c11_202 = arith.constant 11 : index
    %c128_203 = arith.constant 128 : index
    %294 = vector.load %arg21[%c11_202, %c128_203] : memref<32x256xf32, #tpu.memory_space<vmem>>, vector<1x128xf32>
    tpu.vector_store %arg21[%c11_202, %c128_203], %293 {strides = array<i32>} : memref<32x256xf32, #tpu.memory_space<vmem>>, vector<1x128xf32>,
    %295 = vector.extract_strided_slice %206 {offsets = [1, 1536], sizes = [1, 128], strides = [1, 1]} : vector<2x4096xf32> to vector<1x128xf32>
    %c12_204 = arith.constant 12 : index
    %c128_205 = arith.constant 128 : index
    %296 = vector.load %arg21[%c12_204, %c128_205] : memref<32x256xf32, #tpu.memory_space<vmem>>, vector<1x128xf32>
    tpu.vector_store %arg21[%c12_204, %c128_205], %295 {strides = array<i32>} : memref<32x256xf32, #tpu.memory_space<vmem>>, vector<1x128xf32>,
    %297 = vector.extract_strided_slice %206 {offsets = [1, 1664], sizes = [1, 128], strides = [1, 1]} : vector<2x4096xf32> to vector<1x128xf32>
    %c13_206 = arith.constant 13 : index
    %c128_207 = arith.constant 128 : index
    %298 = vector.load %arg21[%c13_206, %c128_207] : memref<32x256xf32, #tpu.memory_space<vmem>>, vector<1x128xf32>
    tpu.vector_store %arg21[%c13_206, %c128_207], %297 {strides = array<i32>} : memref<32x256xf32, #tpu.memory_space<vmem>>, vector<1x128xf32>,
    %299 = vector.extract_strided_slice %206 {offsets = [1, 1792], sizes = [1, 128], strides = [1, 1]} : vector<2x4096xf32> to vector<1x128xf32>
    %c14_208 = arith.constant 14 : index
    %c128_209 = arith.constant 128 : index
    %300 = vector.load %arg21[%c14_208, %c128_209] : memref<32x256xf32, #tpu.memory_space<vmem>>, vector<1x128xf32>
    tpu.vector_store %arg21[%c14_208, %c128_209], %299 {strides = array<i32>} : memref<32x256xf32, #tpu.memory_space<vmem>>, vector<1x128xf32>,
    %301 = vector.extract_strided_slice %206 {offsets = [1, 1920], sizes = [1, 128], strides = [1, 1]} : vector<2x4096xf32> to vector<1x128xf32>
    %c15_210 = arith.constant 15 : index
    %c128_211 = arith.constant 128 : index
    %302 = vector.load %arg21[%c15_210, %c128_211] : memref<32x256xf32, #tpu.memory_space<vmem>>, vector<1x128xf32>
    tpu.vector_store %arg21[%c15_210, %c128_211], %301 {strides = array<i32>} : memref<32x256xf32, #tpu.memory_space<vmem>>, vector<1x128xf32>,
    %303 = vector.extract_strided_slice %206 {offsets = [1, 2048], sizes = [1, 128], strides = [1, 1]} : vector<2x4096xf32> to vector<1x128xf32>
    %c16_212 = arith.constant 16 : index
    %c128_213 = arith.constant 128 : index
    %304 = vector.load %arg21[%c16_212, %c128_213] : memref<32x256xf32, #tpu.memory_space<vmem>>, vector<1x128xf32>
    tpu.vector_store %arg21[%c16_212, %c128_213], %303 {strides = array<i32>} : memref<32x256xf32, #tpu.memory_space<vmem>>, vector<1x128xf32>,
    %305 = vector.extract_strided_slice %206 {offsets = [1, 2176], sizes = [1, 128], strides = [1, 1]} : vector<2x4096xf32> to vector<1x128xf32>
    %c17_214 = arith.constant 17 : index
    %c128_215 = arith.constant 128 : index
    %306 = vector.load %arg21[%c17_214, %c128_215] : memref<32x256xf32, #tpu.memory_space<vmem>>, vector<1x128xf32>
    tpu.vector_store %arg21[%c17_214, %c128_215], %305 {strides = array<i32>} : memref<32x256xf32, #tpu.memory_space<vmem>>, vector<1x128xf32>,
    %307 = vector.extract_strided_slice %206 {offsets = [1, 2304], sizes = [1, 128], strides = [1, 1]} : vector<2x4096xf32> to vector<1x128xf32>
    %c18_216 = arith.constant 18 : index
    %c128_217 = arith.constant 128 : index
    %308 = vector.load %arg21[%c18_216, %c128_217] : memref<32x256xf32, #tpu.memory_space<vmem>>, vector<1x128xf32>
    tpu.vector_store %arg21[%c18_216, %c128_217], %307 {strides = array<i32>} : memref<32x256xf32, #tpu.memory_space<vmem>>, vector<1x128xf32>,
    %309 = vector.extract_strided_slice %206 {offsets = [1, 2432], sizes = [1, 128], strides = [1, 1]} : vector<2x4096xf32> to vector<1x128xf32>
    %c19_218 = arith.constant 19 : index
    %c128_219 = arith.constant 128 : index
    %310 = vector.load %arg21[%c19_218, %c128_219] : memref<32x256xf32, #tpu.memory_space<vmem>>, vector<1x128xf32>
    tpu.vector_store %arg21[%c19_218, %c128_219], %309 {strides = array<i32>} : memref<32x256xf32, #tpu.memory_space<vmem>>, vector<1x128xf32>,
    %311 = vector.extract_strided_slice %206 {offsets = [1, 2560], sizes = [1, 128], strides = [1, 1]} : vector<2x4096xf32> to vector<1x128xf32>
    %c20_220 = arith.constant 20 : index
    %c128_221 = arith.constant 128 : index
    %312 = vector.load %arg21[%c20_220, %c128_221] : memref<32x256xf32, #tpu.memory_space<vmem>>, vector<1x128xf32>
    tpu.vector_store %arg21[%c20_220, %c128_221], %311 {strides = array<i32>} : memref<32x256xf32, #tpu.memory_space<vmem>>, vector<1x128xf32>,
    %313 = vector.extract_strided_slice %206 {offsets = [1, 2688], sizes = [1, 128], strides = [1, 1]} : vector<2x4096xf32> to vector<1x128xf32>
    %c21_222 = arith.constant 21 : index
    %c128_223 = arith.constant 128 : index
    %314 = vector.load %arg21[%c21_222, %c128_223] : memref<32x256xf32, #tpu.memory_space<vmem>>, vector<1x128xf32>
    tpu.vector_store %arg21[%c21_222, %c128_223], %313 {strides = array<i32>} : memref<32x256xf32, #tpu.memory_space<vmem>>, vector<1x128xf32>,
    %315 = vector.extract_strided_slice %206 {offsets = [1, 2816], sizes = [1, 128], strides = [1, 1]} : vector<2x4096xf32> to vector<1x128xf32>
    %c22_224 = arith.constant 22 : index
    %c128_225 = arith.constant 128 : index
    %316 = vector.load %arg21[%c22_224, %c128_225] : memref<32x256xf32, #tpu.memory_space<vmem>>, vector<1x128xf32>
    tpu.vector_store %arg21[%c22_224, %c128_225], %315 {strides = array<i32>} : memref<32x256xf32, #tpu.memory_space<vmem>>, vector<1x128xf32>,
    %317 = vector.extract_strided_slice %206 {offsets = [1, 2944], sizes = [1, 128], strides = [1, 1]} : vector<2x4096xf32> to vector<1x128xf32>
    %c23_226 = arith.constant 23 : index
    %c128_227 = arith.constant 128 : index
    %318 = vector.load %arg21[%c23_226, %c128_227] : memref<32x256xf32, #tpu.memory_space<vmem>>, vector<1x128xf32>
    tpu.vector_store %arg21[%c23_226, %c128_227], %317 {strides = array<i32>} : memref<32x256xf32, #tpu.memory_space<vmem>>, vector<1x128xf32>,
    %319 = vector.extract_strided_slice %206 {offsets = [1, 3072], sizes = [1, 128], strides = [1, 1]} : vector<2x4096xf32> to vector<1x128xf32>
    %c24_228 = arith.constant 24 : index
    %c128_229 = arith.constant 128 : index
    %320 = vector.load %arg21[%c24_228, %c128_229] : memref<32x256xf32, #tpu.memory_space<vmem>>, vector<1x128xf32>
    tpu.vector_store %arg21[%c24_228, %c128_229], %319 {strides = array<i32>} : memref<32x256xf32, #tpu.memory_space<vmem>>, vector<1x128xf32>,
    %321 = vector.extract_strided_slice %206 {offsets = [1, 3200], sizes = [1, 128], strides = [1, 1]} : vector<2x4096xf32> to vector<1x128xf32>
    %c25_230 = arith.constant 25 : index
    %c128_231 = arith.constant 128 : index
    %322 = vector.load %arg21[%c25_230, %c128_231] : memref<32x256xf32, #tpu.memory_space<vmem>>, vector<1x128xf32>
    tpu.vector_store %arg21[%c25_230, %c128_231], %321 {strides = array<i32>} : memref<32x256xf32, #tpu.memory_space<vmem>>, vector<1x128xf32>,
    %323 = vector.extract_strided_slice %206 {offsets = [1, 3328], sizes = [1, 128], strides = [1, 1]} : vector<2x4096xf32> to vector<1x128xf32>
    %c26_232 = arith.constant 26 : index
    %c128_233 = arith.constant 128 : index
    %324 = vector.load %arg21[%c26_232, %c128_233] : memref<32x256xf32, #tpu.memory_space<vmem>>, vector<1x128xf32>
    tpu.vector_store %arg21[%c26_232, %c128_233], %323 {strides = array<i32>} : memref<32x256xf32, #tpu.memory_space<vmem>>, vector<1x128xf32>,
    %325 = vector.extract_strided_slice %206 {offsets = [1, 3456], sizes = [1, 128], strides = [1, 1]} : vector<2x4096xf32> to vector<1x128xf32>
    %c27_234 = arith.constant 27 : index
    %c128_235 = arith.constant 128 : index
    %326 = vector.load %arg21[%c27_234, %c128_235] : memref<32x256xf32, #tpu.memory_space<vmem>>, vector<1x128xf32>
    tpu.vector_store %arg21[%c27_234, %c128_235], %325 {strides = array<i32>} : memref<32x256xf32, #tpu.memory_space<vmem>>, vector<1x128xf32>,
    %327 = vector.extract_strided_slice %206 {offsets = [1, 3584], sizes = [1, 128], strides = [1, 1]} : vector<2x4096xf32> to vector<1x128xf32>
    %c28_236 = arith.constant 28 : index
    %c128_237 = arith.constant 128 : index
    %328 = vector.load %arg21[%c28_236, %c128_237] : memref<32x256xf32, #tpu.memory_space<vmem>>, vector<1x128xf32>
    tpu.vector_store %arg21[%c28_236, %c128_237], %327 {strides = array<i32>} : memref<32x256xf32, #tpu.memory_space<vmem>>, vector<1x128xf32>,
    %329 = vector.extract_strided_slice %206 {offsets = [1, 3712], sizes = [1, 128], strides = [1, 1]} : vector<2x4096xf32> to vector<1x128xf32>
    %c29_238 = arith.constant 29 : index
    %c128_239 = arith.constant 128 : index
    %330 = vector.load %arg21[%c29_238, %c128_239] : memref<32x256xf32, #tpu.memory_space<vmem>>, vector<1x128xf32>
    tpu.vector_store %arg21[%c29_238, %c128_239], %329 {strides = array<i32>} : memref<32x256xf32, #tpu.memory_space<vmem>>, vector<1x128xf32>,
    %331 = vector.extract_strided_slice %206 {offsets = [1, 3840], sizes = [1, 128], strides = [1, 1]} : vector<2x4096xf32> to vector<1x128xf32>
    %c30_240 = arith.constant 30 : index
    %c128_241 = arith.constant 128 : index
    %332 = vector.load %arg21[%c30_240, %c128_241] : memref<32x256xf32, #tpu.memory_space<vmem>>, vector<1x128xf32>
    tpu.vector_store %arg21[%c30_240, %c128_241], %331 {strides = array<i32>} : memref<32x256xf32, #tpu.memory_space<vmem>>, vector<1x128xf32>,
    %333 = vector.extract_strided_slice %206 {offsets = [1, 3968], sizes = [1, 128], strides = [1, 1]} : vector<2x4096xf32> to vector<1x128xf32>
    %c31_242 = arith.constant 31 : index
    %c128_243 = arith.constant 128 : index
    %334 = vector.load %arg21[%c31_242, %c128_243] : memref<32x256xf32, #tpu.memory_space<vmem>>, vector<1x128xf32>
    tpu.vector_store %arg21[%c31_242, %c128_243], %333 {strides = array<i32>} : memref<32x256xf32, #tpu.memory_space<vmem>>, vector<1x128xf32>,
    %c0_244 = arith.constant 0 : index
    %c0_245 = arith.constant 0 : index
    %335 = vector.load %arg21[%c0_244, %c0_245] : memref<32x256xf32, #tpu.memory_space<vmem>>, vector<32x256xf32>
    %c1_i32_246 = arith.constant 1 : i32
    %336 = tpu.dynamic_rotate %335 by %c1_i32_246 dim 1 : vector<32x256xf32>, i32 -> vector<32x256xf32>
    %cst_247 = arith.constant 0.000000e+00 : f32
    %337 = vector.shape_cast %12 : vector<1x256xi1> to vector<1x256xi1>
    %338 = vector.broadcast %337 : vector<1x256xi1> to vector<32x256xi1>
    %339 = vector.broadcast %cst_247 : f32 to vector<32x256xf32>
    %340 = arith.select %338, %339, %336 : vector<32x256xi1>, vector<32x256xf32>
    %c255_i32_248 = arith.constant 255 : i32
    %341 = tpu.dynamic_rotate %335 by %c255_i32_248 dim 1 : vector<32x256xf32>, i32 -> vector<32x256xf32>
    %cst_249 = arith.constant 0.000000e+00 : f32
    %342 = vector.shape_cast %15 : vector<1x256xi1> to vector<1x256xi1>
    %343 = vector.broadcast %342 : vector<1x256xi1> to vector<32x256xi1>
    %344 = vector.broadcast %cst_249 : f32 to vector<32x256xf32>
    %345 = arith.select %343, %344, %341 : vector<32x256xi1>, vector<32x256xf32>
    %346 = tpu.concatenate %340, %335, %345 in 0 : vector<32x256xf32>, vector<32x256xf32>, vector<32x256xf32> -> vector<96x256xf32>
    %c0_250 = arith.constant 0 : index
    %c0_251 = arith.constant 0 : index
    %347 = vector.load %arg9[%c0_250, %c0_251] : memref<64x96xf32, #tpu.memory_space<vmem>>, vector<64x96xf32>
    %cst_252 = arith.constant dense<0.000000e+00> : vector<64x256xf32>
    %348 = tpu.matmul %347, %346, %cst_252 {dimension_numbers = #tpu.dot_dimension_numbers<[1], [0], [0], [1], [0, 0, 1, 1], [], []>} : vector<64x96xf32>, vector<96x256xf32>, vector<64x256xf32> -> vector<64x256xf32>
    %c0_253 = arith.constant 0 : index
    %c0_254 = arith.constant 0 : index
    %349 = vector.load %arg10[%c0_253, %c0_254] : memref<64x1xf32, #tpu.memory_space<vmem>>, vector<64x1xf32>
    %350 = vector.broadcast %349 : vector<64x1xf32> to vector<64x256xf32>
    %351 = arith.addf %348, %350 : vector<64x256xf32>
    %cst_255 = arith.constant 0.000000e+00 : f32
    %352 = vector.broadcast %cst_255 : f32 to vector<64x256xf32>
    %353 = arith.maximumf %351, %352 : vector<64x256xf32>
    %c1_i32_256 = arith.constant 1 : i32
    %354 = tpu.dynamic_rotate %353 by %c1_i32_256 dim 1 : vector<64x256xf32>, i32 -> vector<64x256xf32>
    %cst_257 = arith.constant 0.000000e+00 : f32
    %355 = vector.shape_cast %12 : vector<1x256xi1> to vector<1x256xi1>
    %356 = vector.broadcast %355 : vector<1x256xi1> to vector<64x256xi1>
    %357 = vector.broadcast %cst_257 : f32 to vector<64x256xf32>
    %358 = arith.select %356, %357, %354 : vector<64x256xi1>, vector<64x256xf32>
    %c255_i32_258 = arith.constant 255 : i32
    %359 = tpu.dynamic_rotate %353 by %c255_i32_258 dim 1 : vector<64x256xf32>, i32 -> vector<64x256xf32>
    %cst_259 = arith.constant 0.000000e+00 : f32
    %360 = vector.shape_cast %15 : vector<1x256xi1> to vector<1x256xi1>
    %361 = vector.broadcast %360 : vector<1x256xi1> to vector<64x256xi1>
    %362 = vector.broadcast %cst_259 : f32 to vector<64x256xf32>
    %363 = arith.select %361, %362, %359 : vector<64x256xi1>, vector<64x256xf32>
    %364 = tpu.concatenate %358, %353, %363 in 0 : vector<64x256xf32>, vector<64x256xf32>, vector<64x256xf32> -> vector<192x256xf32>
    %c0_260 = arith.constant 0 : index
    %c0_261 = arith.constant 0 : index
    %365 = vector.load %arg11[%c0_260, %c0_261] : memref<8x192xf32, #tpu.memory_space<vmem>>, vector<8x192xf32>
    %cst_262 = arith.constant dense<0.000000e+00> : vector<8x256xf32>
    %366 = tpu.matmul %365, %364, %cst_262 {dimension_numbers = #tpu.dot_dimension_numbers<[1], [0], [0], [1], [0, 0, 1, 1], [], []>} : vector<8x192xf32>, vector<192x256xf32>, vector<8x256xf32> -> vector<8x256xf32>
    %c0_263 = arith.constant 0 : index
    %c0_264 = arith.constant 0 : index
    %367 = vector.load %arg12[%c0_263, %c0_264] : memref<8x1xf32, #tpu.memory_space<vmem>>, vector<8x1xf32>
    %368 = vector.broadcast %367 : vector<8x1xf32> to vector<8x256xf32>
    %369 = arith.addf %366, %368 : vector<8x256xf32>
    %370 = vector.extract_strided_slice %369 {offsets = [0, 0], sizes = [8, 128], strides = [1, 1]} : vector<8x256xf32> to vector<8x128xf32>
    %c0_265 = arith.constant 0 : index
    %c0_266 = arith.constant 0 : index
    %c0_267 = arith.constant 0 : index
    %371 = vector.load %arg18[%c0_265, %c0_266, %c0_267] : memref<2x8x128xf32, #tpu.memory_space<vmem>>, vector<1x8x128xf32>
    %372 = vector.shape_cast %371 : vector<1x8x128xf32> to vector<8x128xf32>
    %373 = vector.shape_cast %370 : vector<8x128xf32> to vector<1x8x128xf32>
    tpu.vector_store %arg18[%c0_265, %c0_266, %c0_267], %373 {strides = array<i32>} : memref<2x8x128xf32, #tpu.memory_space<vmem>>, vector<1x8x128xf32>,
    %374 = vector.extract_strided_slice %369 {offsets = [0, 128], sizes = [8, 128], strides = [1, 1]} : vector<8x256xf32> to vector<8x128xf32>
    %c1_268 = arith.constant 1 : index
    %c0_269 = arith.constant 0 : index
    %c0_270 = arith.constant 0 : index
    %375 = vector.load %arg18[%c1_268, %c0_269, %c0_270] : memref<2x8x128xf32, #tpu.memory_space<vmem>>, vector<1x8x128xf32>
    %376 = vector.shape_cast %375 : vector<1x8x128xf32> to vector<8x128xf32>
    %377 = vector.shape_cast %374 : vector<8x128xf32> to vector<1x8x128xf32>
    tpu.vector_store %arg18[%c1_268, %c0_269, %c0_270], %377 {strides = array<i32>} : memref<2x8x128xf32, #tpu.memory_space<vmem>>, vector<1x8x128xf32>,
    return
  }
}

</mosaic_0001>

<llo_original>
// kernel: tpu_custom_call.1
$region0: #{tpu_custom_call.1}
  #allocation0 [shape = 'u32[]', space=smem, size = 0x4, offset = 0x4, fixed_abs, tag = 'smem constant byte address 0x4 - core index']
  #allocation1 [shape = 'u32[144,128]{1,0:T(1,128)}', space=vmem, size = 0x12000, scoped, tag = 'internal scratch']
  #allocation2 [shape = 'f32[2,4096]{1,0:T(2,128)}', space=vmem, size = 0x8000, scoped, tag = 'scratch operand']
  #allocation3 [shape = 'f32[32,256]{1,0:T(8,128)}', space=vmem, size = 0x8000, scoped, tag = 'scratch operand']
  %s0 = inlined_call_operand.vmem [shape: f32[2,8,128], index: 0, kind: input, shape index: {}]
  %s1 = inlined_call_operand.vmem [shape: f32[64,24], index: 1, kind: input, shape index: {}]
  %s2 = inlined_call_operand.vmem [shape: f32[64,1], index: 2, kind: input, shape index: {}]
  %s3 = inlined_call_operand.vmem [shape: f32[32,192], index: 3, kind: input, shape index: {}]
  %s4 = inlined_call_operand.vmem [shape: f32[32,1], index: 4, kind: input, shape index: {}]
  %s5 = inlined_call_operand.hbm [shape: bf16[32,4096], index: 5, kind: input, shape index: {}]
  %s6 = inlined_call_operand.vmem [shape: f32[1,32], index: 6, kind: input, shape index: {}]
  %s7 = inlined_call_operand.hbm [shape: bf16[32,4096], index: 7, kind: input, shape index: {}]
  %s8 = inlined_call_operand.vmem [shape: f32[1,4096], index: 8, kind: input, shape index: {}]
  %s9 = inlined_call_operand.vmem [shape: f32[64,96], index: 9, kind: input, shape index: {}]
  %s10 = inlined_call_operand.vmem [shape: f32[64,1], index: 10, kind: input, shape index: {}]
  %s11 = inlined_call_operand.vmem [shape: f32[8,192], index: 11, kind: input, shape index: {}]
  %s12 = inlined_call_operand.vmem [shape: f32[8,1], index: 12, kind: input, shape index: {}]
  %s13 = inlined_call_operand.vmem [shape: f32[32,64], index: 13, kind: input, shape index: {}]
  %s14 = inlined_call_operand.vmem [shape: f32[1,64], index: 14, kind: input, shape index: {}]
  %s15 = inlined_call_operand.vmem [shape: f32[64,2], index: 15, kind: input, shape index: {}]
  %s16 = inlined_call_operand.vmem [shape: f32[1,2], index: 16, kind: input, shape index: {}]
  %s17 = inlined_call_operand.hbm [shape: f32[2,2], index: 17, kind: output, shape index: {0}]
  %s18 = inlined_call_operand.hbm [shape: f32[2,8,128], index: 18, kind: output, shape index: {1}]
  %s19 = inlined_call_operand.hbm [shape: f32[2,32], index: 19, kind: output, shape index: {2}]
  %20 = xla_tuple %s17, %s18, %s19
  %s21 = sld [smem:[#allocation0]]
  $region102: #{tpu_custom_call.1} parent=0
    _
  %s23 = ssub.s32 1, %s21
  %s24 = scalar_select 0, %s23, %s21
  $region1: #{tpu_custom_call.1} parent=0
    #allocation4 [shape = 'u8[262144]{0}', space=vmem, size = 0x40000, scoped, tag = 'input window, operand 5, single buffered']
    #allocation5 [shape = 's32[1]{0}', space=sflag, size = 0x4, scoped, tag = 'scoped memory for tpu_custom_call.1']
    #allocation6 [shape = 's32[1]{0}', space=sflag, size = 0x4, scoped, tag = 'scoped memory for tpu_custom_call.1']
    #allocation7 [shape = 'u8[262144]{0}', space=vmem, size = 0x40000, scoped, tag = 'input window, operand 7, single buffered']
    #allocation8 [shape = 's32[1]{0}', space=sflag, size = 0x4, scoped, tag = 'scoped memory for tpu_custom_call.1']
    #allocation9 [shape = 'u8[1024]{0}', space=vmem, size = 0x400, scoped, tag = 'output window, operand 0, single buffered']
    #allocation10 [shape = 'u8[8192]{0}', space=vmem, size = 0x2000, scoped, tag = 'output window, operand 1, single buffered']
    #allocation11 [shape = 's32[1]{0}', space=sflag, size = 0x4, scoped, tag = 'scoped memory for tpu_custom_call.1']
    #allocation12 [shape = 'u8[1024]{0}', space=vmem, size = 0x400, scoped, tag = 'output window, operand 2, single buffered']
    %25 = vsyncpa [#allocation5], 0
    %26 = vsyncpa [#allocation8], 0
    %27 = vsyncpa [#allocation6], 0
    %28 = vsyncpa [#allocation11], 0
    // Predicated region
    $region2: #{tpu_custom_call.1} parent=1 // pred_check
      _
    $region3: #{tpu_custom_call.1} parent=1 // pred_check_branch
      %30 = sbr.rel (0) target = $region5
    $region4: #{tpu_custom_call.1} parent=1 // pred_region
      _
    $region5: #{tpu_custom_call.1} parent=1 // pred_fallthru
      _
    // Predicated region
    $region6: #{tpu_custom_call.1} parent=1 // pred_check
      _
    $region7: #{tpu_custom_call.1} parent=1 // pred_check_branch
      %32 = sbr.rel (0) target = $region9
    $region8: #{tpu_custom_call.1} parent=1 // pred_region
      _
    $region9: #{tpu_custom_call.1} parent=1 // pred_fallthru
      _
    // Predicated region
    $region10: #{tpu_custom_call.1} parent=1 // pred_check
      _
    $region11: #{tpu_custom_call.1} parent=1 // pred_check_branch
      %34 = sbr.rel (0) target = $region13
    $region12: #{tpu_custom_call.1} parent=1 // pred_region
      _
    $region13: #{tpu_custom_call.1} parent=1 // pred_fallthru
      _
    // Predicated region
    $region14: #{tpu_custom_call.1} parent=1 // pred_check
      _
    $region15: #{tpu_custom_call.1} parent=1 // pred_check_branch
      %36 = sbr.rel (0) target = $region17
    $region16: #{tpu_custom_call.1} parent=1 // pred_region
      _
    $region17: #{tpu_custom_call.1} parent=1 // pred_fallthru
      _
    // Predicated region
    $region18: #{tpu_custom_call.1} parent=1 // pred_check
      _
    $region19: #{tpu_custom_call.1} parent=1 // pred_check_branch
      %38 = sbr.rel (0) target = $region21
    $region20: #{tpu_custom_call.1} parent=1 // pred_region
      _
    $region21: #{tpu_custom_call.1} parent=1 // pred_fallthru
      _
    // Predicated region
    $region22: #{tpu_custom_call.1} parent=1 // pred_check
      _
    $region23: #{tpu_custom_call.1} parent=1 // pred_check_branch
      %40 = sbr.rel (0) target = $region25
    $region24: #{tpu_custom_call.1} parent=1 // pred_region
      %s42 = ssub.s32 8192, 8192
      %43 = vsyncadd [#allocation5], %s42
      %s44 = sshll.u32 [#allocation4], 4
      %s45 = int_to_ptr.vmem [resolvable:$true] %s44
      %50 = dma.hbm_to_vmem [thread:$0]  %s5, 8192, %s45, [#allocation5], 2048, 2048, 128
    $region25: #{tpu_custom_call.1} parent=1 // pred_fallthru
      _
    // Predicated region
    $region26: #{tpu_custom_call.1} parent=1 // pred_check
      _
    $region27: #{tpu_custom_call.1} parent=1 // pred_check_branch
      %52 = sbr.rel (0) target = $region29
    $region28: #{tpu_custom_call.1} parent=1 // pred_region
      _
    $region29: #{tpu_custom_call.1} parent=1 // pred_fallthru
      _
    // Predicated region
    $region30: #{tpu_custom_call.1} parent=1 // pred_check
      _
    $region31: #{tpu_custom_call.1} parent=1 // pred_check_branch
      %54 = sbr.rel (0) target = $region33
    $region32: #{tpu_custom_call.1} parent=1 // pred_region
      %s56 = ssub.s32 8192, 8192
      %57 = vsyncadd [#allocation8], %s56
      %s58 = sshll.u32 [#allocation7], 4
      %s59 = int_to_ptr.vmem [resolvable:$true] %s58
      %64 = dma.hbm_to_vmem [thread:$0]  %s7, 8192, %s59, [#allocation8], 2048, 2048, 128
    $region33: #{tpu_custom_call.1} parent=1 // pred_fallthru
      _
    // Predicated region
    $region34: #{tpu_custom_call.1} parent=1 // pred_check
      _
    $region35: #{tpu_custom_call.1} parent=1 // pred_check_branch
      %66 = sbr.rel (0) target = $region37
    $region36: #{tpu_custom_call.1} parent=1 // pred_region
      _
    $region37: #{tpu_custom_call.1} parent=1 // pred_fallthru
      _
    // Predicated region
    $region38: #{tpu_custom_call.1} parent=1 // pred_check
      _
    $region39: #{tpu_custom_call.1} parent=1 // pred_check_branch
      %68 = sbr.rel (0) target = $region41
    $region40: #{tpu_custom_call.1} parent=1 // pred_region
      _
    $region41: #{tpu_custom_call.1} parent=1 // pred_fallthru
      _
    // Predicated region
    $region42: #{tpu_custom_call.1} parent=1 // pred_check
      _
    $region43: #{tpu_custom_call.1} parent=1 // pred_check_branch
      %70 = sbr.rel (0) target = $region45
    $region44: #{tpu_custom_call.1} parent=1 // pred_region
      _
    $region45: #{tpu_custom_call.1} parent=1 // pred_fallthru
      _
    // Predicated region
    $region46: #{tpu_custom_call.1} parent=1 // pred_check
      _
    $region47: #{tpu_custom_call.1} parent=1 // pred_check_branch
      %72 = sbr.rel (0) target = $region49
    $region48: #{tpu_custom_call.1} parent=1 // pred_region
      _
    $region49: #{tpu_custom_call.1} parent=1 // pred_fallthru
      _
    // Predicated region
    $region50: #{tpu_custom_call.1} parent=1 // pred_check
      _
    $region51: #{tpu_custom_call.1} parent=1 // pred_check_branch
      %74 = sbr.rel (0) target = $region53
    $region52: #{tpu_custom_call.1} parent=1 // pred_region
      _
    $region53: #{tpu_custom_call.1} parent=1 // pred_fallthru
      _
    // Predicated region
    $region54: #{tpu_custom_call.1} parent=1 // pred_check
      _
    $region55: #{tpu_custom_call.1} parent=1 // pred_check_branch
      %76 = sbr.rel (0) target = $region57
    $region56: #{tpu_custom_call.1} parent=1 // pred_region
      _
    $region57: #{tpu_custom_call.1} parent=1 // pred_fallthru
      _
    // Predicated region
    $region58: #{tpu_custom_call.1} parent=1 // pred_check
      _
    $region59: #{tpu_custom_call.1} parent=1 // pred_check_branch
      %78 = sbr.rel (0) target = $region61
    $region60: #{tpu_custom_call.1} parent=1 // pred_region
      _
    $region61: #{tpu_custom_call.1} parent=1 // pred_fallthru
      _
    // Predicated region
    $region62: #{tpu_custom_call.1} parent=1 // pred_check
      _
    $region63: #{tpu_custom_call.1} parent=1 // pred_check_branch
      %80 = sbr.rel (0) target = $region65
    $region64: #{tpu_custom_call.1} parent=1 // pred_region
      _
    $region65: #{tpu_custom_call.1} parent=1 // pred_fallthru
      _
    // Predicated region
    $region66: #{tpu_custom_call.1} parent=1 // pred_check
      _
    $region67: #{tpu_custom_call.1} parent=1 // pred_check_branch
      %82 = sbr.rel (0) target = $region69
    $region68: #{tpu_custom_call.1} parent=1 // pred_region
      _
    $region69: #{tpu_custom_call.1} parent=1 // pred_fallthru
      _
    // Predicated region
    $region70: #{tpu_custom_call.1} parent=1 // pred_check
      _
    $region71: #{tpu_custom_call.1} parent=1 // pred_check_branch
      %84 = sbr.rel (0) target = $region73
    $region72: #{tpu_custom_call.1} parent=1 // pred_region
      %85 = dma.done [#allocation5], 8192
    $region73: #{tpu_custom_call.1} parent=1 // pred_fallthru
      _
    // Predicated region
    $region74: #{tpu_custom_call.1} parent=1 // pred_check
      _
    $region75: #{tpu_custom_call.1} parent=1 // pred_check_branch
      %87 = sbr.rel (0) target = $region77
    $region76: #{tpu_custom_call.1} parent=1 // pred_region
      %88 = dma.done [#allocation8], 8192
    $region77: #{tpu_custom_call.1} parent=1 // pred_fallthru
      _
    %v90 = vld [vmem:[%s0] sm:$0xff]
    %s91 = scalar_lea.vmem %s0, 8
    %v92 = vld [vmem:[%s91] sm:$0xff]
    %v93 = vlaneseq
    %v94 = vand.u32 %v93, 127
    %v95 = vadd.s32 %v94, 128
    %vm96 = vcmp.eq.s32.totalorder %v94, 0
    %vm97 = vcmp.eq.s32.totalorder %v95, 0
    %vm98 = vcmp.eq.s32.totalorder %v94, 127
    %vm99 = vcmp.eq.s32.totalorder %v95, 127
    %vm100 = vcmp.eq.s32.totalorder %v94, 128
    %vm101 = vcmp.eq.s32.totalorder %v95, 128
    %vm102 = vmor %vm96, %vm100
    %vm103 = vmor %vm97, %vm101
    %vm104 = vcmp.eq.s32.totalorder %v94, 255
    %vm105 = vcmp.eq.s32.totalorder %v95, 255
    %vm106 = vmor %vm98, %vm104
    %vm107 = vmor %vm99, %vm105
    %108 = vrot.lane.b32.xlu0 %v90, 1
    %v109 = vpop.permute.xlu0 %108
    %110 = vrot.lane.b32.xlu0 %v92, 1
    %v111 = vpop.permute.xlu0 %110
    %vm112 = vcmp.lt.s32.totalorder %v94, 1
    %v113 = vsel %vm112, %v109, %v111
    %v114 = vsel %vm112, %v111, %v109
    %v115 = vsel %vm102, 1, 0
    %v116 = vsel %vm103, 1, 0
    %vm117 = vcmp.eq.s32.totalorder %v115, 1
    %vm118 = vcmp.eq.s32.totalorder %v116, 1
    %v119 = vsel %vm117, 0.0, %v114
    %v120 = vsel %vm118, 0.0, %v113
    %121 = vrot.lane.b32.xlu0 %v90, 127
    %v122 = vpop.permute.xlu0 %121
    %123 = vrot.lane.b32.xlu0 %v92, 127
    %v124 = vpop.permute.xlu0 %123
    %vm125 = vcmp.lt.s32.totalorder %v94, 127
    %v126 = vsel %vm125, %v122, %v124
    %v127 = vsel %vm125, %v124, %v122
    %v128 = vsel %vm106, 1, 0
    %v129 = vsel %vm107, 1, 0
    %vm130 = vcmp.eq.s32.totalorder %v128, 1
    %vm131 = vcmp.eq.s32.totalorder %v129, 1
    %v132 = vsel %vm130, 0.0, %v126
    %v133 = vsel %vm131, 0.0, %v127
    %v134 = vld [vmem:[%s1] sm:$0xff]
    %v135 = vld [vmem:[%s1 + $0x8] sm:$0xff]
    %v136 = vld [vmem:[%s1 + $0x10] sm:$0xff]
    %v137 = vld [vmem:[%s1 + $0x18] sm:$0xff]
    %v138 = vld [vmem:[%s1 + $0x20] sm:$0xff]
    %v139 = vld [vmem:[%s1 + $0x28] sm:$0xff]
    %v140 = vld [vmem:[%s1 + $0x30] sm:$0xff]
    %v141 = vld [vmem:[%s1 + $0x38] sm:$0xff]
    %v142 = vld [vmem:[%s2] sm:$0xff]
    %v143 = vld [vmem:[%s2 + $0x8] sm:$0xff]
    %v144 = vld [vmem:[%s2 + $0x10] sm:$0xff]
    %v145 = vld [vmem:[%s2 + $0x18] sm:$0xff]
    %v146 = vld [vmem:[%s2 + $0x20] sm:$0xff]
    %v147 = vld [vmem:[%s2 + $0x28] sm:$0xff]
    %v148 = vld [vmem:[%s2 + $0x30] sm:$0xff]
    %v149 = vld [vmem:[%s2 + $0x38] sm:$0xff]
    %151 = vset.pattern.permute.xlu0 0
    %152 = vperm.xlu0 %151, %v142
    %v153 = vpop.permute.xlu0 %152
    %156 = vset.pattern.permute.xlu0 0
    %157 = vperm.xlu0 %156, %v143
    %v158 = vpop.permute.xlu0 %157
    %161 = vset.pattern.permute.xlu0 0
    %162 = vperm.xlu0 %161, %v144
    %v163 = vpop.permute.xlu0 %162
    %166 = vset.pattern.permute.xlu0 0
    %167 = vperm.xlu0 %166, %v145
    %v168 = vpop.permute.xlu0 %167
    %171 = vset.pattern.permute.xlu0 0
    %172 = vperm.xlu0 %171, %v146
    %v173 = vpop.permute.xlu0 %172
    %176 = vset.pattern.permute.xlu0 0
    %177 = vperm.xlu0 %176, %v147
    %v178 = vpop.permute.xlu0 %177
    %181 = vset.pattern.permute.xlu0 0
    %182 = vperm.xlu0 %181, %v148
    %v183 = vpop.permute.xlu0 %182
    %186 = vset.pattern.permute.xlu0 0
    %187 = vperm.xlu0 %186, %v149
    %v188 = vpop.permute.xlu0 %187
    %vm190 = vcmask 195584
    %v192 = vsel %vm190, %v134, 0
    %v195 = vsel %vm190, %v135, 0
    %v198 = vsel %vm190, %v136, 0
    %v201 = vsel %vm190, %v137, 0
    %v204 = vsel %vm190, %v138, 0
    %v207 = vsel %vm190, %v139, 0
    %v210 = vsel %vm190, %v140, 0
    %v213 = vsel %vm190, %v141, 0
    %215 = vmatprep.subr.mxu0 %v120
    %216 = vmatpush1.msra.mxu0 %v119
    %217 = vmatprep.subr.mxu0 %v92
    %218 = vmatpush1.msra.mxu0 %v90
    %219 = vmatprep.subr.mxu0 %v133
    %220 = vmatpush1.msra.mxu0 %v132
    %221 = vmatprep.subr.mxu0 0.0
    %222 = vmatpush1.msra.mxu0 0.0
    %223 = vmatprep.subr.mxu0 0.0
    %224 = vmatpush1.msra.mxu0 0.0
    %225 = vmatprep.subr.mxu0 0.0
    %226 = vmatpush1.msra.mxu0 0.0
    %227 = vmatprep.subr.mxu0 0.0
    %228 = vmatpush1.msra.mxu0 0.0
    %229 = vmatprep.subr.mxu0 0.0
    %230 = vmatpush1.msra.mxu0 0.0
    %231 = vmatprep.subr.mxu0 0.0
    %232 = vmatpush1.msra.mxu0 0.0
    %233 = vmatprep.subr.mxu0 0.0
    %234 = vmatpush1.msra.mxu0 0.0
    %235 = vmatprep.subr.mxu0 0.0
    %236 = vmatpush1.msra.mxu0 0.0
    %237 = vmatprep.subr.mxu0 0.0
    %238 = vmatpush1.msra.mxu0 0.0
    %239 = vmatprep.subr.mxu0 0.0
    %240 = vmatpush1.msra.mxu0 0.0
    %241 = vmatprep.subr.mxu0 0.0
    %242 = vmatpush1.msra.mxu0 0.0
    %243 = vmatprep.subr.mxu0 0.0
    %244 = vmatpush1.msra.mxu0 0.0
    %245 = vmatprep.subr.mxu0 0.0
    %246 = vmatpush1.msra.mxu0 0.0
    %247 = vmatprep.subr.mxu0 0.0
    %248 = vmatpush1.msra.mxu0 0.0
    %249 = vmatprep.subr.mxu0 0.0
    %250 = vmatpush1.msra.mxu0 0.0
    %251 = vmatprep.subr.mxu0 0.0
    %252 = vmatpush1.msra.mxu0 0.0
    %253 = vmatprep.subr.mxu0 0.0
    %254 = vmatpush1.msra.mxu0 0.0
    %255 = vmatprep.subr.mxu0 0.0
    %256 = vmatpush1.msra.mxu0 0.0
    %257 = vmatprep.subr.mxu0 0.0
    %258 = vmatpush1.msra.mxu0 0.0
    %259 = vmatprep.subr.mxu0 0.0
    %260 = vmatpush1.msra.mxu0 0.0
    %261 = vmatprep.subr.mxu0 0.0
    %262 = vmatpush1.msra.mxu0 0.0
    %263 = vmatprep.subr.mxu0 0.0
    %264 = vmatpush1.msra.mxu0 0.0
    %265 = vmatprep.subr.mxu0 0.0
    %266 = vmatpush1.msra.mxu0 0.0
    %267 = vmatprep.subr.mxu0 0.0
    %268 = vmatpush1.msra.mxu0 0.0
    %269 = vmatprep.subr.mxu0 0.0
    %270 = vmatpush1.msra.mxu0 0.0
    %271 = vmatprep.subr.mxu0 0.0
    %272 = vmatpush1.msra.mxu0 0.0
    %273 = vmatprep.subr.mxu0 0.0
    %274 = vmatpush1.msra.mxu0 0.0
    %275 = vmatprep.subr.mxu0 0.0
    %276 = vmatpush1.msra.mxu0 0.0
    %277 = vmatprep.subr.mxu0 0.0
    %278 = vmatpush1.msra.mxu0 0.0
    %279 = vmatprep.mubr.f32.mxu0 0.0
    %280 = vmatmul.mubr.f32.gmra.mrb[0].mxu0 %v192
    %v281 = vpop.f32.mrb[0].mxu0
    %v282 = vadd.f32 %v153, %v281
    %v283 = vpop.f32.mrb[0].mxu0
    %v284 = vadd.f32 %v153, %v283
    %285 = vmatprep.mubr.f32.mxu0 0.0
    %286 = vmatmul.mubr.f32.gmra.mrb[0].mxu0 %v195
    %v287 = vpop.f32.mrb[0].mxu0
    %v288 = vadd.f32 %v158, %v287
    %v289 = vpop.f32.mrb[0].mxu0
    %v290 = vadd.f32 %v158, %v289
    %291 = vmatprep.mubr.f32.mxu0 0.0
    %292 = vmatmul.mubr.f32.gmra.mrb[0].mxu0 %v198
    %v293 = vpop.f32.mrb[0].mxu0
    %v294 = vadd.f32 %v163, %v293
    %v295 = vpop.f32.mrb[0].mxu0
    %v296 = vadd.f32 %v163, %v295
    %297 = vmatprep.mubr.f32.mxu0 0.0
    %298 = vmatmul.mubr.f32.gmra.mrb[0].mxu0 %v201
    %v299 = vpop.f32.mrb[0].mxu0
    %v300 = vadd.f32 %v168, %v299
    %v301 = vpop.f32.mrb[0].mxu0
    %v302 = vadd.f32 %v168, %v301
    %303 = vmatprep.mubr.f32.mxu0 0.0
    %304 = vmatmul.mubr.f32.gmra.mrb[0].mxu0 %v204
    %v305 = vpop.f32.mrb[0].mxu0
    %v306 = vadd.f32 %v173, %v305
    %v307 = vpop.f32.mrb[0].mxu0
    %v308 = vadd.f32 %v173, %v307
    %309 = vmatprep.mubr.f32.mxu0 0.0
    %310 = vmatmul.mubr.f32.gmra.mrb[0].mxu0 %v207
    %v311 = vpop.f32.mrb[0].mxu0
    %v312 = vadd.f32 %v178, %v311
    %v313 = vpop.f32.mrb[0].mxu0
    %v314 = vadd.f32 %v178, %v313
    %315 = vmatprep.mubr.f32.mxu0 0.0
    %316 = vmatmul.mubr.f32.gmra.mrb[0].mxu0 %v210
    %v317 = vpop.f32.mrb[0].mxu0
    %v318 = vadd.f32 %v183, %v317
    %v319 = vpop.f32.mrb[0].mxu0
    %v320 = vadd.f32 %v183, %v319
    %321 = vmatprep.mubr.f32.mxu0 0.0
    %322 = vmatmul.mubr.f32.gmra.mrb[0].mxu0 %v213
    %v323 = vpop.f32.mrb[0].mxu0
    %v324 = vadd.f32 %v188, %v323
    %v325 = vpop.f32.mrb[0].mxu0
    %v326 = vadd.f32 %v188, %v325
    %327 = vdwg.mxu0
    %v328 = vmax.f32 %v282, 0.0
    %v329 = vmax.f32 %v284, 0.0
    %v330 = vmax.f32 %v288, 0.0
    %v331 = vmax.f32 %v290, 0.0
    %v332 = vmax.f32 %v294, 0.0
    %v333 = vmax.f32 %v296, 0.0
    %v334 = vmax.f32 %v300, 0.0
    %v335 = vmax.f32 %v302, 0.0
    %v336 = vmax.f32 %v306, 0.0
    %v337 = vmax.f32 %v308, 0.0
    %v338 = vmax.f32 %v312, 0.0
    %v339 = vmax.f32 %v314, 0.0
    %v340 = vmax.f32 %v318, 0.0
    %v341 = vmax.f32 %v320, 0.0
    %v342 = vmax.f32 %v324, 0.0
    %v343 = vmax.f32 %v326, 0.0
    %344 = vrot.lane.b32.xlu0 %v328, 1
    %v345 = vpop.permute.xlu0 %344
    %346 = vrot.lane.b32.xlu0 %v330, 1
    %v347 = vpop.permute.xlu0 %346
    %348 = vrot.lane.b32.xlu0 %v332, 1
    %v349 = vpop.permute.xlu0 %348
    %350 = vrot.lane.b32.xlu0 %v334, 1
    %v351 = vpop.permute.xlu0 %350
    %352 = vrot.lane.b32.xlu0 %v336, 1
    %v353 = vpop.permute.xlu0 %352
    %354 = vrot.lane.b32.xlu0 %v338, 1
    %v355 = vpop.permute.xlu0 %354
    %356 = vrot.lane.b32.xlu0 %v340, 1
    %v357 = vpop.permute.xlu0 %356
    %358 = vrot.lane.b32.xlu0 %v342, 1
    %v359 = vpop.permute.xlu0 %358
    %360 = vrot.lane.b32.xlu0 %v329, 1
    %v361 = vpop.permute.xlu0 %360
    %362 = vrot.lane.b32.xlu0 %v331, 1
    %v363 = vpop.permute.xlu0 %362
    %364 = vrot.lane.b32.xlu0 %v333, 1
    %v365 = vpop.permute.xlu0 %364
    %366 = vrot.lane.b32.xlu0 %v335, 1
    %v367 = vpop.permute.xlu0 %366
    %368 = vrot.lane.b32.xlu0 %v337, 1
    %v369 = vpop.permute.xlu0 %368
    %370 = vrot.lane.b32.xlu0 %v339, 1
    %v371 = vpop.permute.xlu0 %370
    %372 = vrot.lane.b32.xlu0 %v341, 1
    %v373 = vpop.permute.xlu0 %372
    %374 = vrot.lane.b32.xlu0 %v343, 1
    %v375 = vpop.permute.xlu0 %374
    %v376 = vsel %vm112, %v345, %v361
    %v377 = vsel %vm112, %v347, %v363
    %v378 = vsel %vm112, %v349, %v365
    %v379 = vsel %vm112, %v351, %v367
    %v380 = vsel %vm112, %v353, %v369
    %v381 = vsel %vm112, %v355, %v371
    %v382 = vsel %vm112, %v357, %v373
    %v383 = vsel %vm112, %v359, %v375
    %v384 = vsel %vm112, %v361, %v345
    %v385 = vsel %vm112, %v363, %v347
    %v386 = vsel %vm112, %v365, %v349
    %v387 = vsel %vm112, %v367, %v351
    %v388 = vsel %vm112, %v369, %v353
    %v389 = vsel %vm112, %v371, %v355
    %v390 = vsel %vm112, %v373, %v357
    %v391 = vsel %vm112, %v375, %v359
    %v392 = vsel %vm117, 0.0, %v384
    %v393 = vsel %vm118, 0.0, %v376
    %v394 = vsel %vm117, 0.0, %v385
    %v395 = vsel %vm118, 0.0, %v377
    %v396 = vsel %vm117, 0.0, %v386
    %v397 = vsel %vm118, 0.0, %v378
    %v398 = vsel %vm117, 0.0, %v387
    %v399 = vsel %vm118, 0.0, %v379
    %v400 = vsel %vm117, 0.0, %v388
    %v401 = vsel %vm118, 0.0, %v380
    %v402 = vsel %vm117, 0.0, %v389
    %v403 = vsel %vm118, 0.0, %v381
    %v404 = vsel %vm117, 0.0, %v390
    %v405 = vsel %vm118, 0.0, %v382
    %v406 = vsel %vm117, 0.0, %v391
    %v407 = vsel %vm118, 0.0, %v383
    %408 = vrot.lane.b32.xlu0 %v328, 127
    %v409 = vpop.permute.xlu0 %408
    %410 = vrot.lane.b32.xlu0 %v330, 127
    %v411 = vpop.permute.xlu0 %410
    %412 = vrot.lane.b32.xlu0 %v332, 127
    %v413 = vpop.permute.xlu0 %412
    %414 = vrot.lane.b32.xlu0 %v334, 127
    %v415 = vpop.permute.xlu0 %414
    %416 = vrot.lane.b32.xlu0 %v336, 127
    %v417 = vpop.permute.xlu0 %416
    %418 = vrot.lane.b32.xlu0 %v338, 127
    %v419 = vpop.permute.xlu0 %418
    %420 = vrot.lane.b32.xlu0 %v340, 127
    %v421 = vpop.permute.xlu0 %420
    %422 = vrot.lane.b32.xlu0 %v342, 127
    %v423 = vpop.permute.xlu0 %422
    %424 = vrot.lane.b32.xlu0 %v329, 127
    %v425 = vpop.permute.xlu0 %424
    %426 = vrot.lane.b32.xlu0 %v331, 127
    %v427 = vpop.permute.xlu0 %426
    %428 = vrot.lane.b32.xlu0 %v333, 127
    %v429 = vpop.permute.xlu0 %428
    %430 = vrot.lane.b32.xlu0 %v335, 127
    %v431 = vpop.permute.xlu0 %430
    %432 = vrot.lane.b32.xlu0 %v337, 127
    %v433 = vpop.permute.xlu0 %432
    %434 = vrot.lane.b32.xlu0 %v339, 127
    %v435 = vpop.permute.xlu0 %434
    %436 = vrot.lane.b32.xlu0 %v341, 127
    %v437 = vpop.permute.xlu0 %436
    %438 = vrot.lane.b32.xlu0 %v343, 127
    %v439 = vpop.permute.xlu0 %438
    %v440 = vsel %vm125, %v409, %v425
    %v441 = vsel %vm125, %v411, %v427
    %v442 = vsel %vm125, %v413, %v429
    %v443 = vsel %vm125, %v415, %v431
    %v444 = vsel %vm125, %v417, %v433
    %v445 = vsel %vm125, %v419, %v435
    %v446 = vsel %vm125, %v421, %v437
    %v447 = vsel %vm125, %v423, %v439
    %v448 = vsel %vm125, %v425, %v409
    %v449 = vsel %vm125, %v427, %v411
    %v450 = vsel %vm125, %v429, %v413
    %v451 = vsel %vm125, %v431, %v415
    %v452 = vsel %vm125, %v433, %v417
    %v453 = vsel %vm125, %v435, %v419
    %v454 = vsel %vm125, %v437, %v421
    %v455 = vsel %vm125, %v439, %v423
    %v456 = vsel %vm130, 0.0, %v440
    %v457 = vsel %vm131, 0.0, %v448
    %v458 = vsel %vm130, 0.0, %v441
    %v459 = vsel %vm131, 0.0, %v449
    %v460 = vsel %vm130, 0.0, %v442
    %v461 = vsel %vm131, 0.0, %v450
    %v462 = vsel %vm130, 0.0, %v443
    %v463 = vsel %vm131, 0.0, %v451
    %v464 = vsel %vm130, 0.0, %v444
    %v465 = vsel %vm131, 0.0, %v452
    %v466 = vsel %vm130, 0.0, %v445
    %v467 = vsel %vm131, 0.0, %v453
    %v468 = vsel %vm130, 0.0, %v446
    %v469 = vsel %vm131, 0.0, %v454
    %v470 = vsel %vm130, 0.0, %v447
    %v471 = vsel %vm131, 0.0, %v455
    %v472 = vld [vmem:[%s3] sm:$0xff]
    %v473 = vld [vmem:[%s3 + $0x8] sm:$0xff]
    %v474 = vld [vmem:[%s3 + $0x10] sm:$0xff]
    %v475 = vld [vmem:[%s3 + $0x18] sm:$0xff]
    %v476 = vld [vmem:[%s3 + $0x20] sm:$0xff]
    %v477 = vld [vmem:[%s3 + $0x28] sm:$0xff]
    %v478 = vld [vmem:[%s3 + $0x30] sm:$0xff]
    %v479 = vld [vmem:[%s3 + $0x38] sm:$0xff]
    %v480 = vld [vmem:[%s4] sm:$0xff]
    %v481 = vld [vmem:[%s4 + $0x8] sm:$0xff]
    %v482 = vld [vmem:[%s4 + $0x10] sm:$0xff]
    %v483 = vld [vmem:[%s4 + $0x18] sm:$0xff]
    %485 = vset.pattern.permute.xlu0 0
    %486 = vperm.xlu0 %485, %v480
    %v487 = vpop.permute.xlu0 %486
    %490 = vset.pattern.permute.xlu0 0
    %491 = vperm.xlu0 %490, %v481
    %v492 = vpop.permute.xlu0 %491
    %495 = vset.pattern.permute.xlu0 0
    %496 = vperm.xlu0 %495, %v482
    %v497 = vpop.permute.xlu0 %496
    %500 = vset.pattern.permute.xlu0 0
    %501 = vperm.xlu0 %500, %v483
    %v502 = vpop.permute.xlu0 %501
    %vm504 = vcmask 523264
    %v506 = vsel %vm504, %v473, 0
    %v509 = vsel %vm504, %v475, 0
    %v512 = vsel %vm504, %v477, 0
    %v515 = vsel %vm504, %v479, 0
    %517 = vmatprep.subr.mxu0 %v393
    %518 = vmatpush1.msra.mxu0 %v392
    %519 = vmatprep.subr.mxu0 %v395
    %520 = vmatpush1.msra.mxu0 %v394
    %521 = vmatprep.subr.mxu0 %v397
    %522 = vmatpush1.msra.mxu0 %v396
    %523 = vmatprep.subr.mxu0 %v399
    %524 = vmatpush1.msra.mxu0 %v398
    %525 = vmatprep.subr.mxu0 %v401
    %526 = vmatpush1.msra.mxu0 %v400
    %527 = vmatprep.subr.mxu0 %v403
    %528 = vmatpush1.msra.mxu0 %v402
    %529 = vmatprep.subr.mxu0 %v405
    %530 = vmatpush1.msra.mxu0 %v404
    %531 = vmatprep.subr.mxu0 %v407
    %532 = vmatpush1.msra.mxu0 %v406
    %533 = vmatprep.subr.mxu0 %v329
    %534 = vmatpush1.msra.mxu0 %v328
    %535 = vmatprep.subr.mxu0 %v331
    %536 = vmatpush1.msra.mxu0 %v330
    %537 = vmatprep.subr.mxu0 %v333
    %538 = vmatpush1.msra.mxu0 %v332
    %539 = vmatprep.subr.mxu0 %v335
    %540 = vmatpush1.msra.mxu0 %v334
    %541 = vmatprep.subr.mxu0 %v337
    %542 = vmatpush1.msra.mxu0 %v336
    %543 = vmatprep.subr.mxu0 %v339
    %544 = vmatpush1.msra.mxu0 %v338
    %545 = vmatprep.subr.mxu0 %v341
    %546 = vmatpush1.msra.mxu0 %v340
    %547 = vmatprep.subr.mxu0 %v343
    %548 = vmatpush1.msra.mxu0 %v342
    %549 = vmatprep.subr.mxu0 %v457
    %550 = vmatpush1.msra.mxu0 %v456
    %551 = vmatprep.subr.mxu0 %v459
    %552 = vmatpush1.msra.mxu0 %v458
    %553 = vmatprep.subr.mxu0 %v461
    %554 = vmatpush1.msra.mxu0 %v460
    %555 = vmatprep.subr.mxu0 %v463
    %556 = vmatpush1.msra.mxu0 %v462
    %557 = vmatprep.subr.mxu0 %v465
    %558 = vmatpush1.msra.mxu0 %v464
    %559 = vmatprep.subr.mxu0 %v467
    %560 = vmatpush1.msra.mxu0 %v466
    %561 = vmatprep.subr.mxu0 %v469
    %562 = vmatpush1.msra.mxu0 %v468
    %563 = vmatprep.subr.mxu0 %v471
    %564 = vmatpush1.msra.mxu0 %v470
    %565 = vmatprep.subr.mxu0 0.0
    %566 = vmatpush1.msra.mxu0 0.0
    %567 = vmatprep.subr.mxu0 0.0
    %568 = vmatpush1.msra.mxu0 0.0
    %569 = vmatprep.subr.mxu0 0.0
    %570 = vmatpush1.msra.mxu0 0.0
    %571 = vmatprep.subr.mxu0 0.0
    %572 = vmatpush1.msra.mxu0 0.0
    %573 = vmatprep.subr.mxu0 0.0
    %574 = vmatpush1.msra.mxu0 0.0
    %575 = vmatprep.subr.mxu0 0.0
    %576 = vmatpush1.msra.mxu0 0.0
    %577 = vmatprep.subr.mxu0 0.0
    %578 = vmatpush1.msra.mxu0 0.0
    %579 = vmatprep.subr.mxu0 0.0
    %580 = vmatpush1.msra.mxu0 0.0
    %581 = vmatprep.mubr.f32.mxu0 %v506
    %582 = vmatmul.mubr.f32.gmra.mrb[0].mxu0 %v472
    %v583 = vpop.f32.mrb[0].mxu0
    %v584 = vadd.f32 %v487, %v583
    %v585 = vpop.f32.mrb[0].mxu0
    %v586 = vadd.f32 %v487, %v585
    %587 = vmatprep.mubr.f32.mxu0 %v509
    %588 = vmatmul.mubr.f32.gmra.mrb[0].mxu0 %v474
    %v589 = vpop.f32.mrb[0].mxu0
    %v590 = vadd.f32 %v492, %v589
    %v591 = vpop.f32.mrb[0].mxu0
    %v592 = vadd.f32 %v492, %v591
    %593 = vmatprep.mubr.f32.mxu0 %v512
    %594 = vmatmul.mubr.f32.gmra.mrb[0].mxu0 %v476
    %v595 = vpop.f32.mrb[0].mxu0
    %v596 = vadd.f32 %v497, %v595
    %v597 = vpop.f32.mrb[0].mxu0
    %v598 = vadd.f32 %v497, %v597
    %599 = vmatprep.mubr.f32.mxu0 %v515
    %600 = vmatmul.mubr.f32.gmra.mrb[0].mxu0 %v478
    %v601 = vpop.f32.mrb[0].mxu0
    %v602 = vadd.f32 %v502, %v601
    %v603 = vpop.f32.mrb[0].mxu0
    %v604 = vadd.f32 %v502, %v603
    %605 = vdwg.mxu0
    %v606 = vmax.f32 %v584, 0.0
    %v607 = vmax.f32 %v586, 0.0
    %v608 = vmax.f32 %v590, 0.0
    %v609 = vmax.f32 %v592, 0.0
    %v610 = vmax.f32 %v596, 0.0
    %v611 = vmax.f32 %v598, 0.0
    %v612 = vmax.f32 %v602, 0.0
    %v613 = vmax.f32 %v604, 0.0
    %614 = vst [vmem:[#allocation2] sm:$0x1] %v606
    %v617 = vunpack.c.l.s4 1983009808
    %v618 = vunpack.c.0.s8 %v617
    %v619 = vlaneseq
    %v620 = vshrl.u32 %v619, 7
    %v621 = vsub.s32 %v618, %v620
    %v622 = vrot.slane %v606, %v621
    %v623 = vrot.slane %v622, 7
    %v624 = vrot.slane %v623, 2
    %626 = vst [vmem:[#allocation2 + $0x2] sm:$0x1] %v624
    %v627 = vcombine.high %v622, %v622
    %629 = vst [vmem:[#allocation2 + $0x4] sm:$0x1] %v627
    %v630 = vrot.slane %v627, 7
    %v631 = vrot.slane %v630, 2
    %633 = vst [vmem:[#allocation2 + $0x6] sm:$0x1] %v631
    %v634 = vcombine.high %v606, %v606
    %v636 = vunpack.c.l.s4 1983009808
    %v637 = vunpack.c.0.s8 %v636
    %v638 = vlaneseq
    %v639 = vshrl.u32 %v638, 7
    %v640 = vsub.s32 %v637, %v639
    %v641 = vrot.slane %v634, %v640
    %643 = vst [vmem:[#allocation2 + $0x8] sm:$0x1] %v641
    %v644 = vrot.slane %v641, 7
    %v645 = vrot.slane %v644, 2
    %647 = vst [vmem:[#allocation2 + $0xa] sm:$0x1] %v645
    %v648 = vcombine.high %v641, %v641
    %650 = vst [vmem:[#allocation2 + $0xc] sm:$0x1] %v648
    %v651 = vrot.slane %v648, 7
    %v652 = vrot.slane %v651, 2
    %654 = vst [vmem:[#allocation2 + $0xe] sm:$0x1] %v652
    %655 = vst [vmem:[#allocation2 + $0x10] sm:$0x1] %v608
    %v658 = vunpack.c.l.s4 1983009808
    %v659 = vunpack.c.0.s8 %v658
    %v660 = vlaneseq
    %v661 = vshrl.u32 %v660, 7
    %v662 = vsub.s32 %v659, %v661
    %v663 = vrot.slane %v608, %v662
    %v664 = vrot.slane %v663, 7
    %v665 = vrot.slane %v664, 2
    %667 = vst [vmem:[#allocation2 + $0x12] sm:$0x1] %v665
    %v668 = vcombine.high %v663, %v663
    %670 = vst [vmem:[#allocation2 + $0x14] sm:$0x1] %v668
    %v671 = vrot.slane %v668, 7
    %v672 = vrot.slane %v671, 2
    %674 = vst [vmem:[#allocation2 + $0x16] sm:$0x1] %v672
    %v675 = vcombine.high %v608, %v608
    %v677 = vunpack.c.l.s4 1983009808
    %v678 = vunpack.c.0.s8 %v677
    %v679 = vlaneseq
    %v680 = vshrl.u32 %v679, 7
    %v681 = vsub.s32 %v678, %v680
    %v682 = vrot.slane %v675, %v681
    %684 = vst [vmem:[#allocation2 + $0x18] sm:$0x1] %v682
    %v685 = vrot.slane %v682, 7
    %v686 = vrot.slane %v685, 2
    %688 = vst [vmem:[#allocation2 + $0x1a] sm:$0x1] %v686
    %v689 = vcombine.high %v682, %v682
    %691 = vst [vmem:[#allocation2 + $0x1c] sm:$0x1] %v689
    %v692 = vrot.slane %v689, 7
    %v693 = vrot.slane %v692, 2
    %695 = vst [vmem:[#allocation2 + $0x1e] sm:$0x1] %v693
    %696 = vst [vmem:[#allocation2 + $0x20] sm:$0x1] %v610
    %v699 = vunpack.c.l.s4 1983009808
    %v700 = vunpack.c.0.s8 %v699
    %v701 = vlaneseq
    %v702 = vshrl.u32 %v701, 7
    %v703 = vsub.s32 %v700, %v702
    %v704 = vrot.slane %v610, %v703
    %v705 = vrot.slane %v704, 7
    %v706 = vrot.slane %v705, 2
    %708 = vst [vmem:[#allocation2 + $0x22] sm:$0x1] %v706
    %v709 = vcombine.high %v704, %v704
    %711 = vst [vmem:[#allocation2 + $0x24] sm:$0x1] %v709
    %v712 = vrot.slane %v709, 7
    %v713 = vrot.slane %v712, 2
    %715 = vst [vmem:[#allocation2 + $0x26] sm:$0x1] %v713
    %v716 = vcombine.high %v610, %v610
    %v718 = vunpack.c.l.s4 1983009808
    %v719 = vunpack.c.0.s8 %v718
    %v720 = vlaneseq
    %v721 = vshrl.u32 %v720, 7
    %v722 = vsub.s32 %v719, %v721
    %v723 = vrot.slane %v716, %v722
    %725 = vst [vmem:[#allocation2 + $0x28] sm:$0x1] %v723
    %v726 = vrot.slane %v723, 7
    %v727 = vrot.slane %v726, 2
    %729 = vst [vmem:[#allocation2 + $0x2a] sm:$0x1] %v727
    %v730 = vcombine.high %v723, %v723
    %732 = vst [vmem:[#allocation2 + $0x2c] sm:$0x1] %v730
    %v733 = vrot.slane %v730, 7
    %v734 = vrot.slane %v733, 2
    %736 = vst [vmem:[#allocation2 + $0x2e] sm:$0x1] %v734
    %737 = vst [vmem:[#allocation2 + $0x30] sm:$0x1] %v612
    %v740 = vunpack.c.l.s4 1983009808
    %v741 = vunpack.c.0.s8 %v740
    %v742 = vlaneseq
    %v743 = vshrl.u32 %v742, 7
    %v744 = vsub.s32 %v741, %v743
    %v745 = vrot.slane %v612, %v744
    %v746 = vrot.slane %v745, 7
    %v747 = vrot.slane %v746, 2
    %749 = vst [vmem:[#allocation2 + $0x32] sm:$0x1] %v747
    %v750 = vcombine.high %v745, %v745
    %752 = vst [vmem:[#allocation2 + $0x34] sm:$0x1] %v750
    %v753 = vrot.slane %v750, 7
    %v754 = vrot.slane %v753, 2
    %756 = vst [vmem:[#allocation2 + $0x36] sm:$0x1] %v754
    %v757 = vcombine.high %v612, %v612
    %v759 = vunpack.c.l.s4 1983009808
    %v760 = vunpack.c.0.s8 %v759
    %v761 = vlaneseq
    %v762 = vshrl.u32 %v761, 7
    %v763 = vsub.s32 %v760, %v762
    %v764 = vrot.slane %v757, %v763
    %766 = vst [vmem:[#allocation2 + $0x38] sm:$0x1] %v764
    %v767 = vrot.slane %v764, 7
    %v768 = vrot.slane %v767, 2
    %770 = vst [vmem:[#allocation2 + $0x3a] sm:$0x1] %v768
    %v771 = vcombine.high %v764, %v764
    %773 = vst [vmem:[#allocation2 + $0x3c] sm:$0x1] %v771
    %v774 = vrot.slane %v771, 7
    %v775 = vrot.slane %v774, 2
    %777 = vst [vmem:[#allocation2 + $0x3e] sm:$0x1] %v775
    %778 = vst [vmem:[#allocation2 + $0x1] sm:$0x1] %v607
    %v781 = vunpack.c.l.s4 1983009808
    %v782 = vunpack.c.0.s8 %v781
    %v783 = vlaneseq
    %v784 = vshrl.u32 %v783, 7
    %v785 = vsub.s32 %v782, %v784
    %v786 = vrot.slane %v607, %v785
    %v787 = vrot.slane %v786, 7
    %v788 = vrot.slane %v787, 2
    %790 = vst [vmem:[#allocation2 + $0x3] sm:$0x1] %v788
    %v791 = vcombine.high %v786, %v786
    %793 = vst [vmem:[#allocation2 + $0x5] sm:$0x1] %v791
    %v794 = vrot.slane %v791, 7
    %v795 = vrot.slane %v794, 2
    %797 = vst [vmem:[#allocation2 + $0x7] sm:$0x1] %v795
    %v798 = vcombine.high %v607, %v607
    %v800 = vunpack.c.l.s4 1983009808
    %v801 = vunpack.c.0.s8 %v800
    %v802 = vlaneseq
    %v803 = vshrl.u32 %v802, 7
    %v804 = vsub.s32 %v801, %v803
    %v805 = vrot.slane %v798, %v804
    %807 = vst [vmem:[#allocation2 + $0x9] sm:$0x1] %v805
    %v808 = vrot.slane %v805, 7
    %v809 = vrot.slane %v808, 2
    %811 = vst [vmem:[#allocation2 + $0xb] sm:$0x1] %v809
    %v812 = vcombine.high %v805, %v805
    %814 = vst [vmem:[#allocation2 + $0xd] sm:$0x1] %v812
    %v815 = vrot.slane %v812, 7
    %v816 = vrot.slane %v815, 2
    %818 = vst [vmem:[#allocation2 + $0xf] sm:$0x1] %v816
    %819 = vst [vmem:[#allocation2 + $0x11] sm:$0x1] %v609
    %v822 = vunpack.c.l.s4 1983009808
    %v823 = vunpack.c.0.s8 %v822
    %v824 = vlaneseq
    %v825 = vshrl.u32 %v824, 7
    %v826 = vsub.s32 %v823, %v825
    %v827 = vrot.slane %v609, %v826
    %v828 = vrot.slane %v827, 7
    %v829 = vrot.slane %v828, 2
    %831 = vst [vmem:[#allocation2 + $0x13] sm:$0x1] %v829
    %v832 = vcombine.high %v827, %v827
    %834 = vst [vmem:[#allocation2 + $0x15] sm:$0x1] %v832
    %v835 = vrot.slane %v832, 7
    %v836 = vrot.slane %v835, 2
    %838 = vst [vmem:[#allocation2 + $0x17] sm:$0x1] %v836
    %v839 = vcombine.high %v609, %v609
    %v841 = vunpack.c.l.s4 1983009808
    %v842 = vunpack.c.0.s8 %v841
    %v843 = vlaneseq
    %v844 = vshrl.u32 %v843, 7
    %v845 = vsub.s32 %v842, %v844
    %v846 = vrot.slane %v839, %v845
    %848 = vst [vmem:[#allocation2 + $0x19] sm:$0x1] %v846
    %v849 = vrot.slane %v846, 7
    %v850 = vrot.slane %v849, 2
    %852 = vst [vmem:[#allocation2 + $0x1b] sm:$0x1] %v850
    %v853 = vcombine.high %v846, %v846
    %855 = vst [vmem:[#allocation2 + $0x1d] sm:$0x1] %v853
    %v856 = vrot.slane %v853, 7
    %v857 = vrot.slane %v856, 2
    %859 = vst [vmem:[#allocation2 + $0x1f] sm:$0x1] %v857
    %860 = vst [vmem:[#allocation2 + $0x21] sm:$0x1] %v611
    %v863 = vunpack.c.l.s4 1983009808
    %v864 = vunpack.c.0.s8 %v863
    %v865 = vlaneseq
    %v866 = vshrl.u32 %v865, 7
    %v867 = vsub.s32 %v864, %v866
    %v868 = vrot.slane %v611, %v867
    %v869 = vrot.slane %v868, 7
    %v870 = vrot.slane %v869, 2
    %872 = vst [vmem:[#allocation2 + $0x23] sm:$0x1] %v870
    %v873 = vcombine.high %v868, %v868
    %875 = vst [vmem:[#allocation2 + $0x25] sm:$0x1] %v873
    %v876 = vrot.slane %v873, 7
    %v877 = vrot.slane %v876, 2
    %879 = vst [vmem:[#allocation2 + $0x27] sm:$0x1] %v877
    %v880 = vcombine.high %v611, %v611
    %v882 = vunpack.c.l.s4 1983009808
    %v883 = vunpack.c.0.s8 %v882
    %v884 = vlaneseq
    %v885 = vshrl.u32 %v884, 7
    %v886 = vsub.s32 %v883, %v885
    %v887 = vrot.slane %v880, %v886
    %889 = vst [vmem:[#allocation2 + $0x29] sm:$0x1] %v887
    %v890 = vrot.slane %v887, 7
    %v891 = vrot.slane %v890, 2
    %893 = vst [vmem:[#allocation2 + $0x2b] sm:$0x1] %v891
    %v894 = vcombine.high %v887, %v887
    %896 = vst [vmem:[#allocation2 + $0x2d] sm:$0x1] %v894
    %v897 = vrot.slane %v894, 7
    %v898 = vrot.slane %v897, 2
    %900 = vst [vmem:[#allocation2 + $0x2f] sm:$0x1] %v898
    %901 = vst [vmem:[#allocation2 + $0x31] sm:$0x1] %v613
    %v904 = vunpack.c.l.s4 1983009808
    %v905 = vunpack.c.0.s8 %v904
    %v906 = vlaneseq
    %v907 = vshrl.u32 %v906, 7
    %v908 = vsub.s32 %v905, %v907
    %v909 = vrot.slane %v613, %v908
    %v910 = vrot.slane %v909, 7
    %v911 = vrot.slane %v910, 2
    %913 = vst [vmem:[#allocation2 + $0x33] sm:$0x1] %v911
    %v914 = vcombine.high %v909, %v909
    %916 = vst [vmem:[#allocation2 + $0x35] sm:$0x1] %v914
    %v917 = vrot.slane %v914, 7
    %v918 = vrot.slane %v917, 2
    %920 = vst [vmem:[#allocation2 + $0x37] sm:$0x1] %v918
    %v921 = vcombine.high %v613, %v613
    %v923 = vunpack.c.l.s4 1983009808
    %v924 = vunpack.c.0.s8 %v923
    %v925 = vlaneseq
    %v926 = vshrl.u32 %v925, 7
    %v927 = vsub.s32 %v924, %v926
    %v928 = vrot.slane %v921, %v927
    %930 = vst [vmem:[#allocation2 + $0x39] sm:$0x1] %v928
    %v931 = vrot.slane %v928, 7
    %v932 = vrot.slane %v931, 2
    %934 = vst [vmem:[#allocation2 + $0x3b] sm:$0x1] %v932
    %v935 = vcombine.high %v928, %v928
    %937 = vst [vmem:[#allocation2 + $0x3d] sm:$0x1] %v935
    %v938 = vrot.slane %v935, 7
    %v939 = vrot.slane %v938, 2
    %941 = vst [vmem:[#allocation2 + $0x3f] sm:$0x1] %v939
    %v942 = vld [vmem:[#allocation2] sm:$0xff]
    %v943 = vld [vmem:[#allocation2 + $0x8] sm:$0xff]
    %v944 = vld [vmem:[#allocation2 + $0x10] sm:$0xff]
    %v945 = vld [vmem:[#allocation2 + $0x18] sm:$0xff]
    %v946 = vld [vmem:[#allocation2 + $0x20] sm:$0xff]
    %v947 = vld [vmem:[#allocation2 + $0x28] sm:$0xff]
    %v948 = vld [vmem:[#allocation2 + $0x30] sm:$0xff]
    %v949 = vld [vmem:[#allocation2 + $0x38] sm:$0xff]
    %v958 = vcombine.high %v942, %v942
    %v960 = vunpack.c.l.s4 1983009808
    %v961 = vunpack.c.0.s8 %v960
    %v962 = vlaneseq
    %v963 = vshrl.u32 %v962, 7
    %v964 = vsub.s32 %v961, %v963
    %v965 = vrot.slane %v942, %v964
    %v967 = vunpack.c.l.s4 1983009808
    %v968 = vunpack.c.0.s8 %v967
    %v969 = vlaneseq
    %v970 = vshrl.u32 %v969, 7
    %v971 = vsub.s32 %v968, %v970
    %v972 = vrot.slane %v958, %v971
    %v973 = vcombine.high %v965, %v965
    %v974 = vcombine.high %v972, %v972
    %v975 = vcombine.high %v943, %v943
    %v977 = vunpack.c.l.s4 1983009808
    %v978 = vunpack.c.0.s8 %v977
    %v979 = vlaneseq
    %v980 = vshrl.u32 %v979, 7
    %v981 = vsub.s32 %v978, %v980
    %v982 = vrot.slane %v943, %v981
    %v984 = vunpack.c.l.s4 1983009808
    %v985 = vunpack.c.0.s8 %v984
    %v986 = vlaneseq
    %v987 = vshrl.u32 %v986, 7
    %v988 = vsub.s32 %v985, %v987
    %v989 = vrot.slane %v975, %v988
    %v990 = vcombine.high %v982, %v982
    %v991 = vcombine.high %v989, %v989
    %v992 = vcombine.high %v944, %v944
    %v994 = vunpack.c.l.s4 1983009808
    %v995 = vunpack.c.0.s8 %v994
    %v996 = vlaneseq
    %v997 = vshrl.u32 %v996, 7
    %v998 = vsub.s32 %v995, %v997
    %v999 = vrot.slane %v944, %v998
    %v1001 = vunpack.c.l.s4 1983009808
    %v1002 = vunpack.c.0.s8 %v1001
    %v1003 = vlaneseq
    %v1004 = vshrl.u32 %v1003, 7
    %v1005 = vsub.s32 %v1002, %v1004
    %v1006 = vrot.slane %v992, %v1005
    %v1007 = vcombine.high %v999, %v999
    %v1008 = vcombine.high %v1006, %v1006
    %v1009 = vcombine.high %v945, %v945
    %v1011 = vunpack.c.l.s4 1983009808
    %v1012 = vunpack.c.0.s8 %v1011
    %v1013 = vlaneseq
    %v1014 = vshrl.u32 %v1013, 7
    %v1015 = vsub.s32 %v1012, %v1014
    %v1016 = vrot.slane %v945, %v1015
    %v1018 = vunpack.c.l.s4 1983009808
    %v1019 = vunpack.c.0.s8 %v1018
    %v1020 = vlaneseq
    %v1021 = vshrl.u32 %v1020, 7
    %v1022 = vsub.s32 %v1019, %v1021
    %v1023 = vrot.slane %v1009, %v1022
    %v1024 = vcombine.high %v1016, %v1016
    %v1025 = vcombine.high %v1023, %v1023
    %v1026 = vcombine.high %v946, %v946
    %v1028 = vunpack.c.l.s4 1983009808
    %v1029 = vunpack.c.0.s8 %v1028
    %v1030 = vlaneseq
    %v1031 = vshrl.u32 %v1030, 7
    %v1032 = vsub.s32 %v1029, %v1031
    %v1033 = vrot.slane %v946, %v1032
    %v1035 = vunpack.c.l.s4 1983009808
    %v1036 = vunpack.c.0.s8 %v1035
    %v1037 = vlaneseq
    %v1038 = vshrl.u32 %v1037, 7
    %v1039 = vsub.s32 %v1036, %v1038
    %v1040 = vrot.slane %v1026, %v1039
    %v1041 = vcombine.high %v1033, %v1033
    %v1042 = vcombine.high %v1040, %v1040
    %v1043 = vcombine.high %v947, %v947
    %v1045 = vunpack.c.l.s4 1983009808
    %v1046 = vunpack.c.0.s8 %v1045
    %v1047 = vlaneseq
    %v1048 = vshrl.u32 %v1047, 7
    %v1049 = vsub.s32 %v1046, %v1048
    %v1050 = vrot.slane %v947, %v1049
    %v1052 = vunpack.c.l.s4 1983009808
    %v1053 = vunpack.c.0.s8 %v1052
    %v1054 = vlaneseq
    %v1055 = vshrl.u32 %v1054, 7
    %v1056 = vsub.s32 %v1053, %v1055
    %v1057 = vrot.slane %v1043, %v1056
    %v1058 = vcombine.high %v1050, %v1050
    %v1059 = vcombine.high %v1057, %v1057
    %v1060 = vcombine.high %v948, %v948
    %v1062 = vunpack.c.l.s4 1983009808
    %v1063 = vunpack.c.0.s8 %v1062
    %v1064 = vlaneseq
    %v1065 = vshrl.u32 %v1064, 7
    %v1066 = vsub.s32 %v1063, %v1065
    %v1067 = vrot.slane %v948, %v1066
    %v1069 = vunpack.c.l.s4 1983009808
    %v1070 = vunpack.c.0.s8 %v1069
    %v1071 = vlaneseq
    %v1072 = vshrl.u32 %v1071, 7
    %v1073 = vsub.s32 %v1070, %v1072
    %v1074 = vrot.slane %v1060, %v1073
    %v1075 = vcombine.high %v1067, %v1067
    %v1076 = vcombine.high %v1074, %v1074
    %v1077 = vcombine.high %v949, %v949
    %v1079 = vunpack.c.l.s4 1983009808
    %v1080 = vunpack.c.0.s8 %v1079
    %v1081 = vlaneseq
    %v1082 = vshrl.u32 %v1081, 7
    %v1083 = vsub.s32 %v1080, %v1082
    %v1084 = vrot.slane %v949, %v1083
    %v1086 = vunpack.c.l.s4 1983009808
    %v1087 = vunpack.c.0.s8 %v1086
    %v1088 = vlaneseq
    %v1089 = vshrl.u32 %v1088, 7
    %v1090 = vsub.s32 %v1087, %v1089
    %v1091 = vrot.slane %v1077, %v1090
    %v1092 = vcombine.high %v1084, %v1084
    %v1093 = vcombine.high %v1091, %v1091
    %v1126 = vpack.c.bf16 %v965, %v965
    %v1127 = vpack.c.bf16 %v973, %v973
    %v1128 = vpack.c.bf16 %v972, %v972
    %v1129 = vpack.c.bf16 %v974, %v974
    %v1130 = vpack.c.bf16 %v982, %v982
    %v1131 = vpack.c.bf16 %v990, %v990
    %v1132 = vpack.c.bf16 %v989, %v989
    %v1133 = vpack.c.bf16 %v991, %v991
    %v1134 = vpack.c.bf16 %v999, %v999
    %v1135 = vpack.c.bf16 %v1007, %v1007
    %v1136 = vpack.c.bf16 %v1006, %v1006
    %v1137 = vpack.c.bf16 %v1008, %v1008
    %v1138 = vpack.c.bf16 %v1016, %v1016
    %v1139 = vpack.c.bf16 %v1024, %v1024
    %v1140 = vpack.c.bf16 %v1023, %v1023
    %v1141 = vpack.c.bf16 %v1025, %v1025
    %v1142 = vpack.c.bf16 %v1033, %v1033
    %v1143 = vpack.c.bf16 %v1041, %v1041
    %v1144 = vpack.c.bf16 %v1040, %v1040
    %v1145 = vpack.c.bf16 %v1042, %v1042
    %v1146 = vpack.c.bf16 %v1050, %v1050
    %v1147 = vpack.c.bf16 %v1058, %v1058
    %v1148 = vpack.c.bf16 %v1057, %v1057
    %v1149 = vpack.c.bf16 %v1059, %v1059
    %v1150 = vpack.c.bf16 %v1067, %v1067
    %v1151 = vpack.c.bf16 %v1075, %v1075
    %v1152 = vpack.c.bf16 %v1074, %v1074
    %v1153 = vpack.c.bf16 %v1076, %v1076
    %v1154 = vpack.c.bf16 %v1084, %v1084
    %v1155 = vpack.c.bf16 %v1092, %v1092
    %v1156 = vpack.c.bf16 %v1091, %v1091
    %v1157 = vpack.c.bf16 %v1093, %v1093
    %v1158 = vld [vmem:[#allocation4] sm:$0xff]
    %v1159 = vld [vmem:[#allocation4 + $0x8] sm:$0xff]
    %v1160 = vld [vmem:[#allocation4 + $0x10] sm:$0xff]
    %v1161 = vld [vmem:[#allocation4 + $0x18] sm:$0xff]
    %v1162 = vld [vmem:[#allocation4 + $0x20] sm:$0xff]
    %v1163 = vld [vmem:[#allocation4 + $0x28] sm:$0xff]
    %v1164 = vld [vmem:[#allocation4 + $0x30] sm:$0xff]
    %v1165 = vld [vmem:[#allocation4 + $0x38] sm:$0xff]
    %v1166 = vld [vmem:[#allocation4 + $0x40] sm:$0xff]
    %v1167 = vld [vmem:[#allocation4 + $0x48] sm:$0xff]
    %v1168 = vld [vmem:[#allocation4 + $0x50] sm:$0xff]
    %v1169 = vld [vmem:[#allocation4 + $0x58] sm:$0xff]
    %v1170 = vld [vmem:[#allocation4 + $0x60] sm:$0xff]
    %v1171 = vld [vmem:[#allocation4 + $0x68] sm:$0xff]
    %v1172 = vld [vmem:[#allocation4 + $0x70] sm:$0xff]
    %v1173 = vld [vmem:[#allocation4 + $0x78] sm:$0xff]
    %v1174 = vld [vmem:[#allocation4 + $0x80] sm:$0xff]
    %v1175 = vld [vmem:[#allocation4 + $0x88] sm:$0xff]
    %v1176 = vld [vmem:[#allocation4 + $0x90] sm:$0xff]
    %v1177 = vld [vmem:[#allocation4 + $0x98] sm:$0xff]
    %v1178 = vld [vmem:[#allocation4 + $0xa0] sm:$0xff]
    %v1179 = vld [vmem:[#allocation4 + $0xa8] sm:$0xff]
    %v1180 = vld [vmem:[#allocation4 + $0xb0] sm:$0xff]
    %v1181 = vld [vmem:[#allocation4 + $0xb8] sm:$0xff]
    %v1182 = vld [vmem:[#allocation4 + $0xc0] sm:$0xff]
    %v1183 = vld [vmem:[#allocation4 + $0xc8] sm:$0xff]
    %v1184 = vld [vmem:[#allocation4 + $0xd0] sm:$0xff]
    %v1185 = vld [vmem:[#allocation4 + $0xd8] sm:$0xff]
    %v1186 = vld [vmem:[#allocation4 + $0xe0] sm:$0xff]
    %v1187 = vld [vmem:[#allocation4 + $0xe8] sm:$0xff]
    %v1188 = vld [vmem:[#allocation4 + $0xf0] sm:$0xff]
    %v1189 = vld [vmem:[#allocation4 + $0xf8] sm:$0xff]
    %v1190 = vld [vmem:[#allocation4 + $0x100] sm:$0xff]
    %v1191 = vld [vmem:[#allocation4 + $0x108] sm:$0xff]
    %v1192 = vld [vmem:[#allocation4 + $0x110] sm:$0xff]
    %v1193 = vld [vmem:[#allocation4 + $0x118] sm:$0xff]
    %v1194 = vld [vmem:[#allocation4 + $0x120] sm:$0xff]
    %v1195 = vld [vmem:[#allocation4 + $0x128] sm:$0xff]
    %v1196 = vld [vmem:[#allocation4 + $0x130] sm:$0xff]
    %v1197 = vld [vmem:[#allocation4 + $0x138] sm:$0xff]
    %v1198 = vld [vmem:[#allocation4 + $0x140] sm:$0xff]
    %v1199 = vld [vmem:[#allocation4 + $0x148] sm:$0xff]
    %v1200 = vld [vmem:[#allocation4 + $0x150] sm:$0xff]
    %v1201 = vld [vmem:[#allocation4 + $0x158] sm:$0xff]
    %v1202 = vld [vmem:[#allocation4 + $0x160] sm:$0xff]
    %v1203 = vld [vmem:[#allocation4 + $0x168] sm:$0xff]
    %v1204 = vld [vmem:[#allocation4 + $0x170] sm:$0xff]
    %v1205 = vld [vmem:[#allocation4 + $0x178] sm:$0xff]
    %v1206 = vld [vmem:[#allocation4 + $0x180] sm:$0xff]
    %v1207 = vld [vmem:[#allocation4 + $0x188] sm:$0xff]
    %v1208 = vld [vmem:[#allocation4 + $0x190] sm:$0xff]
    %v1209 = vld [vmem:[#allocation4 + $0x198] sm:$0xff]
    %v1210 = vld [vmem:[#allocation4 + $0x1a0] sm:$0xff]
    %v1211 = vld [vmem:[#allocation4 + $0x1a8] sm:$0xff]
    %v1212 = vld [vmem:[#allocation4 + $0x1b0] sm:$0xff]
    %v1213 = vld [vmem:[#allocation4 + $0x1b8] sm:$0xff]
    %v1214 = vld [vmem:[#allocation4 + $0x1c0] sm:$0xff]
    %v1215 = vld [vmem:[#allocation4 + $0x1c8] sm:$0xff]
    %v1216 = vld [vmem:[#allocation4 + $0x1d0] sm:$0xff]
    %v1217 = vld [vmem:[#allocation4 + $0x1d8] sm:$0xff]
    %v1218 = vld [vmem:[#allocation4 + $0x1e0] sm:$0xff]
    %v1219 = vld [vmem:[#allocation4 + $0x1e8] sm:$0xff]
    %v1220 = vld [vmem:[#allocation4 + $0x1f0] sm:$0xff]
    %v1221 = vld [vmem:[#allocation4 + $0x1f8] sm:$0xff]
    %v1222 = vld [vmem:[%s6] sm:$0x1]
    %v1224 = vlaneseq
    %v1225 = vshrl.u32 %v1224, 7
    %v1226 = vsub.s32 0, %v1225
    %v1227 = vrot.slane %v1222, %v1226
    %v1293 = vunpack.c.l.b16 %v1158
    %v1294 = vunpack.c.h.b16 %v1158
    %v1295 = vunpack.c.l.b16 %v1159
    %v1296 = vunpack.c.h.b16 %v1159
    %v1297 = vunpack.c.l.b16 %v1160
    %v1298 = vunpack.c.h.b16 %v1160
    %v1299 = vunpack.c.l.b16 %v1161
    %v1300 = vunpack.c.h.b16 %v1161
    %v1301 = vunpack.c.l.b16 %v1162
    %v1302 = vunpack.c.h.b16 %v1162
    %v1303 = vunpack.c.l.b16 %v1163
    %v1304 = vunpack.c.h.b16 %v1163
    %v1305 = vunpack.c.l.b16 %v1164
    %v1306 = vunpack.c.h.b16 %v1164
    %v1307 = vunpack.c.l.b16 %v1165
    %v1308 = vunpack.c.h.b16 %v1165
    %v1309 = vunpack.c.l.b16 %v1166
    %v1310 = vunpack.c.h.b16 %v1166
    %v1311 = vunpack.c.l.b16 %v1167
    %v1312 = vunpack.c.h.b16 %v1167
    %v1313 = vunpack.c.l.b16 %v1168
    %v1314 = vunpack.c.h.b16 %v1168
    %v1315 = vunpack.c.l.b16 %v1169
    %v1316 = vunpack.c.h.b16 %v1169
    %v1317 = vunpack.c.l.b16 %v1170
    %v1318 = vunpack.c.h.b16 %v1170
    %v1319 = vunpack.c.l.b16 %v1171
    %v1320 = vunpack.c.h.b16 %v1171
    %v1321 = vunpack.c.l.b16 %v1172
    %v1322 = vunpack.c.h.b16 %v1172
    %v1323 = vunpack.c.l.b16 %v1173
    %v1324 = vunpack.c.h.b16 %v1173
    %v1325 = vunpack.c.l.b16 %v1174
    %v1326 = vunpack.c.h.b16 %v1174
    %v1327 = vunpack.c.l.b16 %v1175
    %v1328 = vunpack.c.h.b16 %v1175
    %v1329 = vunpack.c.l.b16 %v1176
    %v1330 = vunpack.c.h.b16 %v1176
    %v1331 = vunpack.c.l.b16 %v1177
    %v1332 = vunpack.c.h.b16 %v1177
    %v1333 = vunpack.c.l.b16 %v1178
    %v1334 = vunpack.c.h.b16 %v1178
    %v1335 = vunpack.c.l.b16 %v1179
    %v1336 = vunpack.c.h.b16 %v1179
    %v1337 = vunpack.c.l.b16 %v1180
    %v1338 = vunpack.c.h.b16 %v1180
    %v1339 = vunpack.c.l.b16 %v1181
    %v1340 = vunpack.c.h.b16 %v1181
    %v1341 = vunpack.c.l.b16 %v1182
    %v1342 = vunpack.c.h.b16 %v1182
    %v1343 = vunpack.c.l.b16 %v1183
    %v1344 = vunpack.c.h.b16 %v1183
    %v1345 = vunpack.c.l.b16 %v1184
    %v1346 = vunpack.c.h.b16 %v1184
    %v1347 = vunpack.c.l.b16 %v1185
    %v1348 = vunpack.c.h.b16 %v1185
    %v1349 = vunpack.c.l.b16 %v1186
    %v1350 = vunpack.c.h.b16 %v1186
    %v1351 = vunpack.c.l.b16 %v1187
    %v1352 = vunpack.c.h.b16 %v1187
    %v1353 = vunpack.c.l.b16 %v1188
    %v1354 = vunpack.c.h.b16 %v1188
    %v1355 = vunpack.c.l.b16 %v1189
    %v1356 = vunpack.c.h.b16 %v1189
    %v1357 = vunpack.c.l.b16 %v1190
    %v1358 = vunpack.c.h.b16 %v1190
    %v1359 = vunpack.c.l.b16 %v1191
    %v1360 = vunpack.c.h.b16 %v1191
    %v1361 = vunpack.c.l.b16 %v1192
    %v1362 = vunpack.c.h.b16 %v1192
    %v1363 = vunpack.c.l.b16 %v1193
    %v1364 = vunpack.c.h.b16 %v1193
    %v1365 = vunpack.c.l.b16 %v1194
    %v1366 = vunpack.c.h.b16 %v1194
    %v1367 = vunpack.c.l.b16 %v1195
    %v1368 = vunpack.c.h.b16 %v1195
    %v1369 = vunpack.c.l.b16 %v1196
    %v1370 = vunpack.c.h.b16 %v1196
    %v1371 = vunpack.c.l.b16 %v1197
    %v1372 = vunpack.c.h.b16 %v1197
    %v1373 = vunpack.c.l.b16 %v1198
    %v1374 = vunpack.c.h.b16 %v1198
    %v1375 = vunpack.c.l.b16 %v1199
    %v1376 = vunpack.c.h.b16 %v1199
    %v1377 = vunpack.c.l.b16 %v1200
    %v1378 = vunpack.c.h.b16 %v1200
    %v1379 = vunpack.c.l.b16 %v1201
    %v1380 = vunpack.c.h.b16 %v1201
    %v1381 = vunpack.c.l.b16 %v1202
    %v1382 = vunpack.c.h.b16 %v1202
    %v1383 = vunpack.c.l.b16 %v1203
    %v1384 = vunpack.c.h.b16 %v1203
    %v1385 = vunpack.c.l.b16 %v1204
    %v1386 = vunpack.c.h.b16 %v1204
    %v1387 = vunpack.c.l.b16 %v1205
    %v1388 = vunpack.c.h.b16 %v1205
    %v1389 = vunpack.c.l.b16 %v1206
    %v1390 = vunpack.c.h.b16 %v1206
    %v1391 = vunpack.c.l.b16 %v1207
    %v1392 = vunpack.c.h.b16 %v1207
    %v1393 = vunpack.c.l.b16 %v1208
    %v1394 = vunpack.c.h.b16 %v1208
    %v1395 = vunpack.c.l.b16 %v1209
    %v1396 = vunpack.c.h.b16 %v1209
    %v1397 = vunpack.c.l.b16 %v1210
    %v1398 = vunpack.c.h.b16 %v1210
    %v1399 = vunpack.c.l.b16 %v1211
    %v1400 = vunpack.c.h.b16 %v1211
    %v1401 = vunpack.c.l.b16 %v1212
    %v1402 = vunpack.c.h.b16 %v1212
    %v1403 = vunpack.c.l.b16 %v1213
    %v1404 = vunpack.c.h.b16 %v1213
    %v1405 = vunpack.c.l.b16 %v1214
    %v1406 = vunpack.c.h.b16 %v1214
    %v1407 = vunpack.c.l.b16 %v1215
    %v1408 = vunpack.c.h.b16 %v1215
    %v1409 = vunpack.c.l.b16 %v1216
    %v1410 = vunpack.c.h.b16 %v1216
    %v1411 = vunpack.c.l.b16 %v1217
    %v1412 = vunpack.c.h.b16 %v1217
    %v1413 = vunpack.c.l.b16 %v1218
    %v1414 = vunpack.c.h.b16 %v1218
    %v1415 = vunpack.c.l.b16 %v1219
    %v1416 = vunpack.c.h.b16 %v1219
    %v1417 = vunpack.c.l.b16 %v1220
    %v1418 = vunpack.c.h.b16 %v1220
    %v1419 = vunpack.c.l.b16 %v1221
    %v1420 = vunpack.c.h.b16 %v1221
    %v1421 = vpack.c.b16 %v1325, %v1293
    %v1422 = vpack.c.b16 %v1326, %v1294
    %v1423 = vpack.c.b16 %v1327, %v1295
    %v1424 = vpack.c.b16 %v1328, %v1296
    %v1425 = vpack.c.b16 %v1329, %v1297
    %v1426 = vpack.c.b16 %v1330, %v1298
    %v1427 = vpack.c.b16 %v1331, %v1299
    %v1428 = vpack.c.b16 %v1332, %v1300
    %v1429 = vpack.c.b16 %v1333, %v1301
    %v1430 = vpack.c.b16 %v1334, %v1302
    %v1431 = vpack.c.b16 %v1335, %v1303
    %v1432 = vpack.c.b16 %v1336, %v1304
    %v1433 = vpack.c.b16 %v1337, %v1305
    %v1434 = vpack.c.b16 %v1338, %v1306
    %v1435 = vpack.c.b16 %v1339, %v1307
    %v1436 = vpack.c.b16 %v1340, %v1308
    %v1437 = vpack.c.b16 %v1341, %v1309
    %v1438 = vpack.c.b16 %v1342, %v1310
    %v1439 = vpack.c.b16 %v1343, %v1311
    %v1440 = vpack.c.b16 %v1344, %v1312
    %v1441 = vpack.c.b16 %v1345, %v1313
    %v1442 = vpack.c.b16 %v1346, %v1314
    %v1443 = vpack.c.b16 %v1347, %v1315
    %v1444 = vpack.c.b16 %v1348, %v1316
    %v1445 = vpack.c.b16 %v1349, %v1317
    %v1446 = vpack.c.b16 %v1350, %v1318
    %v1447 = vpack.c.b16 %v1351, %v1319
    %v1448 = vpack.c.b16 %v1352, %v1320
    %v1449 = vpack.c.b16 %v1353, %v1321
    %v1450 = vpack.c.b16 %v1354, %v1322
    %v1451 = vpack.c.b16 %v1355, %v1323
    %v1452 = vpack.c.b16 %v1356, %v1324
    %v1453 = vpack.c.b16 %v1389, %v1357
    %v1454 = vpack.c.b16 %v1390, %v1358
    %v1455 = vpack.c.b16 %v1391, %v1359
    %v1456 = vpack.c.b16 %v1392, %v1360
    %v1457 = vpack.c.b16 %v1393, %v1361
    %v1458 = vpack.c.b16 %v1394, %v1362
    %v1459 = vpack.c.b16 %v1395, %v1363
    %v1460 = vpack.c.b16 %v1396, %v1364
    %v1461 = vpack.c.b16 %v1397, %v1365
    %v1462 = vpack.c.b16 %v1398, %v1366
    %v1463 = vpack.c.b16 %v1399, %v1367
    %v1464 = vpack.c.b16 %v1400, %v1368
    %v1465 = vpack.c.b16 %v1401, %v1369
    %v1466 = vpack.c.b16 %v1402, %v1370
    %v1467 = vpack.c.b16 %v1403, %v1371
    %v1468 = vpack.c.b16 %v1404, %v1372
    %v1469 = vpack.c.b16 %v1405, %v1373
    %v1470 = vpack.c.b16 %v1406, %v1374
    %v1471 = vpack.c.b16 %v1407, %v1375
    %v1472 = vpack.c.b16 %v1408, %v1376
    %v1473 = vpack.c.b16 %v1409, %v1377
    %v1474 = vpack.c.b16 %v1410, %v1378
    %v1475 = vpack.c.b16 %v1411, %v1379
    %v1476 = vpack.c.b16 %v1412, %v1380
    %v1477 = vpack.c.b16 %v1413, %v1381
    %v1478 = vpack.c.b16 %v1414, %v1382
    %v1479 = vpack.c.b16 %v1415, %v1383
    %v1480 = vpack.c.b16 %v1416, %v1384
    %v1481 = vpack.c.b16 %v1417, %v1385
    %v1482 = vpack.c.b16 %v1418, %v1386
    %v1483 = vpack.c.b16 %v1419, %v1387
    %v1484 = vpack.c.b16 %v1420, %v1388
    %1549 = vmatprep.subr.bf16.mxu0 %v1422
    %1550 = vmatpush1.bf16.xpose.msra.mxu0 %v1421
    %1551 = vmatprep.subr.bf16.mxu0 %v1454
    %1552 = vmatpush1.bf16.xpose.msra.mxu0 %v1453
    %1553 = vmatprep.subr.bf16.mxu0 0
    %1554 = vmatpush1.bf16.xpose.msra.mxu0 0
    %1555 = vmatprep.subr.bf16.mxu0 0
    %1556 = vmatpush1.bf16.xpose.msra.mxu0 0
    %1557 = vmatprep.subr.bf16.mxu0 0
    %1558 = vmatpush1.bf16.xpose.msra.mxu0 0
    %1559 = vmatprep.subr.bf16.mxu0 0
    %1560 = vmatpush1.bf16.xpose.msra.mxu0 0
    %1561 = vmatprep.subr.bf16.mxu0 0
    %1562 = vmatpush1.bf16.xpose.msra.mxu0 0
    %1563 = vmatprep.subr.bf16.mxu0 0
    %1564 = vmatpush1.bf16.xpose.msra.mxu0 0
    %1565 = vmatprep.subr.bf16.mxu0 0
    %1566 = vmatpush1.bf16.xpose.msra.mxu0 0
    %1567 = vmatprep.subr.bf16.mxu0 0
    %1568 = vmatpush1.bf16.xpose.msra.mxu0 0
    %1569 = vmatprep.subr.bf16.mxu0 0
    %1570 = vmatpush1.bf16.xpose.msra.mxu0 0
    %1571 = vmatprep.subr.bf16.mxu0 0
    %1572 = vmatpush1.bf16.xpose.msra.mxu0 0
    %1573 = vmatprep.subr.bf16.mxu0 0
    %1574 = vmatpush1.bf16.xpose.msra.mxu0 0
    %1575 = vmatprep.subr.bf16.mxu0 0
    %1576 = vmatpush1.bf16.xpose.msra.mxu0 0
    %1577 = vmatprep.subr.bf16.mxu0 0
    %1578 = vmatpush1.bf16.xpose.msra.mxu0 0
    %1579 = vmatprep.subr.bf16.mxu0 0
    %1580 = vmatpush1.bf16.xpose.msra.mxu0 0
    %1581 = vmatprep.mubr.bf16.mxu0 %v1127
    %1582 = vmatmul.mubr.bf16.gmra.mrb[0].mxu0 %v1126
    %v1583 = vpop.f32.mrb[0].mxu0
    %v1584 = vadd.f32 %v1227, %v1583
    %v1585 = vpop.f32.mrb[0].mxu0
    %v1586 = vpop.f32.mrb[0].mxu0
    %v1587 = vpop.f32.mrb[0].mxu0
    %1588 = vdwg.mxu0
    %1589 = vmatprep.subr.bf16.mxu0 %v1424
    %1590 = vmatpush1.bf16.xpose.msra.mxu0 %v1423
    %1591 = vmatprep.subr.bf16.mxu0 %v1456
    %1592 = vmatpush1.bf16.xpose.msra.mxu0 %v1455
    %1593 = vmatprep.subr.bf16.mxu0 0
    %1594 = vmatpush1.bf16.xpose.msra.mxu0 0
    %1595 = vmatprep.subr.bf16.mxu0 0
    %1596 = vmatpush1.bf16.xpose.msra.mxu0 0
    %1597 = vmatprep.subr.bf16.mxu0 0
    %1598 = vmatpush1.bf16.xpose.msra.mxu0 0
    %1599 = vmatprep.subr.bf16.mxu0 0
    %1600 = vmatpush1.bf16.xpose.msra.mxu0 0
    %1601 = vmatprep.subr.bf16.mxu0 0
    %1602 = vmatpush1.bf16.xpose.msra.mxu0 0
    %1603 = vmatprep.subr.bf16.mxu0 0
    %1604 = vmatpush1.bf16.xpose.msra.mxu0 0
    %1605 = vmatprep.subr.bf16.mxu0 0
    %1606 = vmatpush1.bf16.xpose.msra.mxu0 0
    %1607 = vmatprep.subr.bf16.mxu0 0
    %1608 = vmatpush1.bf16.xpose.msra.mxu0 0
    %1609 = vmatprep.subr.bf16.mxu0 0
    %1610 = vmatpush1.bf16.xpose.msra.mxu0 0
    %1611 = vmatprep.subr.bf16.mxu0 0
    %1612 = vmatpush1.bf16.xpose.msra.mxu0 0
    %1613 = vmatprep.subr.bf16.mxu0 0
    %1614 = vmatpush1.bf16.xpose.msra.mxu0 0
    %1615 = vmatprep.subr.bf16.mxu0 0
    %1616 = vmatpush1.bf16.xpose.msra.mxu0 0
    %1617 = vmatprep.subr.bf16.mxu0 0
    %1618 = vmatpush1.bf16.xpose.msra.mxu0 0
    %1619 = vmatprep.subr.bf16.mxu0 0
    %1620 = vmatpush1.bf16.xpose.msra.mxu0 0
    %1621 = vmatprep.mubr.bf16.mxu0 %v1129
    %1622 = vmatmul.mubr.bf16.gmra.mrb[0].mxu0 %v1128
    %v1623 = vpop.f32.mrb[0].mxu0
    %v1624 = vadd.f32 %v1584, %v1623
    %v1625 = vpop.f32.mrb[0].mxu0
    %v1626 = vpop.f32.mrb[0].mxu0
    %v1627 = vpop.f32.mrb[0].mxu0
    %1628 = vdwg.mxu0
    %1629 = vmatprep.subr.bf16.mxu0 %v1426
    %1630 = vmatpush1.bf16.xpose.msra.mxu0 %v1425
    %1631 = vmatprep.subr.bf16.mxu0 %v1458
    %1632 = vmatpush1.bf16.xpose.msra.mxu0 %v1457
    %1633 = vmatprep.subr.bf16.mxu0 0
    %1634 = vmatpush1.bf16.xpose.msra.mxu0 0
    %1635 = vmatprep.subr.bf16.mxu0 0
    %1636 = vmatpush1.bf16.xpose.msra.mxu0 0
    %1637 = vmatprep.subr.bf16.mxu0 0
    %1638 = vmatpush1.bf16.xpose.msra.mxu0 0
    %1639 = vmatprep.subr.bf16.mxu0 0
    %1640 = vmatpush1.bf16.xpose.msra.mxu0 0
    %1641 = vmatprep.subr.bf16.mxu0 0
    %1642 = vmatpush1.bf16.xpose.msra.mxu0 0
    %1643 = vmatprep.subr.bf16.mxu0 0
    %1644 = vmatpush1.bf16.xpose.msra.mxu0 0
    %1645 = vmatprep.subr.bf16.mxu0 0
    %1646 = vmatpush1.bf16.xpose.msra.mxu0 0
    %1647 = vmatprep.subr.bf16.mxu0 0
    %1648 = vmatpush1.bf16.xpose.msra.mxu0 0
    %1649 = vmatprep.subr.bf16.mxu0 0
    %1650 = vmatpush1.bf16.xpose.msra.mxu0 0
    %1651 = vmatprep.subr.bf16.mxu0 0
    %1652 = vmatpush1.bf16.xpose.msra.mxu0 0
    %1653 = vmatprep.subr.bf16.mxu0 0
    %1654 = vmatpush1.bf16.xpose.msra.mxu0 0
    %1655 = vmatprep.subr.bf16.mxu0 0
    %1656 = vmatpush1.bf16.xpose.msra.mxu0 0
    %1657 = vmatprep.subr.bf16.mxu0 0
    %1658 = vmatpush1.bf16.xpose.msra.mxu0 0
    %1659 = vmatprep.subr.bf16.mxu0 0
    %1660 = vmatpush1.bf16.xpose.msra.mxu0 0
    %1661 = vmatprep.mubr.bf16.mxu0 %v1131
    %1662 = vmatmul.mubr.bf16.gmra.mrb[0].mxu0 %v1130
    %v1663 = vpop.f32.mrb[0].mxu0
    %v1664 = vadd.f32 %v1624, %v1663
    %v1665 = vpop.f32.mrb[0].mxu0
    %v1666 = vpop.f32.mrb[0].mxu0
    %v1667 = vpop.f32.mrb[0].mxu0
    %1668 = vdwg.mxu0
    %1669 = vmatprep.subr.bf16.mxu0 %v1428
    %1670 = vmatpush1.bf16.xpose.msra.mxu0 %v1427
    %1671 = vmatprep.subr.bf16.mxu0 %v1460
    %1672 = vmatpush1.bf16.xpose.msra.mxu0 %v1459
    %1673 = vmatprep.subr.bf16.mxu0 0
    %1674 = vmatpush1.bf16.xpose.msra.mxu0 0
    %1675 = vmatprep.subr.bf16.mxu0 0
    %1676 = vmatpush1.bf16.xpose.msra.mxu0 0
    %1677 = vmatprep.subr.bf16.mxu0 0
    %1678 = vmatpush1.bf16.xpose.msra.mxu0 0
    %1679 = vmatprep.subr.bf16.mxu0 0
    %1680 = vmatpush1.bf16.xpose.msra.mxu0 0
    %1681 = vmatprep.subr.bf16.mxu0 0
    %1682 = vmatpush1.bf16.xpose.msra.mxu0 0
    %1683 = vmatprep.subr.bf16.mxu0 0
    %1684 = vmatpush1.bf16.xpose.msra.mxu0 0
    %1685 = vmatprep.subr.bf16.mxu0 0
    %1686 = vmatpush1.bf16.xpose.msra.mxu0 0
    %1687 = vmatprep.subr.bf16.mxu0 0
    %1688 = vmatpush1.bf16.xpose.msra.mxu0 0
    %1689 = vmatprep.subr.bf16.mxu0 0
    %1690 = vmatpush1.bf16.xpose.msra.mxu0 0
    %1691 = vmatprep.subr.bf16.mxu0 0
    %1692 = vmatpush1.bf16.xpose.msra.mxu0 0
    %1693 = vmatprep.subr.bf16.mxu0 0
    %1694 = vmatpush1.bf16.xpose.msra.mxu0 0
    %1695 = vmatprep.subr.bf16.mxu0 0
    %1696 = vmatpush1.bf16.xpose.msra.mxu0 0
    %1697 = vmatprep.subr.bf16.mxu0 0
    %1698 = vmatpush1.bf16.xpose.msra.mxu0 0
    %1699 = vmatprep.subr.bf16.mxu0 0
    %1700 = vmatpush1.bf16.xpose.msra.mxu0 0
    %1701 = vmatprep.mubr.bf16.mxu0 %v1133
    %1702 = vmatmul.mubr.bf16.gmra.mrb[0].mxu0 %v1132
    %v1703 = vpop.f32.mrb[0].mxu0
    %v1704 = vadd.f32 %v1664, %v1703
    %v1705 = vpop.f32.mrb[0].mxu0
    %v1706 = vpop.f32.mrb[0].mxu0
    %v1707 = vpop.f32.mrb[0].mxu0
    %1708 = vdwg.mxu0
    %1709 = vmatprep.subr.bf16.mxu0 %v1430
    %1710 = vmatpush1.bf16.xpose.msra.mxu0 %v1429
    %1711 = vmatprep.subr.bf16.mxu0 %v1462
    %1712 = vmatpush1.bf16.xpose.msra.mxu0 %v1461
    %1713 = vmatprep.subr.bf16.mxu0 0
    %1714 = vmatpush1.bf16.xpose.msra.mxu0 0
    %1715 = vmatprep.subr.bf16.mxu0 0
    %1716 = vmatpush1.bf16.xpose.msra.mxu0 0
    %1717 = vmatprep.subr.bf16.mxu0 0
    %1718 = vmatpush1.bf16.xpose.msra.mxu0 0
    %1719 = vmatprep.subr.bf16.mxu0 0
    %1720 = vmatpush1.bf16.xpose.msra.mxu0 0
    %1721 = vmatprep.subr.bf16.mxu0 0
    %1722 = vmatpush1.bf16.xpose.msra.mxu0 0
    %1723 = vmatprep.subr.bf16.mxu0 0
    %1724 = vmatpush1.bf16.xpose.msra.mxu0 0
    %1725 = vmatprep.subr.bf16.mxu0 0
    %1726 = vmatpush1.bf16.xpose.msra.mxu0 0
    %1727 = vmatprep.subr.bf16.mxu0 0
    %1728 = vmatpush1.bf16.xpose.msra.mxu0 0
    %1729 = vmatprep.subr.bf16.mxu0 0
    %1730 = vmatpush1.bf16.xpose.msra.mxu0 0
    %1731 = vmatprep.subr.bf16.mxu0 0
    %1732 = vmatpush1.bf16.xpose.msra.mxu0 0
    %1733 = vmatprep.subr.bf16.mxu0 0
    %1734 = vmatpush1.bf16.xpose.msra.mxu0 0
    %1735 = vmatprep.subr.bf16.mxu0 0
    %1736 = vmatpush1.bf16.xpose.msra.mxu0 0
    %1737 = vmatprep.subr.bf16.mxu0 0
    %1738 = vmatpush1.bf16.xpose.msra.mxu0 0
    %1739 = vmatprep.subr.bf16.mxu0 0
    %1740 = vmatpush1.bf16.xpose.msra.mxu0 0
    %1741 = vmatprep.mubr.bf16.mxu0 %v1135
    %1742 = vmatmul.mubr.bf16.gmra.mrb[0].mxu0 %v1134
    %v1743 = vpop.f32.mrb[0].mxu0
    %v1744 = vadd.f32 %v1704, %v1743
    %v1745 = vpop.f32.mrb[0].mxu0
    %v1746 = vpop.f32.mrb[0].mxu0
    %v1747 = vpop.f32.mrb[0].mxu0
    %1748 = vdwg.mxu0
    %1749 = vmatprep.subr.bf16.mxu0 %v1432
    %1750 = vmatpush1.bf16.xpose.msra.mxu0 %v1431
    %1751 = vmatprep.subr.bf16.mxu0 %v1464
    %1752 = vmatpush1.bf16.xpose.msra.mxu0 %v1463
    %1753 = vmatprep.subr.bf16.mxu0 0
    %1754 = vmatpush1.bf16.xpose.msra.mxu0 0
    %1755 = vmatprep.subr.bf16.mxu0 0
    %1756 = vmatpush1.bf16.xpose.msra.mxu0 0
    %1757 = vmatprep.subr.bf16.mxu0 0
    %1758 = vmatpush1.bf16.xpose.msra.mxu0 0
    %1759 = vmatprep.subr.bf16.mxu0 0
    %1760 = vmatpush1.bf16.xpose.msra.mxu0 0
    %1761 = vmatprep.subr.bf16.mxu0 0
    %1762 = vmatpush1.bf16.xpose.msra.mxu0 0
    %1763 = vmatprep.subr.bf16.mxu0 0
    %1764 = vmatpush1.bf16.xpose.msra.mxu0 0
    %1765 = vmatprep.subr.bf16.mxu0 0
    %1766 = vmatpush1.bf16.xpose.msra.mxu0 0
    %1767 = vmatprep.subr.bf16.mxu0 0
    %1768 = vmatpush1.bf16.xpose.msra.mxu0 0
    %1769 = vmatprep.subr.bf16.mxu0 0
    %1770 = vmatpush1.bf16.xpose.msra.mxu0 0
    %1771 = vmatprep.subr.bf16.mxu0 0
    %1772 = vmatpush1.bf16.xpose.msra.mxu0 0
    %1773 = vmatprep.subr.bf16.mxu0 0
    %1774 = vmatpush1.bf16.xpose.msra.mxu0 0
    %1775 = vmatprep.subr.bf16.mxu0 0
    %1776 = vmatpush1.bf16.xpose.msra.mxu0 0
    %1777 = vmatprep.subr.bf16.mxu0 0
    %1778 = vmatpush1.bf16.xpose.msra.mxu0 0
    %1779 = vmatprep.subr.bf16.mxu0 0
    %1780 = vmatpush1.bf16.xpose.msra.mxu0 0
    %1781 = vmatprep.mubr.bf16.mxu0 %v1137
    %1782 = vmatmul.mubr.bf16.gmra.mrb[0].mxu0 %v1136
    %v1783 = vpop.f32.mrb[0].mxu0
    %v1784 = vadd.f32 %v1744, %v1783
    %v1785 = vpop.f32.mrb[0].mxu0
    %v1786 = vpop.f32.mrb[0].mxu0
    %v1787 = vpop.f32.mrb[0].mxu0
    %1788 = vdwg.mxu0
    %1789 = vmatprep.subr.bf16.mxu0 %v1434
    %1790 = vmatpush1.bf16.xpose.msra.mxu0 %v1433
    %1791 = vmatprep.subr.bf16.mxu0 %v1466
    %1792 = vmatpush1.bf16.xpose.msra.mxu0 %v1465
    %1793 = vmatprep.subr.bf16.mxu0 0
    %1794 = vmatpush1.bf16.xpose.msra.mxu0 0
    %1795 = vmatprep.subr.bf16.mxu0 0
    %1796 = vmatpush1.bf16.xpose.msra.mxu0 0
    %1797 = vmatprep.subr.bf16.mxu0 0
    %1798 = vmatpush1.bf16.xpose.msra.mxu0 0
    %1799 = vmatprep.subr.bf16.mxu0 0
    %1800 = vmatpush1.bf16.xpose.msra.mxu0 0
    %1801 = vmatprep.subr.bf16.mxu0 0
    %1802 = vmatpush1.bf16.xpose.msra.mxu0 0
    %1803 = vmatprep.subr.bf16.mxu0 0
    %1804 = vmatpush1.bf16.xpose.msra.mxu0 0
    %1805 = vmatprep.subr.bf16.mxu0 0
    %1806 = vmatpush1.bf16.xpose.msra.mxu0 0
    %1807 = vmatprep.subr.bf16.mxu0 0
    %1808 = vmatpush1.bf16.xpose.msra.mxu0 0
    %1809 = vmatprep.subr.bf16.mxu0 0
    %1810 = vmatpush1.bf16.xpose.msra.mxu0 0
    %1811 = vmatprep.subr.bf16.mxu0 0
    %1812 = vmatpush1.bf16.xpose.msra.mxu0 0
    %1813 = vmatprep.subr.bf16.mxu0 0
    %1814 = vmatpush1.bf16.xpose.msra.mxu0 0
    %1815 = vmatprep.subr.bf16.mxu0 0
    %1816 = vmatpush1.bf16.xpose.msra.mxu0 0
    %1817 = vmatprep.subr.bf16.mxu0 0
    %1818 = vmatpush1.bf16.xpose.msra.mxu0 0
    %1819 = vmatprep.subr.bf16.mxu0 0
    %1820 = vmatpush1.bf16.xpose.msra.mxu0 0
    %1821 = vmatprep.mubr.bf16.mxu0 %v1139
    %1822 = vmatmul.mubr.bf16.gmra.mrb[0].mxu0 %v1138
    %v1823 = vpop.f32.mrb[0].mxu0
    %v1824 = vadd.f32 %v1784, %v1823
    %v1825 = vpop.f32.mrb[0].mxu0
    %v1826 = vpop.f32.mrb[0].mxu0
    %v1827 = vpop.f32.mrb[0].mxu0
    %1828 = vdwg.mxu0
    %1829 = vmatprep.subr.bf16.mxu0 %v1436
    %1830 = vmatpush1.bf16.xpose.msra.mxu0 %v1435
    %1831 = vmatprep.subr.bf16.mxu0 %v1468
    %1832 = vmatpush1.bf16.xpose.msra.mxu0 %v1467
    %1833 = vmatprep.subr.bf16.mxu0 0
    %1834 = vmatpush1.bf16.xpose.msra.mxu0 0
    %1835 = vmatprep.subr.bf16.mxu0 0
    %1836 = vmatpush1.bf16.xpose.msra.mxu0 0
    %1837 = vmatprep.subr.bf16.mxu0 0
    %1838 = vmatpush1.bf16.xpose.msra.mxu0 0
    %1839 = vmatprep.subr.bf16.mxu0 0
    %1840 = vmatpush1.bf16.xpose.msra.mxu0 0
    %1841 = vmatprep.subr.bf16.mxu0 0
    %1842 = vmatpush1.bf16.xpose.msra.mxu0 0
    %1843 = vmatprep.subr.bf16.mxu0 0
    %1844 = vmatpush1.bf16.xpose.msra.mxu0 0
    %1845 = vmatprep.subr.bf16.mxu0 0
    %1846 = vmatpush1.bf16.xpose.msra.mxu0 0
    %1847 = vmatprep.subr.bf16.mxu0 0
    %1848 = vmatpush1.bf16.xpose.msra.mxu0 0
    %1849 = vmatprep.subr.bf16.mxu0 0
    %1850 = vmatpush1.bf16.xpose.msra.mxu0 0
    %1851 = vmatprep.subr.bf16.mxu0 0
    %1852 = vmatpush1.bf16.xpose.msra.mxu0 0
    %1853 = vmatprep.subr.bf16.mxu0 0
    %1854 = vmatpush1.bf16.xpose.msra.mxu0 0
    %1855 = vmatprep.subr.bf16.mxu0 0
    %1856 = vmatpush1.bf16.xpose.msra.mxu0 0
    %1857 = vmatprep.subr.bf16.mxu0 0
    %1858 = vmatpush1.bf16.xpose.msra.mxu0 0
    %1859 = vmatprep.subr.bf16.mxu0 0
    %1860 = vmatpush1.bf16.xpose.msra.mxu0 0
    %1861 = vmatprep.mubr.bf16.mxu0 %v1141
    %1862 = vmatmul.mubr.bf16.gmra.mrb[0].mxu0 %v1140
    %v1863 = vpop.f32.mrb[0].mxu0
    %v1864 = vadd.f32 %v1824, %v1863
    %v1865 = vpop.f32.mrb[0].mxu0
    %v1866 = vpop.f32.mrb[0].mxu0
    %v1867 = vpop.f32.mrb[0].mxu0
    %1868 = vdwg.mxu0
    %1869 = vmatprep.subr.bf16.mxu0 %v1438
    %1870 = vmatpush1.bf16.xpose.msra.mxu0 %v1437
    %1871 = vmatprep.subr.bf16.mxu0 %v1470
    %1872 = vmatpush1.bf16.xpose.msra.mxu0 %v1469
    %1873 = vmatprep.subr.bf16.mxu0 0
    %1874 = vmatpush1.bf16.xpose.msra.mxu0 0
    %1875 = vmatprep.subr.bf16.mxu0 0
    %1876 = vmatpush1.bf16.xpose.msra.mxu0 0
    %1877 = vmatprep.subr.bf16.mxu0 0
    %1878 = vmatpush1.bf16.xpose.msra.mxu0 0
    %1879 = vmatprep.subr.bf16.mxu0 0
    %1880 = vmatpush1.bf16.xpose.msra.mxu0 0
    %1881 = vmatprep.subr.bf16.mxu0 0
    %1882 = vmatpush1.bf16.xpose.msra.mxu0 0
    %1883 = vmatprep.subr.bf16.mxu0 0
    %1884 = vmatpush1.bf16.xpose.msra.mxu0 0
    %1885 = vmatprep.subr.bf16.mxu0 0
    %1886 = vmatpush1.bf16.xpose.msra.mxu0 0
    %1887 = vmatprep.subr.bf16.mxu0 0
    %1888 = vmatpush1.bf16.xpose.msra.mxu0 0
    %1889 = vmatprep.subr.bf16.mxu0 0
    %1890 = vmatpush1.bf16.xpose.msra.mxu0 0
    %1891 = vmatprep.subr.bf16.mxu0 0
    %1892 = vmatpush1.bf16.xpose.msra.mxu0 0
    %1893 = vmatprep.subr.bf16.mxu0 0
    %1894 = vmatpush1.bf16.xpose.msra.mxu0 0
    %1895 = vmatprep.subr.bf16.mxu0 0
    %1896 = vmatpush1.bf16.xpose.msra.mxu0 0
    %1897 = vmatprep.subr.bf16.mxu0 0
    %1898 = vmatpush1.bf16.xpose.msra.mxu0 0
    %1899 = vmatprep.subr.bf16.mxu0 0
    %1900 = vmatpush1.bf16.xpose.msra.mxu0 0
    %1901 = vmatprep.mubr.bf16.mxu0 %v1143
    %1902 = vmatmul.mubr.bf16.gmra.mrb[0].mxu0 %v1142
    %v1903 = vpop.f32.mrb[0].mxu0
    %v1904 = vadd.f32 %v1864, %v1903
    %v1905 = vpop.f32.mrb[0].mxu0
    %v1906 = vpop.f32.mrb[0].mxu0
    %v1907 = vpop.f32.mrb[0].mxu0
    %1908 = vdwg.mxu0
    %1909 = vmatprep.subr.bf16.mxu0 %v1440
    %1910 = vmatpush1.bf16.xpose.msra.mxu0 %v1439
    %1911 = vmatprep.subr.bf16.mxu0 %v1472
    %1912 = vmatpush1.bf16.xpose.msra.mxu0 %v1471
    %1913 = vmatprep.subr.bf16.mxu0 0
    %1914 = vmatpush1.bf16.xpose.msra.mxu0 0
    %1915 = vmatprep.subr.bf16.mxu0 0
    %1916 = vmatpush1.bf16.xpose.msra.mxu0 0
    %1917 = vmatprep.subr.bf16.mxu0 0
    %1918 = vmatpush1.bf16.xpose.msra.mxu0 0
    %1919 = vmatprep.subr.bf16.mxu0 0
    %1920 = vmatpush1.bf16.xpose.msra.mxu0 0
    %1921 = vmatprep.subr.bf16.mxu0 0
    %1922 = vmatpush1.bf16.xpose.msra.mxu0 0
    %1923 = vmatprep.subr.bf16.mxu0 0
    %1924 = vmatpush1.bf16.xpose.msra.mxu0 0
    %1925 = vmatprep.subr.bf16.mxu0 0
    %1926 = vmatpush1.bf16.xpose.msra.mxu0 0
    %1927 = vmatprep.subr.bf16.mxu0 0
    %1928 = vmatpush1.bf16.xpose.msra.mxu0 0
    %1929 = vmatprep.subr.bf16.mxu0 0
    %1930 = vmatpush1.bf16.xpose.msra.mxu0 0
    %1931 = vmatprep.subr.bf16.mxu0 0
    %1932 = vmatpush1.bf16.xpose.msra.mxu0 0
    %1933 = vmatprep.subr.bf16.mxu0 0
    %1934 = vmatpush1.bf16.xpose.msra.mxu0 0
    %1935 = vmatprep.subr.bf16.mxu0 0
    %1936 = vmatpush1.bf16.xpose.msra.mxu0 0
    %1937 = vmatprep.subr.bf16.mxu0 0
    %1938 = vmatpush1.bf16.xpose.msra.mxu0 0
    %1939 = vmatprep.subr.bf16.mxu0 0
    %1940 = vmatpush1.bf16.xpose.msra.mxu0 0
    %1941 = vmatprep.mubr.bf16.mxu0 %v1145
    %1942 = vmatmul.mubr.bf16.gmra.mrb[0].mxu0 %v1144
    %v1943 = vpop.f32.mrb[0].mxu0
    %v1944 = vadd.f32 %v1904, %v1943
    %v1945 = vpop.f32.mrb[0].mxu0
    %v1946 = vpop.f32.mrb[0].mxu0
    %v1947 = vpop.f32.mrb[0].mxu0
    %1948 = vdwg.mxu0
    %1949 = vmatprep.subr.bf16.mxu0 %v1442
    %1950 = vmatpush1.bf16.xpose.msra.mxu0 %v1441
    %1951 = vmatprep.subr.bf16.mxu0 %v1474
    %1952 = vmatpush1.bf16.xpose.msra.mxu0 %v1473
    %1953 = vmatprep.subr.bf16.mxu0 0
    %1954 = vmatpush1.bf16.xpose.msra.mxu0 0
    %1955 = vmatprep.subr.bf16.mxu0 0
    %1956 = vmatpush1.bf16.xpose.msra.mxu0 0
    %1957 = vmatprep.subr.bf16.mxu0 0
    %1958 = vmatpush1.bf16.xpose.msra.mxu0 0
    %1959 = vmatprep.subr.bf16.mxu0 0
    %1960 = vmatpush1.bf16.xpose.msra.mxu0 0
    %1961 = vmatprep.subr.bf16.mxu0 0
    %1962 = vmatpush1.bf16.xpose.msra.mxu0 0
    %1963 = vmatprep.subr.bf16.mxu0 0
    %1964 = vmatpush1.bf16.xpose.msra.mxu0 0
    %1965 = vmatprep.subr.bf16.mxu0 0
    %1966 = vmatpush1.bf16.xpose.msra.mxu0 0
    %1967 = vmatprep.subr.bf16.mxu0 0
    %1968 = vmatpush1.bf16.xpose.msra.mxu0 0
    %1969 = vmatprep.subr.bf16.mxu0 0
    %1970 = vmatpush1.bf16.xpose.msra.mxu0 0
    %1971 = vmatprep.subr.bf16.mxu0 0
    %1972 = vmatpush1.bf16.xpose.msra.mxu0 0
    %1973 = vmatprep.subr.bf16.mxu0 0
    %1974 = vmatpush1.bf16.xpose.msra.mxu0 0
    %1975 = vmatprep.subr.bf16.mxu0 0
    %1976 = vmatpush1.bf16.xpose.msra.mxu0 0
    %1977 = vmatprep.subr.bf16.mxu0 0
    %1978 = vmatpush1.bf16.xpose.msra.mxu0 0
    %1979 = vmatprep.subr.bf16.mxu0 0
    %1980 = vmatpush1.bf16.xpose.msra.mxu0 0
    %1981 = vmatprep.mubr.bf16.mxu0 %v1147
    %1982 = vmatmul.mubr.bf16.gmra.mrb[0].mxu0 %v1146
    %v1983 = vpop.f32.mrb[0].mxu0
    %v1984 = vadd.f32 %v1944, %v1983
    %v1985 = vpop.f32.mrb[0].mxu0
    %v1986 = vpop.f32.mrb[0].mxu0
    %v1987 = vpop.f32.mrb[0].mxu0
    %1988 = vdwg.mxu0
    %1989 = vmatprep.subr.bf16.mxu0 %v1444
    %1990 = vmatpush1.bf16.xpose.msra.mxu0 %v1443
    %1991 = vmatprep.subr.bf16.mxu0 %v1476
    %1992 = vmatpush1.bf16.xpose.msra.mxu0 %v1475
    %1993 = vmatprep.subr.bf16.mxu0 0
    %1994 = vmatpush1.bf16.xpose.msra.mxu0 0
    %1995 = vmatprep.subr.bf16.mxu0 0
    %1996 = vmatpush1.bf16.xpose.msra.mxu0 0
    %1997 = vmatprep.subr.bf16.mxu0 0
    %1998 = vmatpush1.bf16.xpose.msra.mxu0 0
    %1999 = vmatprep.subr.bf16.mxu0 0
    %2000 = vmatpush1.bf16.xpose.msra.mxu0 0
    %2001 = vmatprep.subr.bf16.mxu0 0
    %2002 = vmatpush1.bf16.xpose.msra.mxu0 0
    %2003 = vmatprep.subr.bf16.mxu0 0
    %2004 = vmatpush1.bf16.xpose.msra.mxu0 0
    %2005 = vmatprep.subr.bf16.mxu0 0
    %2006 = vmatpush1.bf16.xpose.msra.mxu0 0
    %2007 = vmatprep.subr.bf16.mxu0 0
    %2008 = vmatpush1.bf16.xpose.msra.mxu0 0
    %2009 = vmatprep.subr.bf16.mxu0 0
    %2010 = vmatpush1.bf16.xpose.msra.mxu0 0
    %2011 = vmatprep.subr.bf16.mxu0 0
    %2012 = vmatpush1.bf16.xpose.msra.mxu0 0
    %2013 = vmatprep.subr.bf16.mxu0 0
    %2014 = vmatpush1.bf16.xpose.msra.mxu0 0
    %2015 = vmatprep.subr.bf16.mxu0 0
    %2016 = vmatpush1.bf16.xpose.msra.mxu0 0
    %2017 = vmatprep.subr.bf16.mxu0 0
    %2018 = vmatpush1.bf16.xpose.msra.mxu0 0
    %2019 = vmatprep.subr.bf16.mxu0 0
    %2020 = vmatpush1.bf16.xpose.msra.mxu0 0
    %2021 = vmatprep.mubr.bf16.mxu0 %v1149
    %2022 = vmatmul.mubr.bf16.gmra.mrb[0].mxu0 %v1148
    %v2023 = vpop.f32.mrb[0].mxu0
    %v2024 = vadd.f32 %v1984, %v2023
    %v2025 = vpop.f32.mrb[0].mxu0
    %v2026 = vpop.f32.mrb[0].mxu0
    %v2027 = vpop.f32.mrb[0].mxu0
    %2028 = vdwg.mxu0
    %2029 = vmatprep.subr.bf16.mxu0 %v1446
    %2030 = vmatpush1.bf16.xpose.msra.mxu0 %v1445
    %2031 = vmatprep.subr.bf16.mxu0 %v1478
    %2032 = vmatpush1.bf16.xpose.msra.mxu0 %v1477
    %2033 = vmatprep.subr.bf16.mxu0 0
    %2034 = vmatpush1.bf16.xpose.msra.mxu0 0
    %2035 = vmatprep.subr.bf16.mxu0 0
    %2036 = vmatpush1.bf16.xpose.msra.mxu0 0
    %2037 = vmatprep.subr.bf16.mxu0 0
    %2038 = vmatpush1.bf16.xpose.msra.mxu0 0
    %2039 = vmatprep.subr.bf16.mxu0 0
    %2040 = vmatpush1.bf16.xpose.msra.mxu0 0
    %2041 = vmatprep.subr.bf16.mxu0 0
    %2042 = vmatpush1.bf16.xpose.msra.mxu0 0
    %2043 = vmatprep.subr.bf16.mxu0 0
    %2044 = vmatpush1.bf16.xpose.msra.mxu0 0
    %2045 = vmatprep.subr.bf16.mxu0 0
    %2046 = vmatpush1.bf16.xpose.msra.mxu0 0
    %2047 = vmatprep.subr.bf16.mxu0 0
    %2048 = vmatpush1.bf16.xpose.msra.mxu0 0
    %2049 = vmatprep.subr.bf16.mxu0 0
    %2050 = vmatpush1.bf16.xpose.msra.mxu0 0
    %2051 = vmatprep.subr.bf16.mxu0 0
    %2052 = vmatpush1.bf16.xpose.msra.mxu0 0
    %2053 = vmatprep.subr.bf16.mxu0 0
    %2054 = vmatpush1.bf16.xpose.msra.mxu0 0
    %2055 = vmatprep.subr.bf16.mxu0 0
    %2056 = vmatpush1.bf16.xpose.msra.mxu0 0
    %2057 = vmatprep.subr.bf16.mxu0 0
    %2058 = vmatpush1.bf16.xpose.msra.mxu0 0
    %2059 = vmatprep.subr.bf16.mxu0 0
    %2060 = vmatpush1.bf16.xpose.msra.mxu0 0
    %2061 = vmatprep.mubr.bf16.mxu0 %v1151
    %2062 = vmatmul.mubr.bf16.gmra.mrb[0].mxu0 %v1150
    %v2063 = vpop.f32.mrb[0].mxu0
    %v2064 = vadd.f32 %v2024, %v2063
    %v2065 = vpop.f32.mrb[0].mxu0
    %v2066 = vpop.f32.mrb[0].mxu0
    %v2067 = vpop.f32.mrb[0].mxu0
    %2068 = vdwg.mxu0
    %2069 = vmatprep.subr.bf16.mxu0 %v1448
    %2070 = vmatpush1.bf16.xpose.msra.mxu0 %v1447
    %2071 = vmatprep.subr.bf16.mxu0 %v1480
    %2072 = vmatpush1.bf16.xpose.msra.mxu0 %v1479
    %2073 = vmatprep.subr.bf16.mxu0 0
    %2074 = vmatpush1.bf16.xpose.msra.mxu0 0
    %2075 = vmatprep.subr.bf16.mxu0 0
    %2076 = vmatpush1.bf16.xpose.msra.mxu0 0
    %2077 = vmatprep.subr.bf16.mxu0 0
    %2078 = vmatpush1.bf16.xpose.msra.mxu0 0
    %2079 = vmatprep.subr.bf16.mxu0 0
    %2080 = vmatpush1.bf16.xpose.msra.mxu0 0
    %2081 = vmatprep.subr.bf16.mxu0 0
    %2082 = vmatpush1.bf16.xpose.msra.mxu0 0
    %2083 = vmatprep.subr.bf16.mxu0 0
    %2084 = vmatpush1.bf16.xpose.msra.mxu0 0
    %2085 = vmatprep.subr.bf16.mxu0 0
    %2086 = vmatpush1.bf16.xpose.msra.mxu0 0
    %2087 = vmatprep.subr.bf16.mxu0 0
    %2088 = vmatpush1.bf16.xpose.msra.mxu0 0
    %2089 = vmatprep.subr.bf16.mxu0 0
    %2090 = vmatpush1.bf16.xpose.msra.mxu0 0
    %2091 = vmatprep.subr.bf16.mxu0 0
    %2092 = vmatpush1.bf16.xpose.msra.mxu0 0
    %2093 = vmatprep.subr.bf16.mxu0 0
    %2094 = vmatpush1.bf16.xpose.msra.mxu0 0
    %2095 = vmatprep.subr.bf16.mxu0 0
    %2096 = vmatpush1.bf16.xpose.msra.mxu0 0
    %2097 = vmatprep.subr.bf16.mxu0 0
    %2098 = vmatpush1.bf16.xpose.msra.mxu0 0
    %2099 = vmatprep.subr.bf16.mxu0 0
    %2100 = vmatpush1.bf16.xpose.msra.mxu0 0
    %2101 = vmatprep.mubr.bf16.mxu0 %v1153
    %2102 = vmatmul.mubr.bf16.gmra.mrb[0].mxu0 %v1152
    %v2103 = vpop.f32.mrb[0].mxu0
    %v2104 = vadd.f32 %v2064, %v2103
    %v2105 = vpop.f32.mrb[0].mxu0
    %v2106 = vpop.f32.mrb[0].mxu0
    %v2107 = vpop.f32.mrb[0].mxu0
    %2108 = vdwg.mxu0
    %2109 = vmatprep.subr.bf16.mxu0 %v1450
    %2110 = vmatpush1.bf16.xpose.msra.mxu0 %v1449
    %2111 = vmatprep.subr.bf16.mxu0 %v1482
    %2112 = vmatpush1.bf16.xpose.msra.mxu0 %v1481
    %2113 = vmatprep.subr.bf16.mxu0 0
    %2114 = vmatpush1.bf16.xpose.msra.mxu0 0
    %2115 = vmatprep.subr.bf16.mxu0 0
    %2116 = vmatpush1.bf16.xpose.msra.mxu0 0
    %2117 = vmatprep.subr.bf16.mxu0 0
    %2118 = vmatpush1.bf16.xpose.msra.mxu0 0
    %2119 = vmatprep.subr.bf16.mxu0 0
    %2120 = vmatpush1.bf16.xpose.msra.mxu0 0
    %2121 = vmatprep.subr.bf16.mxu0 0
    %2122 = vmatpush1.bf16.xpose.msra.mxu0 0
    %2123 = vmatprep.subr.bf16.mxu0 0
    %2124 = vmatpush1.bf16.xpose.msra.mxu0 0
    %2125 = vmatprep.subr.bf16.mxu0 0
    %2126 = vmatpush1.bf16.xpose.msra.mxu0 0
    %2127 = vmatprep.subr.bf16.mxu0 0
    %2128 = vmatpush1.bf16.xpose.msra.mxu0 0
    %2129 = vmatprep.subr.bf16.mxu0 0
    %2130 = vmatpush1.bf16.xpose.msra.mxu0 0
    %2131 = vmatprep.subr.bf16.mxu0 0
    %2132 = vmatpush1.bf16.xpose.msra.mxu0 0
    %2133 = vmatprep.subr.bf16.mxu0 0
    %2134 = vmatpush1.bf16.xpose.msra.mxu0 0
    %2135 = vmatprep.subr.bf16.mxu0 0
    %2136 = vmatpush1.bf16.xpose.msra.mxu0 0
    %2137 = vmatprep.subr.bf16.mxu0 0
    %2138 = vmatpush1.bf16.xpose.msra.mxu0 0
    %2139 = vmatprep.subr.bf16.mxu0 0
    %2140 = vmatpush1.bf16.xpose.msra.mxu0 0
    %2141 = vmatprep.mubr.bf16.mxu0 %v1155
    %2142 = vmatmul.mubr.bf16.gmra.mrb[0].mxu0 %v1154
    %v2143 = vpop.f32.mrb[0].mxu0
    %v2144 = vadd.f32 %v2104, %v2143
    %v2145 = vpop.f32.mrb[0].mxu0
    %v2146 = vpop.f32.mrb[0].mxu0
    %v2147 = vpop.f32.mrb[0].mxu0
    %2148 = vdwg.mxu0
    %2149 = vmatprep.subr.bf16.mxu0 %v1452
    %2150 = vmatpush1.bf16.xpose.msra.mxu0 %v1451
    %2151 = vmatprep.subr.bf16.mxu0 %v1484
    %2152 = vmatpush1.bf16.xpose.msra.mxu0 %v1483
    %2153 = vmatprep.subr.bf16.mxu0 0
    %2154 = vmatpush1.bf16.xpose.msra.mxu0 0
    %2155 = vmatprep.subr.bf16.mxu0 0
    %2156 = vmatpush1.bf16.xpose.msra.mxu0 0
    %2157 = vmatprep.subr.bf16.mxu0 0
    %2158 = vmatpush1.bf16.xpose.msra.mxu0 0
    %2159 = vmatprep.subr.bf16.mxu0 0
    %2160 = vmatpush1.bf16.xpose.msra.mxu0 0
    %2161 = vmatprep.subr.bf16.mxu0 0
    %2162 = vmatpush1.bf16.xpose.msra.mxu0 0
    %2163 = vmatprep.subr.bf16.mxu0 0
    %2164 = vmatpush1.bf16.xpose.msra.mxu0 0
    %2165 = vmatprep.subr.bf16.mxu0 0
    %2166 = vmatpush1.bf16.xpose.msra.mxu0 0
    %2167 = vmatprep.subr.bf16.mxu0 0
    %2168 = vmatpush1.bf16.xpose.msra.mxu0 0
    %2169 = vmatprep.subr.bf16.mxu0 0
    %2170 = vmatpush1.bf16.xpose.msra.mxu0 0
    %2171 = vmatprep.subr.bf16.mxu0 0
    %2172 = vmatpush1.bf16.xpose.msra.mxu0 0
    %2173 = vmatprep.subr.bf16.mxu0 0
    %2174 = vmatpush1.bf16.xpose.msra.mxu0 0
    %2175 = vmatprep.subr.bf16.mxu0 0
    %2176 = vmatpush1.bf16.xpose.msra.mxu0 0
    %2177 = vmatprep.subr.bf16.mxu0 0
    %2178 = vmatpush1.bf16.xpose.msra.mxu0 0
    %2179 = vmatprep.subr.bf16.mxu0 0
    %2180 = vmatpush1.bf16.xpose.msra.mxu0 0
    %2181 = vmatprep.mubr.bf16.mxu0 %v1157
    %2182 = vmatmul.mubr.bf16.gmra.mrb[0].mxu0 %v1156
    %v2183 = vpop.f32.mrb[0].mxu0
    %v2184 = vadd.f32 %v2144, %v2183
    %v2185 = vpop.f32.mrb[0].mxu0
    %v2186 = vpop.f32.mrb[0].mxu0
    %v2187 = vpop.f32.mrb[0].mxu0
    %2188 = vdwg.mxu0
    %vm2189 = vcmask 254976
    %2190 = vst.msk [vmem:[#allocation12] sm:$0x3] %vm2189, %v2184
    %v2191 = vld [vmem:[%s13] sm:$0xff]
    %v2192 = vld [vmem:[%s13 + $0x8] sm:$0xff]
    %v2193 = vld [vmem:[%s13 + $0x10] sm:$0xff]
    %v2194 = vld [vmem:[%s13 + $0x18] sm:$0xff]
    %v2195 = vld [vmem:[%s14] sm:$0x1]
    %v2197 = vlaneseq
    %v2198 = vshrl.u32 %v2197, 7
    %v2199 = vsub.s32 0, %v2198
    %v2200 = vrot.slane %v2195, %v2199
    %vm2202 = vcmask 261120
    %v2204 = vsel %vm2202, %v2184, 0
    %2206 = vmatprep.subr.mxu0 0.0
    %2207 = vmatpush1.msra.mxu0 %v2191
    %2208 = vmatprep.subr.mxu0 0.0
    %2209 = vmatpush1.msra.mxu0 %v2192
    %2210 = vmatprep.subr.mxu0 0.0
    %2211 = vmatpush1.msra.mxu0 %v2193
    %2212 = vmatprep.subr.mxu0 0.0
    %2213 = vmatpush1.msra.mxu0 %v2194
    %2214 = vmatprep.subr.mxu0 0.0
    %2215 = vmatpush1.msra.mxu0 0.0
    %2216 = vmatprep.subr.mxu0 0.0
    %2217 = vmatpush1.msra.mxu0 0.0
    %2218 = vmatprep.subr.mxu0 0.0
    %2219 = vmatpush1.msra.mxu0 0.0
    %2220 = vmatprep.subr.mxu0 0.0
    %2221 = vmatpush1.msra.mxu0 0.0
    %2222 = vmatprep.subr.mxu0 0.0
    %2223 = vmatpush1.msra.mxu0 0.0
    %2224 = vmatprep.subr.mxu0 0.0
    %2225 = vmatpush1.msra.mxu0 0.0
    %2226 = vmatprep.subr.mxu0 0.0
    %2227 = vmatpush1.msra.mxu0 0.0
    %2228 = vmatprep.subr.mxu0 0.0
    %2229 = vmatpush1.msra.mxu0 0.0
    %2230 = vmatprep.subr.mxu0 0.0
    %2231 = vmatpush1.msra.mxu0 0.0
    %2232 = vmatprep.subr.mxu0 0.0
    %2233 = vmatpush1.msra.mxu0 0.0
    %2234 = vmatprep.subr.mxu0 0.0
    %2235 = vmatpush1.msra.mxu0 0.0
    %2236 = vmatprep.subr.mxu0 0.0
    %2237 = vmatpush1.msra.mxu0 0.0
    %2238 = vmatprep.subr.mxu0 0.0
    %2239 = vmatpush1.msra.mxu0 0.0
    %2240 = vmatprep.subr.mxu0 0.0
    %2241 = vmatpush1.msra.mxu0 0.0
    %2242 = vmatprep.subr.mxu0 0.0
    %2243 = vmatpush1.msra.mxu0 0.0
    %2244 = vmatprep.subr.mxu0 0.0
    %2245 = vmatpush1.msra.mxu0 0.0
    %2246 = vmatprep.subr.mxu0 0.0
    %2247 = vmatpush1.msra.mxu0 0.0
    %2248 = vmatprep.subr.mxu0 0.0
    %2249 = vmatpush1.msra.mxu0 0.0
    %2250 = vmatprep.subr.mxu0 0.0
    %2251 = vmatpush1.msra.mxu0 0.0
    %2252 = vmatprep.subr.mxu0 0.0
    %2253 = vmatpush1.msra.mxu0 0.0
    %2254 = vmatprep.subr.mxu0 0.0
    %2255 = vmatpush1.msra.mxu0 0.0
    %2256 = vmatprep.subr.mxu0 0.0
    %2257 = vmatpush1.msra.mxu0 0.0
    %2258 = vmatprep.subr.mxu0 0.0
    %2259 = vmatpush1.msra.mxu0 0.0
    %2260 = vmatprep.subr.mxu0 0.0
    %2261 = vmatpush1.msra.mxu0 0.0
    %2262 = vmatprep.subr.mxu0 0.0
    %2263 = vmatpush1.msra.mxu0 0.0
    %2264 = vmatprep.subr.mxu0 0.0
    %2265 = vmatpush1.msra.mxu0 0.0
    %2266 = vmatprep.subr.mxu0 0.0
    %2267 = vmatpush1.msra.mxu0 0.0
    %2268 = vmatprep.subr.mxu0 0.0
    %2269 = vmatpush1.msra.mxu0 0.0
    %2270 = vmatprep.mubr.f32.mxu0 0.0
    %2271 = vmatmul.mubr.f32.gmra.mrb[0].mxu0 %v2204
    %v2272 = vpop.f32.mrb[0].mxu0
    %v2273 = vadd.f32 %v2200, %v2272
    %v2274 = vpop.f32.mrb[0].mxu0
    %2275 = vdwg.mxu0
    %v2276 = vmax.f32 %v2273, 0.0
    %v2277 = vld [vmem:[%s15] sm:$0xff]
    %v2278 = vld [vmem:[%s15 + $0x8] sm:$0xff]
    %v2279 = vld [vmem:[%s15 + $0x10] sm:$0xff]
    %v2280 = vld [vmem:[%s15 + $0x18] sm:$0xff]
    %v2281 = vld [vmem:[%s15 + $0x20] sm:$0xff]
    %v2282 = vld [vmem:[%s15 + $0x28] sm:$0xff]
    %v2283 = vld [vmem:[%s15 + $0x30] sm:$0xff]
    %v2284 = vld [vmem:[%s15 + $0x38] sm:$0xff]
    %v2285 = vld [vmem:[%s16] sm:$0x1]
    %v2287 = vlaneseq
    %v2288 = vshrl.u32 %v2287, 7
    %v2289 = vsub.s32 0, %v2288
    %v2290 = vrot.slane %v2285, %v2289
    %v2293 = vsel %vm504, %v2276, 0
    %2295 = vmatprep.subr.mxu0 0.0
    %2296 = vmatpush1.msra.mxu0 %v2277
    %2297 = vmatprep.subr.mxu0 0.0
    %2298 = vmatpush1.msra.mxu0 %v2278
    %2299 = vmatprep.subr.mxu0 0.0
    %2300 = vmatpush1.msra.mxu0 %v2279
    %2301 = vmatprep.subr.mxu0 0.0
    %2302 = vmatpush1.msra.mxu0 %v2280
    %2303 = vmatprep.subr.mxu0 0.0
    %2304 = vmatpush1.msra.mxu0 %v2281
    %2305 = vmatprep.subr.mxu0 0.0
    %2306 = vmatpush1.msra.mxu0 %v2282
    %2307 = vmatprep.subr.mxu0 0.0
    %2308 = vmatpush1.msra.mxu0 %v2283
    %2309 = vmatprep.subr.mxu0 0.0
    %2310 = vmatpush1.msra.mxu0 %v2284
    %2311 = vmatprep.subr.mxu0 0.0
    %2312 = vmatpush1.msra.mxu0 0.0
    %2313 = vmatprep.subr.mxu0 0.0
    %2314 = vmatpush1.msra.mxu0 0.0
    %2315 = vmatprep.subr.mxu0 0.0
    %2316 = vmatpush1.msra.mxu0 0.0
    %2317 = vmatprep.subr.mxu0 0.0
    %2318 = vmatpush1.msra.mxu0 0.0
    %2319 = vmatprep.subr.mxu0 0.0
    %2320 = vmatpush1.msra.mxu0 0.0
    %2321 = vmatprep.subr.mxu0 0.0
    %2322 = vmatpush1.msra.mxu0 0.0
    %2323 = vmatprep.subr.mxu0 0.0
    %2324 = vmatpush1.msra.mxu0 0.0
    %2325 = vmatprep.subr.mxu0 0.0
    %2326 = vmatpush1.msra.mxu0 0.0
    %2327 = vmatprep.subr.mxu0 0.0
    %2328 = vmatpush1.msra.mxu0 0.0
    %2329 = vmatprep.subr.mxu0 0.0
    %2330 = vmatpush1.msra.mxu0 0.0
    %2331 = vmatprep.subr.mxu0 0.0
    %2332 = vmatpush1.msra.mxu0 0.0
    %2333 = vmatprep.subr.mxu0 0.0
    %2334 = vmatpush1.msra.mxu0 0.0
    %2335 = vmatprep.subr.mxu0 0.0
    %2336 = vmatpush1.msra.mxu0 0.0
    %2337 = vmatprep.subr.mxu0 0.0
    %2338 = vmatpush1.msra.mxu0 0.0
    %2339 = vmatprep.subr.mxu0 0.0
    %2340 = vmatpush1.msra.mxu0 0.0
    %2341 = vmatprep.subr.mxu0 0.0
    %2342 = vmatpush1.msra.mxu0 0.0
    %2343 = vmatprep.subr.mxu0 0.0
    %2344 = vmatpush1.msra.mxu0 0.0
    %2345 = vmatprep.subr.mxu0 0.0
    %2346 = vmatpush1.msra.mxu0 0.0
    %2347 = vmatprep.subr.mxu0 0.0
    %2348 = vmatpush1.msra.mxu0 0.0
    %2349 = vmatprep.subr.mxu0 0.0
    %2350 = vmatpush1.msra.mxu0 0.0
    %2351 = vmatprep.subr.mxu0 0.0
    %2352 = vmatpush1.msra.mxu0 0.0
    %2353 = vmatprep.subr.mxu0 0.0
    %2354 = vmatpush1.msra.mxu0 0.0
    %2355 = vmatprep.subr.mxu0 0.0
    %2356 = vmatpush1.msra.mxu0 0.0
    %2357 = vmatprep.subr.mxu0 0.0
    %2358 = vmatpush1.msra.mxu0 0.0
    %2359 = vmatprep.mubr.f32.mxu0 0.0
    %2360 = vmatmul.mubr.f32.gmra.mrb[0].mxu0 %v2293
    %v2361 = vpop.f32.mrb[0].mxu0
    %v2362 = vadd.f32 %v2290, %v2361
    %v2363 = vpop.f32.mrb[0].mxu0
    %2364 = vdwg.mxu0
    %vm2365 = vcmask 9216
    %2366 = vst.msk [vmem:[#allocation9] sm:$0x3] %vm2365, %v2362
    %v2367 = vpack.c.bf16 %v2184, %v2184
    %v2368 = vld [vmem:[#allocation7] sm:$0xff]
    %v2369 = vld [vmem:[#allocation7 + $0x8] sm:$0xff]
    %v2370 = vld [vmem:[#allocation7 + $0x10] sm:$0xff]
    %v2371 = vld [vmem:[#allocation7 + $0x18] sm:$0xff]
    %v2372 = vld [vmem:[#allocation7 + $0x20] sm:$0xff]
    %v2373 = vld [vmem:[#allocation7 + $0x28] sm:$0xff]
    %v2374 = vld [vmem:[#allocation7 + $0x30] sm:$0xff]
    %v2375 = vld [vmem:[#allocation7 + $0x38] sm:$0xff]
    %v2376 = vld [vmem:[#allocation7 + $0x40] sm:$0xff]
    %v2377 = vld [vmem:[#allocation7 + $0x48] sm:$0xff]
    %v2378 = vld [vmem:[#allocation7 + $0x50] sm:$0xff]
    %v2379 = vld [vmem:[#allocation7 + $0x58] sm:$0xff]
    %v2380 = vld [vmem:[#allocation7 + $0x60] sm:$0xff]
    %v2381 = vld [vmem:[#allocation7 + $0x68] sm:$0xff]
    %v2382 = vld [vmem:[#allocation7 + $0x70] sm:$0xff]
    %v2383 = vld [vmem:[#allocation7 + $0x78] sm:$0xff]
    %v2384 = vld [vmem:[#allocation7 + $0x80] sm:$0xff]
    %v2385 = vld [vmem:[#allocation7 + $0x88] sm:$0xff]
    %v2386 = vld [vmem:[#allocation7 + $0x90] sm:$0xff]
    %v2387 = vld [vmem:[#allocation7 + $0x98] sm:$0xff]
    %v2388 = vld [vmem:[#allocation7 + $0xa0] sm:$0xff]
    %v2389 = vld [vmem:[#allocation7 + $0xa8] sm:$0xff]
    %v2390 = vld [vmem:[#allocation7 + $0xb0] sm:$0xff]
    %v2391 = vld [vmem:[#allocation7 + $0xb8] sm:$0xff]
    %v2392 = vld [vmem:[#allocation7 + $0xc0] sm:$0xff]
    %v2393 = vld [vmem:[#allocation7 + $0xc8] sm:$0xff]
    %v2394 = vld [vmem:[#allocation7 + $0xd0] sm:$0xff]
    %v2395 = vld [vmem:[#allocation7 + $0xd8] sm:$0xff]
    %v2396 = vld [vmem:[#allocation7 + $0xe0] sm:$0xff]
    %v2397 = vld [vmem:[#allocation7 + $0xe8] sm:$0xff]
    %v2398 = vld [vmem:[#allocation7 + $0xf0] sm:$0xff]
    %v2399 = vld [vmem:[#allocation7 + $0xf8] sm:$0xff]
    %v2400 = vld [vmem:[#allocation7 + $0x100] sm:$0xff]
    %v2401 = vld [vmem:[#allocation7 + $0x108] sm:$0xff]
    %v2402 = vld [vmem:[#allocation7 + $0x110] sm:$0xff]
    %v2403 = vld [vmem:[#allocation7 + $0x118] sm:$0xff]
    %v2404 = vld [vmem:[#allocation7 + $0x120] sm:$0xff]
    %v2405 = vld [vmem:[#allocation7 + $0x128] sm:$0xff]
    %v2406 = vld [vmem:[#allocation7 + $0x130] sm:$0xff]
    %v2407 = vld [vmem:[#allocation7 + $0x138] sm:$0xff]
    %v2408 = vld [vmem:[#allocation7 + $0x140] sm:$0xff]
    %v2409 = vld [vmem:[#allocation7 + $0x148] sm:$0xff]
    %v2410 = vld [vmem:[#allocation7 + $0x150] sm:$0xff]
    %v2411 = vld [vmem:[#allocation7 + $0x158] sm:$0xff]
    %v2412 = vld [vmem:[#allocation7 + $0x160] sm:$0xff]
    %v2413 = vld [vmem:[#allocation7 + $0x168] sm:$0xff]
    %v2414 = vld [vmem:[#allocation7 + $0x170] sm:$0xff]
    %v2415 = vld [vmem:[#allocation7 + $0x178] sm:$0xff]
    %v2416 = vld [vmem:[#allocation7 + $0x180] sm:$0xff]
    %v2417 = vld [vmem:[#allocation7 + $0x188] sm:$0xff]
    %v2418 = vld [vmem:[#allocation7 + $0x190] sm:$0xff]
    %v2419 = vld [vmem:[#allocation7 + $0x198] sm:$0xff]
    %v2420 = vld [vmem:[#allocation7 + $0x1a0] sm:$0xff]
    %v2421 = vld [vmem:[#allocation7 + $0x1a8] sm:$0xff]
    %v2422 = vld [vmem:[#allocation7 + $0x1b0] sm:$0xff]
    %v2423 = vld [vmem:[#allocation7 + $0x1b8] sm:$0xff]
    %v2424 = vld [vmem:[#allocation7 + $0x1c0] sm:$0xff]
    %v2425 = vld [vmem:[#allocation7 + $0x1c8] sm:$0xff]
    %v2426 = vld [vmem:[#allocation7 + $0x1d0] sm:$0xff]
    %v2427 = vld [vmem:[#allocation7 + $0x1d8] sm:$0xff]
    %v2428 = vld [vmem:[#allocation7 + $0x1e0] sm:$0xff]
    %v2429 = vld [vmem:[#allocation7 + $0x1e8] sm:$0xff]
    %v2430 = vld [vmem:[#allocation7 + $0x1f0] sm:$0xff]
    %v2431 = vld [vmem:[#allocation7 + $0x1f8] sm:$0xff]
    %v2432 = vld [vmem:[%s8] sm:$0xff]
    %v2433 = vld [vmem:[%s8 + $0x8] sm:$0xff]
    %v2434 = vld [vmem:[%s8 + $0x10] sm:$0xff]
    %v2435 = vld [vmem:[%s8 + $0x18] sm:$0xff]
    %v2440 = vlaneseq
    %v2441 = vshrl.u32 %v2440, 7
    %v2442 = vsub.s32 0, %v2441
    %v2443 = vrot.slane %v2432, %v2442
    %v2444 = vlaneseq
    %v2445 = vshrl.u32 %v2444, 7
    %v2446 = vsub.s32 1, %v2445
    %v2447 = vrot.slane %v2432, %v2446
    %v2448 = vlaneseq
    %v2449 = vshrl.u32 %v2448, 7
    %v2450 = vsub.s32 2, %v2449
    %v2451 = vrot.slane %v2432, %v2450
    %v2452 = vlaneseq
    %v2453 = vshrl.u32 %v2452, 7
    %v2454 = vsub.s32 3, %v2453
    %v2455 = vrot.slane %v2432, %v2454
    %v2456 = vlaneseq
    %v2457 = vshrl.u32 %v2456, 7
    %v2458 = vsub.s32 4, %v2457
    %v2459 = vrot.slane %v2432, %v2458
    %v2460 = vlaneseq
    %v2461 = vshrl.u32 %v2460, 7
    %v2462 = vsub.s32 5, %v2461
    %v2463 = vrot.slane %v2432, %v2462
    %v2464 = vlaneseq
    %v2465 = vshrl.u32 %v2464, 7
    %v2466 = vsub.s32 6, %v2465
    %v2467 = vrot.slane %v2432, %v2466
    %v2468 = vlaneseq
    %v2469 = vshrl.u32 %v2468, 7
    %v2470 = vsub.s32 7, %v2469
    %v2471 = vrot.slane %v2432, %v2470
    %v2472 = vlaneseq
    %v2473 = vshrl.u32 %v2472, 7
    %v2474 = vsub.s32 0, %v2473
    %v2475 = vrot.slane %v2433, %v2474
    %v2476 = vlaneseq
    %v2477 = vshrl.u32 %v2476, 7
    %v2478 = vsub.s32 1, %v2477
    %v2479 = vrot.slane %v2433, %v2478
    %v2480 = vlaneseq
    %v2481 = vshrl.u32 %v2480, 7
    %v2482 = vsub.s32 2, %v2481
    %v2483 = vrot.slane %v2433, %v2482
    %v2484 = vlaneseq
    %v2485 = vshrl.u32 %v2484, 7
    %v2486 = vsub.s32 3, %v2485
    %v2487 = vrot.slane %v2433, %v2486
    %v2488 = vlaneseq
    %v2489 = vshrl.u32 %v2488, 7
    %v2490 = vsub.s32 4, %v2489
    %v2491 = vrot.slane %v2433, %v2490
    %v2492 = vlaneseq
    %v2493 = vshrl.u32 %v2492, 7
    %v2494 = vsub.s32 5, %v2493
    %v2495 = vrot.slane %v2433, %v2494
    %v2496 = vlaneseq
    %v2497 = vshrl.u32 %v2496, 7
    %v2498 = vsub.s32 6, %v2497
    %v2499 = vrot.slane %v2433, %v2498
    %v2500 = vlaneseq
    %v2501 = vshrl.u32 %v2500, 7
    %v2502 = vsub.s32 7, %v2501
    %v2503 = vrot.slane %v2433, %v2502
    %v2504 = vlaneseq
    %v2505 = vshrl.u32 %v2504, 7
    %v2506 = vsub.s32 0, %v2505
    %v2507 = vrot.slane %v2434, %v2506
    %v2508 = vlaneseq
    %v2509 = vshrl.u32 %v2508, 7
    %v2510 = vsub.s32 1, %v2509
    %v2511 = vrot.slane %v2434, %v2510
    %v2512 = vlaneseq
    %v2513 = vshrl.u32 %v2512, 7
    %v2514 = vsub.s32 2, %v2513
    %v2515 = vrot.slane %v2434, %v2514
    %v2516 = vlaneseq
    %v2517 = vshrl.u32 %v2516, 7
    %v2518 = vsub.s32 3, %v2517
    %v2519 = vrot.slane %v2434, %v2518
    %v2520 = vlaneseq
    %v2521 = vshrl.u32 %v2520, 7
    %v2522 = vsub.s32 4, %v2521
    %v2523 = vrot.slane %v2434, %v2522
    %v2524 = vlaneseq
    %v2525 = vshrl.u32 %v2524, 7
    %v2526 = vsub.s32 5, %v2525
    %v2527 = vrot.slane %v2434, %v2526
    %v2528 = vlaneseq
    %v2529 = vshrl.u32 %v2528, 7
    %v2530 = vsub.s32 6, %v2529
    %v2531 = vrot.slane %v2434, %v2530
    %v2532 = vlaneseq
    %v2533 = vshrl.u32 %v2532, 7
    %v2534 = vsub.s32 7, %v2533
    %v2535 = vrot.slane %v2434, %v2534
    %v2536 = vlaneseq
    %v2537 = vshrl.u32 %v2536, 7
    %v2538 = vsub.s32 0, %v2537
    %v2539 = vrot.slane %v2435, %v2538
    %v2540 = vlaneseq
    %v2541 = vshrl.u32 %v2540, 7
    %v2542 = vsub.s32 1, %v2541
    %v2543 = vrot.slane %v2435, %v2542
    %v2544 = vlaneseq
    %v2545 = vshrl.u32 %v2544, 7
    %v2546 = vsub.s32 2, %v2545
    %v2547 = vrot.slane %v2435, %v2546
    %v2548 = vlaneseq
    %v2549 = vshrl.u32 %v2548, 7
    %v2550 = vsub.s32 3, %v2549
    %v2551 = vrot.slane %v2435, %v2550
    %v2552 = vlaneseq
    %v2553 = vshrl.u32 %v2552, 7
    %v2554 = vsub.s32 4, %v2553
    %v2555 = vrot.slane %v2435, %v2554
    %v2556 = vlaneseq
    %v2557 = vshrl.u32 %v2556, 7
    %v2558 = vsub.s32 5, %v2557
    %v2559 = vrot.slane %v2435, %v2558
    %v2560 = vlaneseq
    %v2561 = vshrl.u32 %v2560, 7
    %v2562 = vsub.s32 6, %v2561
    %v2563 = vrot.slane %v2435, %v2562
    %v2564 = vlaneseq
    %v2565 = vshrl.u32 %v2564, 7
    %v2566 = vsub.s32 7, %v2565
    %v2567 = vrot.slane %v2435, %v2566
    %v2664 = vunpack.c.l.b16 %v2368
    %v2665 = vunpack.c.h.b16 %v2368
    %v2666 = vunpack.c.l.b16 %v2369
    %v2667 = vunpack.c.h.b16 %v2369
    %v2668 = vunpack.c.l.b16 %v2370
    %v2669 = vunpack.c.h.b16 %v2370
    %v2670 = vunpack.c.l.b16 %v2371
    %v2671 = vunpack.c.h.b16 %v2371
    %v2672 = vunpack.c.l.b16 %v2372
    %v2673 = vunpack.c.h.b16 %v2372
    %v2674 = vunpack.c.l.b16 %v2373
    %v2675 = vunpack.c.h.b16 %v2373
    %v2676 = vunpack.c.l.b16 %v2374
    %v2677 = vunpack.c.h.b16 %v2374
    %v2678 = vunpack.c.l.b16 %v2375
    %v2679 = vunpack.c.h.b16 %v2375
    %v2680 = vunpack.c.l.b16 %v2376
    %v2681 = vunpack.c.h.b16 %v2376
    %v2682 = vunpack.c.l.b16 %v2377
    %v2683 = vunpack.c.h.b16 %v2377
    %v2684 = vunpack.c.l.b16 %v2378
    %v2685 = vunpack.c.h.b16 %v2378
    %v2686 = vunpack.c.l.b16 %v2379
    %v2687 = vunpack.c.h.b16 %v2379
    %v2688 = vunpack.c.l.b16 %v2380
    %v2689 = vunpack.c.h.b16 %v2380
    %v2690 = vunpack.c.l.b16 %v2381
    %v2691 = vunpack.c.h.b16 %v2381
    %v2692 = vunpack.c.l.b16 %v2382
    %v2693 = vunpack.c.h.b16 %v2382
    %v2694 = vunpack.c.l.b16 %v2383
    %v2695 = vunpack.c.h.b16 %v2383
    %v2696 = vunpack.c.l.b16 %v2384
    %v2697 = vunpack.c.h.b16 %v2384
    %v2698 = vunpack.c.l.b16 %v2385
    %v2699 = vunpack.c.h.b16 %v2385
    %v2700 = vunpack.c.l.b16 %v2386
    %v2701 = vunpack.c.h.b16 %v2386
    %v2702 = vunpack.c.l.b16 %v2387
    %v2703 = vunpack.c.h.b16 %v2387
    %v2704 = vunpack.c.l.b16 %v2388
    %v2705 = vunpack.c.h.b16 %v2388
    %v2706 = vunpack.c.l.b16 %v2389
    %v2707 = vunpack.c.h.b16 %v2389
    %v2708 = vunpack.c.l.b16 %v2390
    %v2709 = vunpack.c.h.b16 %v2390
    %v2710 = vunpack.c.l.b16 %v2391
    %v2711 = vunpack.c.h.b16 %v2391
    %v2712 = vunpack.c.l.b16 %v2392
    %v2713 = vunpack.c.h.b16 %v2392
    %v2714 = vunpack.c.l.b16 %v2393
    %v2715 = vunpack.c.h.b16 %v2393
    %v2716 = vunpack.c.l.b16 %v2394
    %v2717 = vunpack.c.h.b16 %v2394
    %v2718 = vunpack.c.l.b16 %v2395
    %v2719 = vunpack.c.h.b16 %v2395
    %v2720 = vunpack.c.l.b16 %v2396
    %v2721 = vunpack.c.h.b16 %v2396
    %v2722 = vunpack.c.l.b16 %v2397
    %v2723 = vunpack.c.h.b16 %v2397
    %v2724 = vunpack.c.l.b16 %v2398
    %v2725 = vunpack.c.h.b16 %v2398
    %v2726 = vunpack.c.l.b16 %v2399
    %v2727 = vunpack.c.h.b16 %v2399
    %v2728 = vunpack.c.l.b16 %v2400
    %v2729 = vunpack.c.h.b16 %v2400
    %v2730 = vunpack.c.l.b16 %v2401
    %v2731 = vunpack.c.h.b16 %v2401
    %v2732 = vunpack.c.l.b16 %v2402
    %v2733 = vunpack.c.h.b16 %v2402
    %v2734 = vunpack.c.l.b16 %v2403
    %v2735 = vunpack.c.h.b16 %v2403
    %v2736 = vunpack.c.l.b16 %v2404
    %v2737 = vunpack.c.h.b16 %v2404
    %v2738 = vunpack.c.l.b16 %v2405
    %v2739 = vunpack.c.h.b16 %v2405
    %v2740 = vunpack.c.l.b16 %v2406
    %v2741 = vunpack.c.h.b16 %v2406
    %v2742 = vunpack.c.l.b16 %v2407
    %v2743 = vunpack.c.h.b16 %v2407
    %v2744 = vunpack.c.l.b16 %v2408
    %v2745 = vunpack.c.h.b16 %v2408
    %v2746 = vunpack.c.l.b16 %v2409
    %v2747 = vunpack.c.h.b16 %v2409
    %v2748 = vunpack.c.l.b16 %v2410
    %v2749 = vunpack.c.h.b16 %v2410
    %v2750 = vunpack.c.l.b16 %v2411
    %v2751 = vunpack.c.h.b16 %v2411
    %v2752 = vunpack.c.l.b16 %v2412
    %v2753 = vunpack.c.h.b16 %v2412
    %v2754 = vunpack.c.l.b16 %v2413
    %v2755 = vunpack.c.h.b16 %v2413
    %v2756 = vunpack.c.l.b16 %v2414
    %v2757 = vunpack.c.h.b16 %v2414
    %v2758 = vunpack.c.l.b16 %v2415
    %v2759 = vunpack.c.h.b16 %v2415
    %v2760 = vunpack.c.l.b16 %v2416
    %v2761 = vunpack.c.h.b16 %v2416
    %v2762 = vunpack.c.l.b16 %v2417
    %v2763 = vunpack.c.h.b16 %v2417
    %v2764 = vunpack.c.l.b16 %v2418
    %v2765 = vunpack.c.h.b16 %v2418
    %v2766 = vunpack.c.l.b16 %v2419
    %v2767 = vunpack.c.h.b16 %v2419
    %v2768 = vunpack.c.l.b16 %v2420
    %v2769 = vunpack.c.h.b16 %v2420
    %v2770 = vunpack.c.l.b16 %v2421
    %v2771 = vunpack.c.h.b16 %v2421
    %v2772 = vunpack.c.l.b16 %v2422
    %v2773 = vunpack.c.h.b16 %v2422
    %v2774 = vunpack.c.l.b16 %v2423
    %v2775 = vunpack.c.h.b16 %v2423
    %v2776 = vunpack.c.l.b16 %v2424
    %v2777 = vunpack.c.h.b16 %v2424
    %v2778 = vunpack.c.l.b16 %v2425
    %v2779 = vunpack.c.h.b16 %v2425
    %v2780 = vunpack.c.l.b16 %v2426
    %v2781 = vunpack.c.h.b16 %v2426
    %v2782 = vunpack.c.l.b16 %v2427
    %v2783 = vunpack.c.h.b16 %v2427
    %v2784 = vunpack.c.l.b16 %v2428
    %v2785 = vunpack.c.h.b16 %v2428
    %v2786 = vunpack.c.l.b16 %v2429
    %v2787 = vunpack.c.h.b16 %v2429
    %v2788 = vunpack.c.l.b16 %v2430
    %v2789 = vunpack.c.h.b16 %v2430
    %v2790 = vunpack.c.l.b16 %v2431
    %v2791 = vunpack.c.h.b16 %v2431
    %v2792 = vpack.c.b16 %v2696, %v2664
    %v2793 = vpack.c.b16 %v2697, %v2665
    %v2794 = vpack.c.b16 %v2698, %v2666
    %v2795 = vpack.c.b16 %v2699, %v2667
    %v2796 = vpack.c.b16 %v2700, %v2668
    %v2797 = vpack.c.b16 %v2701, %v2669
    %v2798 = vpack.c.b16 %v2702, %v2670
    %v2799 = vpack.c.b16 %v2703, %v2671
    %v2800 = vpack.c.b16 %v2704, %v2672
    %v2801 = vpack.c.b16 %v2705, %v2673
    %v2802 = vpack.c.b16 %v2706, %v2674
    %v2803 = vpack.c.b16 %v2707, %v2675
    %v2804 = vpack.c.b16 %v2708, %v2676
    %v2805 = vpack.c.b16 %v2709, %v2677
    %v2806 = vpack.c.b16 %v2710, %v2678
    %v2807 = vpack.c.b16 %v2711, %v2679
    %v2808 = vpack.c.b16 %v2712, %v2680
    %v2809 = vpack.c.b16 %v2713, %v2681
    %v2810 = vpack.c.b16 %v2714, %v2682
    %v2811 = vpack.c.b16 %v2715, %v2683
    %v2812 = vpack.c.b16 %v2716, %v2684
    %v2813 = vpack.c.b16 %v2717, %v2685
    %v2814 = vpack.c.b16 %v2718, %v2686
    %v2815 = vpack.c.b16 %v2719, %v2687
    %v2816 = vpack.c.b16 %v2720, %v2688
    %v2817 = vpack.c.b16 %v2721, %v2689
    %v2818 = vpack.c.b16 %v2722, %v2690
    %v2819 = vpack.c.b16 %v2723, %v2691
    %v2820 = vpack.c.b16 %v2724, %v2692
    %v2821 = vpack.c.b16 %v2725, %v2693
    %v2822 = vpack.c.b16 %v2726, %v2694
    %v2823 = vpack.c.b16 %v2727, %v2695
    %v2824 = vpack.c.b16 %v2760, %v2728
    %v2825 = vpack.c.b16 %v2761, %v2729
    %v2826 = vpack.c.b16 %v2762, %v2730
    %v2827 = vpack.c.b16 %v2763, %v2731
    %v2828 = vpack.c.b16 %v2764, %v2732
    %v2829 = vpack.c.b16 %v2765, %v2733
    %v2830 = vpack.c.b16 %v2766, %v2734
    %v2831 = vpack.c.b16 %v2767, %v2735
    %v2832 = vpack.c.b16 %v2768, %v2736
    %v2833 = vpack.c.b16 %v2769, %v2737
    %v2834 = vpack.c.b16 %v2770, %v2738
    %v2835 = vpack.c.b16 %v2771, %v2739
    %v2836 = vpack.c.b16 %v2772, %v2740
    %v2837 = vpack.c.b16 %v2773, %v2741
    %v2838 = vpack.c.b16 %v2774, %v2742
    %v2839 = vpack.c.b16 %v2775, %v2743
    %v2840 = vpack.c.b16 %v2776, %v2744
    %v2841 = vpack.c.b16 %v2777, %v2745
    %v2842 = vpack.c.b16 %v2778, %v2746
    %v2843 = vpack.c.b16 %v2779, %v2747
    %v2844 = vpack.c.b16 %v2780, %v2748
    %v2845 = vpack.c.b16 %v2781, %v2749
    %v2846 = vpack.c.b16 %v2782, %v2750
    %v2847 = vpack.c.b16 %v2783, %v2751
    %v2848 = vpack.c.b16 %v2784, %v2752
    %v2849 = vpack.c.b16 %v2785, %v2753
    %v2850 = vpack.c.b16 %v2786, %v2754
    %v2851 = vpack.c.b16 %v2787, %v2755
    %v2852 = vpack.c.b16 %v2788, %v2756
    %v2853 = vpack.c.b16 %v2789, %v2757
    %v2854 = vpack.c.b16 %v2790, %v2758
    %v2855 = vpack.c.b16 %v2791, %v2759
    %v2921 = vsel %vm2202, %v2367, 0
    %2923 = vmatprep.subr.bf16.mxu0 %v2793
    %2924 = vmatpush1.bf16.msra.mxu0 %v2792
    %2925 = vmatprep.subr.bf16.mxu0 %v2825
    %2926 = vmatpush1.bf16.msra.mxu0 %v2824
    %2927 = vmatprep.subr.bf16.mxu0 0
    %2928 = vmatpush1.bf16.msra.mxu0 0
    %2929 = vmatprep.subr.bf16.mxu0 0
    %2930 = vmatpush1.bf16.msra.mxu0 0
    %2931 = vmatprep.subr.bf16.mxu0 0
    %2932 = vmatpush1.bf16.msra.mxu0 0
    %2933 = vmatprep.subr.bf16.mxu0 0
    %2934 = vmatpush1.bf16.msra.mxu0 0
    %2935 = vmatprep.subr.bf16.mxu0 0
    %2936 = vmatpush1.bf16.msra.mxu0 0
    %2937 = vmatprep.subr.bf16.mxu0 0
    %2938 = vmatpush1.bf16.msra.mxu0 0
    %2939 = vmatprep.subr.bf16.mxu0 0
    %2940 = vmatpush1.bf16.msra.mxu0 0
    %2941 = vmatprep.subr.bf16.mxu0 0
    %2942 = vmatpush1.bf16.msra.mxu0 0
    %2943 = vmatprep.subr.bf16.mxu0 0
    %2944 = vmatpush1.bf16.msra.mxu0 0
    %2945 = vmatprep.subr.bf16.mxu0 0
    %2946 = vmatpush1.bf16.msra.mxu0 0
    %2947 = vmatprep.subr.bf16.mxu0 0
    %2948 = vmatpush1.bf16.msra.mxu0 0
    %2949 = vmatprep.subr.bf16.mxu0 0
    %2950 = vmatpush1.bf16.msra.mxu0 0
    %2951 = vmatprep.subr.bf16.mxu0 0
    %2952 = vmatpush1.bf16.msra.mxu0 0
    %2953 = vmatprep.subr.bf16.mxu0 0
    %2954 = vmatpush1.bf16.msra.mxu0 0
    %2955 = vmatprep.mubr.bf16.mxu0 0
    %2956 = vmatmul.mubr.bf16.gmra.mrb[0].mxu0 %v2921
    %v2957 = vpop.f32.mrb[0].mxu0
    %v2958 = vadd.f32 %v2443, %v2957
    %v2959 = vpop.f32.mrb[0].mxu0
    %v2960 = vadd.f32 %v2447, %v2959
    %v2961 = vpop.f32.mrb[0].mxu0
    %v2962 = vpop.f32.mrb[0].mxu0
    %2963 = vdwg.mxu0
    %2964 = vmatprep.subr.bf16.mxu0 %v2795
    %2965 = vmatpush1.bf16.msra.mxu0 %v2794
    %2966 = vmatprep.subr.bf16.mxu0 %v2827
    %2967 = vmatpush1.bf16.msra.mxu0 %v2826
    %2968 = vmatprep.subr.bf16.mxu0 0
    %2969 = vmatpush1.bf16.msra.mxu0 0
    %2970 = vmatprep.subr.bf16.mxu0 0
    %2971 = vmatpush1.bf16.msra.mxu0 0
    %2972 = vmatprep.subr.bf16.mxu0 0
    %2973 = vmatpush1.bf16.msra.mxu0 0
    %2974 = vmatprep.subr.bf16.mxu0 0
    %2975 = vmatpush1.bf16.msra.mxu0 0
    %2976 = vmatprep.subr.bf16.mxu0 0
    %2977 = vmatpush1.bf16.msra.mxu0 0
    %2978 = vmatprep.subr.bf16.mxu0 0
    %2979 = vmatpush1.bf16.msra.mxu0 0
    %2980 = vmatprep.subr.bf16.mxu0 0
    %2981 = vmatpush1.bf16.msra.mxu0 0
    %2982 = vmatprep.subr.bf16.mxu0 0
    %2983 = vmatpush1.bf16.msra.mxu0 0
    %2984 = vmatprep.subr.bf16.mxu0 0
    %2985 = vmatpush1.bf16.msra.mxu0 0
    %2986 = vmatprep.subr.bf16.mxu0 0
    %2987 = vmatpush1.bf16.msra.mxu0 0
    %2988 = vmatprep.subr.bf16.mxu0 0
    %2989 = vmatpush1.bf16.msra.mxu0 0
    %2990 = vmatprep.subr.bf16.mxu0 0
    %2991 = vmatpush1.bf16.msra.mxu0 0
    %2992 = vmatprep.subr.bf16.mxu0 0
    %2993 = vmatpush1.bf16.msra.mxu0 0
    %2994 = vmatprep.subr.bf16.mxu0 0
    %2995 = vmatpush1.bf16.msra.mxu0 0
    %2996 = vmatprep.mubr.bf16.mxu0 0
    %2997 = vmatmul.mubr.bf16.gmra.mrb[0].mxu0 %v2921
    %v2998 = vpop.f32.mrb[0].mxu0
    %v2999 = vadd.f32 %v2451, %v2998
    %v3000 = vpop.f32.mrb[0].mxu0
    %v3001 = vadd.f32 %v2455, %v3000
    %v3002 = vpop.f32.mrb[0].mxu0
    %v3003 = vpop.f32.mrb[0].mxu0
    %3004 = vdwg.mxu0
    %3005 = vmatprep.subr.bf16.mxu0 %v2797
    %3006 = vmatpush1.bf16.msra.mxu0 %v2796
    %3007 = vmatprep.subr.bf16.mxu0 %v2829
    %3008 = vmatpush1.bf16.msra.mxu0 %v2828
    %3009 = vmatprep.subr.bf16.mxu0 0
    %3010 = vmatpush1.bf16.msra.mxu0 0
    %3011 = vmatprep.subr.bf16.mxu0 0
    %3012 = vmatpush1.bf16.msra.mxu0 0
    %3013 = vmatprep.subr.bf16.mxu0 0
    %3014 = vmatpush1.bf16.msra.mxu0 0
    %3015 = vmatprep.subr.bf16.mxu0 0
    %3016 = vmatpush1.bf16.msra.mxu0 0
    %3017 = vmatprep.subr.bf16.mxu0 0
    %3018 = vmatpush1.bf16.msra.mxu0 0
    %3019 = vmatprep.subr.bf16.mxu0 0
    %3020 = vmatpush1.bf16.msra.mxu0 0
    %3021 = vmatprep.subr.bf16.mxu0 0
    %3022 = vmatpush1.bf16.msra.mxu0 0
    %3023 = vmatprep.subr.bf16.mxu0 0
    %3024 = vmatpush1.bf16.msra.mxu0 0
    %3025 = vmatprep.subr.bf16.mxu0 0
    %3026 = vmatpush1.bf16.msra.mxu0 0
    %3027 = vmatprep.subr.bf16.mxu0 0
    %3028 = vmatpush1.bf16.msra.mxu0 0
    %3029 = vmatprep.subr.bf16.mxu0 0
    %3030 = vmatpush1.bf16.msra.mxu0 0
    %3031 = vmatprep.subr.bf16.mxu0 0
    %3032 = vmatpush1.bf16.msra.mxu0 0
    %3033 = vmatprep.subr.bf16.mxu0 0
    %3034 = vmatpush1.bf16.msra.mxu0 0
    %3035 = vmatprep.subr.bf16.mxu0 0
    %3036 = vmatpush1.bf16.msra.mxu0 0
    %3037 = vmatprep.mubr.bf16.mxu0 0
    %3038 = vmatmul.mubr.bf16.gmra.mrb[0].mxu0 %v2921
    %v3039 = vpop.f32.mrb[0].mxu0
    %v3040 = vadd.f32 %v2459, %v3039
    %v3041 = vpop.f32.mrb[0].mxu0
    %v3042 = vadd.f32 %v2463, %v3041
    %v3043 = vpop.f32.mrb[0].mxu0
    %v3044 = vpop.f32.mrb[0].mxu0
    %3045 = vdwg.mxu0
    %3046 = vmatprep.subr.bf16.mxu0 %v2799
    %3047 = vmatpush1.bf16.msra.mxu0 %v2798
    %3048 = vmatprep.subr.bf16.mxu0 %v2831
    %3049 = vmatpush1.bf16.msra.mxu0 %v2830
    %3050 = vmatprep.subr.bf16.mxu0 0
    %3051 = vmatpush1.bf16.msra.mxu0 0
    %3052 = vmatprep.subr.bf16.mxu0 0
    %3053 = vmatpush1.bf16.msra.mxu0 0
    %3054 = vmatprep.subr.bf16.mxu0 0
    %3055 = vmatpush1.bf16.msra.mxu0 0
    %3056 = vmatprep.subr.bf16.mxu0 0
    %3057 = vmatpush1.bf16.msra.mxu0 0
    %3058 = vmatprep.subr.bf16.mxu0 0
    %3059 = vmatpush1.bf16.msra.mxu0 0
    %3060 = vmatprep.subr.bf16.mxu0 0
    %3061 = vmatpush1.bf16.msra.mxu0 0
    %3062 = vmatprep.subr.bf16.mxu0 0
    %3063 = vmatpush1.bf16.msra.mxu0 0
    %3064 = vmatprep.subr.bf16.mxu0 0
    %3065 = vmatpush1.bf16.msra.mxu0 0
    %3066 = vmatprep.subr.bf16.mxu0 0
    %3067 = vmatpush1.bf16.msra.mxu0 0
    %3068 = vmatprep.subr.bf16.mxu0 0
    %3069 = vmatpush1.bf16.msra.mxu0 0
    %3070 = vmatprep.subr.bf16.mxu0 0
    %3071 = vmatpush1.bf16.msra.mxu0 0
    %3072 = vmatprep.subr.bf16.mxu0 0
    %3073 = vmatpush1.bf16.msra.mxu0 0
    %3074 = vmatprep.subr.bf16.mxu0 0
    %3075 = vmatpush1.bf16.msra.mxu0 0
    %3076 = vmatprep.subr.bf16.mxu0 0
    %3077 = vmatpush1.bf16.msra.mxu0 0
    %3078 = vmatprep.mubr.bf16.mxu0 0
    %3079 = vmatmul.mubr.bf16.gmra.mrb[0].mxu0 %v2921
    %v3080 = vpop.f32.mrb[0].mxu0
    %v3081 = vadd.f32 %v2467, %v3080
    %v3082 = vpop.f32.mrb[0].mxu0
    %v3083 = vadd.f32 %v2471, %v3082
    %v3084 = vpop.f32.mrb[0].mxu0
    %v3085 = vpop.f32.mrb[0].mxu0
    %3086 = vdwg.mxu0
    %3087 = vmatprep.subr.bf16.mxu0 %v2801
    %3088 = vmatpush1.bf16.msra.mxu0 %v2800
    %3089 = vmatprep.subr.bf16.mxu0 %v2833
    %3090 = vmatpush1.bf16.msra.mxu0 %v2832
    %3091 = vmatprep.subr.bf16.mxu0 0
    %3092 = vmatpush1.bf16.msra.mxu0 0
    %3093 = vmatprep.subr.bf16.mxu0 0
    %3094 = vmatpush1.bf16.msra.mxu0 0
    %3095 = vmatprep.subr.bf16.mxu0 0
    %3096 = vmatpush1.bf16.msra.mxu0 0
    %3097 = vmatprep.subr.bf16.mxu0 0
    %3098 = vmatpush1.bf16.msra.mxu0 0
    %3099 = vmatprep.subr.bf16.mxu0 0
    %3100 = vmatpush1.bf16.msra.mxu0 0
    %3101 = vmatprep.subr.bf16.mxu0 0
    %3102 = vmatpush1.bf16.msra.mxu0 0
    %3103 = vmatprep.subr.bf16.mxu0 0
    %3104 = vmatpush1.bf16.msra.mxu0 0
    %3105 = vmatprep.subr.bf16.mxu0 0
    %3106 = vmatpush1.bf16.msra.mxu0 0
    %3107 = vmatprep.subr.bf16.mxu0 0
    %3108 = vmatpush1.bf16.msra.mxu0 0
    %3109 = vmatprep.subr.bf16.mxu0 0
    %3110 = vmatpush1.bf16.msra.mxu0 0
    %3111 = vmatprep.subr.bf16.mxu0 0
    %3112 = vmatpush1.bf16.msra.mxu0 0
    %3113 = vmatprep.subr.bf16.mxu0 0
    %3114 = vmatpush1.bf16.msra.mxu0 0
    %3115 = vmatprep.subr.bf16.mxu0 0
    %3116 = vmatpush1.bf16.msra.mxu0 0
    %3117 = vmatprep.subr.bf16.mxu0 0
    %3118 = vmatpush1.bf16.msra.mxu0 0
    %3119 = vmatprep.mubr.bf16.mxu0 0
    %3120 = vmatmul.mubr.bf16.gmra.mrb[0].mxu0 %v2921
    %v3121 = vpop.f32.mrb[0].mxu0
    %v3122 = vadd.f32 %v2475, %v3121
    %v3123 = vpop.f32.mrb[0].mxu0
    %v3124 = vadd.f32 %v2479, %v3123
    %v3125 = vpop.f32.mrb[0].mxu0
    %v3126 = vpop.f32.mrb[0].mxu0
    %3127 = vdwg.mxu0
    %3128 = vmatprep.subr.bf16.mxu0 %v2803
    %3129 = vmatpush1.bf16.msra.mxu0 %v2802
    %3130 = vmatprep.subr.bf16.mxu0 %v2835
    %3131 = vmatpush1.bf16.msra.mxu0 %v2834
    %3132 = vmatprep.subr.bf16.mxu0 0
    %3133 = vmatpush1.bf16.msra.mxu0 0
    %3134 = vmatprep.subr.bf16.mxu0 0
    %3135 = vmatpush1.bf16.msra.mxu0 0
    %3136 = vmatprep.subr.bf16.mxu0 0
    %3137 = vmatpush1.bf16.msra.mxu0 0
    %3138 = vmatprep.subr.bf16.mxu0 0
    %3139 = vmatpush1.bf16.msra.mxu0 0
    %3140 = vmatprep.subr.bf16.mxu0 0
    %3141 = vmatpush1.bf16.msra.mxu0 0
    %3142 = vmatprep.subr.bf16.mxu0 0
    %3143 = vmatpush1.bf16.msra.mxu0 0
    %3144 = vmatprep.subr.bf16.mxu0 0
    %3145 = vmatpush1.bf16.msra.mxu0 0
    %3146 = vmatprep.subr.bf16.mxu0 0
    %3147 = vmatpush1.bf16.msra.mxu0 0
    %3148 = vmatprep.subr.bf16.mxu0 0
    %3149 = vmatpush1.bf16.msra.mxu0 0
    %3150 = vmatprep.subr.bf16.mxu0 0
    %3151 = vmatpush1.bf16.msra.mxu0 0
    %3152 = vmatprep.subr.bf16.mxu0 0
    %3153 = vmatpush1.bf16.msra.mxu0 0
    %3154 = vmatprep.subr.bf16.mxu0 0
    %3155 = vmatpush1.bf16.msra.mxu0 0
    %3156 = vmatprep.subr.bf16.mxu0 0
    %3157 = vmatpush1.bf16.msra.mxu0 0
    %3158 = vmatprep.subr.bf16.mxu0 0
    %3159 = vmatpush1.bf16.msra.mxu0 0
    %3160 = vmatprep.mubr.bf16.mxu0 0
    %3161 = vmatmul.mubr.bf16.gmra.mrb[0].mxu0 %v2921
    %v3162 = vpop.f32.mrb[0].mxu0
    %v3163 = vadd.f32 %v2483, %v3162
    %v3164 = vpop.f32.mrb[0].mxu0
    %v3165 = vadd.f32 %v2487, %v3164
    %v3166 = vpop.f32.mrb[0].mxu0
    %v3167 = vpop.f32.mrb[0].mxu0
    %3168 = vdwg.mxu0
    %3169 = vmatprep.subr.bf16.mxu0 %v2805
    %3170 = vmatpush1.bf16.msra.mxu0 %v2804
    %3171 = vmatprep.subr.bf16.mxu0 %v2837
    %3172 = vmatpush1.bf16.msra.mxu0 %v2836
    %3173 = vmatprep.subr.bf16.mxu0 0
    %3174 = vmatpush1.bf16.msra.mxu0 0
    %3175 = vmatprep.subr.bf16.mxu0 0
    %3176 = vmatpush1.bf16.msra.mxu0 0
    %3177 = vmatprep.subr.bf16.mxu0 0
    %3178 = vmatpush1.bf16.msra.mxu0 0
    %3179 = vmatprep.subr.bf16.mxu0 0
    %3180 = vmatpush1.bf16.msra.mxu0 0
    %3181 = vmatprep.subr.bf16.mxu0 0
    %3182 = vmatpush1.bf16.msra.mxu0 0
    %3183 = vmatprep.subr.bf16.mxu0 0
    %3184 = vmatpush1.bf16.msra.mxu0 0
    %3185 = vmatprep.subr.bf16.mxu0 0
    %3186 = vmatpush1.bf16.msra.mxu0 0
    %3187 = vmatprep.subr.bf16.mxu0 0
    %3188 = vmatpush1.bf16.msra.mxu0 0
    %3189 = vmatprep.subr.bf16.mxu0 0
    %3190 = vmatpush1.bf16.msra.mxu0 0
    %3191 = vmatprep.subr.bf16.mxu0 0
    %3192 = vmatpush1.bf16.msra.mxu0 0
    %3193 = vmatprep.subr.bf16.mxu0 0
    %3194 = vmatpush1.bf16.msra.mxu0 0
    %3195 = vmatprep.subr.bf16.mxu0 0
    %3196 = vmatpush1.bf16.msra.mxu0 0
    %3197 = vmatprep.subr.bf16.mxu0 0
    %3198 = vmatpush1.bf16.msra.mxu0 0
    %3199 = vmatprep.subr.bf16.mxu0 0
    %3200 = vmatpush1.bf16.msra.mxu0 0
    %3201 = vmatprep.mubr.bf16.mxu0 0
    %3202 = vmatmul.mubr.bf16.gmra.mrb[0].mxu0 %v2921
    %v3203 = vpop.f32.mrb[0].mxu0
    %v3204 = vadd.f32 %v2491, %v3203
    %v3205 = vpop.f32.mrb[0].mxu0
    %v3206 = vadd.f32 %v2495, %v3205
    %v3207 = vpop.f32.mrb[0].mxu0
    %v3208 = vpop.f32.mrb[0].mxu0
    %3209 = vdwg.mxu0
    %3210 = vmatprep.subr.bf16.mxu0 %v2807
    %3211 = vmatpush1.bf16.msra.mxu0 %v2806
    %3212 = vmatprep.subr.bf16.mxu0 %v2839
    %3213 = vmatpush1.bf16.msra.mxu0 %v2838
    %3214 = vmatprep.subr.bf16.mxu0 0
    %3215 = vmatpush1.bf16.msra.mxu0 0
    %3216 = vmatprep.subr.bf16.mxu0 0
    %3217 = vmatpush1.bf16.msra.mxu0 0
    %3218 = vmatprep.subr.bf16.mxu0 0
    %3219 = vmatpush1.bf16.msra.mxu0 0
    %3220 = vmatprep.subr.bf16.mxu0 0
    %3221 = vmatpush1.bf16.msra.mxu0 0
    %3222 = vmatprep.subr.bf16.mxu0 0
    %3223 = vmatpush1.bf16.msra.mxu0 0
    %3224 = vmatprep.subr.bf16.mxu0 0
    %3225 = vmatpush1.bf16.msra.mxu0 0
    %3226 = vmatprep.subr.bf16.mxu0 0
    %3227 = vmatpush1.bf16.msra.mxu0 0
    %3228 = vmatprep.subr.bf16.mxu0 0
    %3229 = vmatpush1.bf16.msra.mxu0 0
    %3230 = vmatprep.subr.bf16.mxu0 0
    %3231 = vmatpush1.bf16.msra.mxu0 0
    %3232 = vmatprep.subr.bf16.mxu0 0
    %3233 = vmatpush1.bf16.msra.mxu0 0
    %3234 = vmatprep.subr.bf16.mxu0 0
    %3235 = vmatpush1.bf16.msra.mxu0 0
    %3236 = vmatprep.subr.bf16.mxu0 0
    %3237 = vmatpush1.bf16.msra.mxu0 0
    %3238 = vmatprep.subr.bf16.mxu0 0
    %3239 = vmatpush1.bf16.msra.mxu0 0
    %3240 = vmatprep.subr.bf16.mxu0 0
    %3241 = vmatpush1.bf16.msra.mxu0 0
    %3242 = vmatprep.mubr.bf16.mxu0 0
    %3243 = vmatmul.mubr.bf16.gmra.mrb[0].mxu0 %v2921
    %v3244 = vpop.f32.mrb[0].mxu0
    %v3245 = vadd.f32 %v2499, %v3244
    %v3246 = vpop.f32.mrb[0].mxu0
    %v3247 = vadd.f32 %v2503, %v3246
    %v3248 = vpop.f32.mrb[0].mxu0
    %v3249 = vpop.f32.mrb[0].mxu0
    %3250 = vdwg.mxu0
    %3251 = vmatprep.subr.bf16.mxu0 %v2809
    %3252 = vmatpush1.bf16.msra.mxu0 %v2808
    %3253 = vmatprep.subr.bf16.mxu0 %v2841
    %3254 = vmatpush1.bf16.msra.mxu0 %v2840
    %3255 = vmatprep.subr.bf16.mxu0 0
    %3256 = vmatpush1.bf16.msra.mxu0 0
    %3257 = vmatprep.subr.bf16.mxu0 0
    %3258 = vmatpush1.bf16.msra.mxu0 0
    %3259 = vmatprep.subr.bf16.mxu0 0
    %3260 = vmatpush1.bf16.msra.mxu0 0
    %3261 = vmatprep.subr.bf16.mxu0 0
    %3262 = vmatpush1.bf16.msra.mxu0 0
    %3263 = vmatprep.subr.bf16.mxu0 0
    %3264 = vmatpush1.bf16.msra.mxu0 0
    %3265 = vmatprep.subr.bf16.mxu0 0
    %3266 = vmatpush1.bf16.msra.mxu0 0
    %3267 = vmatprep.subr.bf16.mxu0 0
    %3268 = vmatpush1.bf16.msra.mxu0 0
    %3269 = vmatprep.subr.bf16.mxu0 0
    %3270 = vmatpush1.bf16.msra.mxu0 0
    %3271 = vmatprep.subr.bf16.mxu0 0
    %3272 = vmatpush1.bf16.msra.mxu0 0
    %3273 = vmatprep.subr.bf16.mxu0 0
    %3274 = vmatpush1.bf16.msra.mxu0 0
    %3275 = vmatprep.subr.bf16.mxu0 0
    %3276 = vmatpush1.bf16.msra.mxu0 0
    %3277 = vmatprep.subr.bf16.mxu0 0
    %3278 = vmatpush1.bf16.msra.mxu0 0
    %3279 = vmatprep.subr.bf16.mxu0 0
    %3280 = vmatpush1.bf16.msra.mxu0 0
    %3281 = vmatprep.subr.bf16.mxu0 0
    %3282 = vmatpush1.bf16.msra.mxu0 0
    %3283 = vmatprep.mubr.bf16.mxu0 0
    %3284 = vmatmul.mubr.bf16.gmra.mrb[0].mxu0 %v2921
    %v3285 = vpop.f32.mrb[0].mxu0
    %v3286 = vadd.f32 %v2507, %v3285
    %v3287 = vpop.f32.mrb[0].mxu0
    %v3288 = vadd.f32 %v2511, %v3287
    %v3289 = vpop.f32.mrb[0].mxu0
    %v3290 = vpop.f32.mrb[0].mxu0
    %3291 = vdwg.mxu0
    %3292 = vmatprep.subr.bf16.mxu0 %v2811
    %3293 = vmatpush1.bf16.msra.mxu0 %v2810
    %3294 = vmatprep.subr.bf16.mxu0 %v2843
    %3295 = vmatpush1.bf16.msra.mxu0 %v2842
    %3296 = vmatprep.subr.bf16.mxu0 0
    %3297 = vmatpush1.bf16.msra.mxu0 0
    %3298 = vmatprep.subr.bf16.mxu0 0
    %3299 = vmatpush1.bf16.msra.mxu0 0
    %3300 = vmatprep.subr.bf16.mxu0 0
    %3301 = vmatpush1.bf16.msra.mxu0 0
    %3302 = vmatprep.subr.bf16.mxu0 0
    %3303 = vmatpush1.bf16.msra.mxu0 0
    %3304 = vmatprep.subr.bf16.mxu0 0
    %3305 = vmatpush1.bf16.msra.mxu0 0
    %3306 = vmatprep.subr.bf16.mxu0 0
    %3307 = vmatpush1.bf16.msra.mxu0 0
    %3308 = vmatprep.subr.bf16.mxu0 0
    %3309 = vmatpush1.bf16.msra.mxu0 0
    %3310 = vmatprep.subr.bf16.mxu0 0
    %3311 = vmatpush1.bf16.msra.mxu0 0
    %3312 = vmatprep.subr.bf16.mxu0 0
    %3313 = vmatpush1.bf16.msra.mxu0 0
    %3314 = vmatprep.subr.bf16.mxu0 0
    %3315 = vmatpush1.bf16.msra.mxu0 0
    %3316 = vmatprep.subr.bf16.mxu0 0
    %3317 = vmatpush1.bf16.msra.mxu0 0
    %3318 = vmatprep.subr.bf16.mxu0 0
    %3319 = vmatpush1.bf16.msra.mxu0 0
    %3320 = vmatprep.subr.bf16.mxu0 0
    %3321 = vmatpush1.bf16.msra.mxu0 0
    %3322 = vmatprep.subr.bf16.mxu0 0
    %3323 = vmatpush1.bf16.msra.mxu0 0
    %3324 = vmatprep.mubr.bf16.mxu0 0
    %3325 = vmatmul.mubr.bf16.gmra.mrb[0].mxu0 %v2921
    %v3326 = vpop.f32.mrb[0].mxu0
    %v3327 = vadd.f32 %v2515, %v3326
    %v3328 = vpop.f32.mrb[0].mxu0
    %v3329 = vadd.f32 %v2519, %v3328
    %v3330 = vpop.f32.mrb[0].mxu0
    %v3331 = vpop.f32.mrb[0].mxu0
    %3332 = vdwg.mxu0
    %3333 = vmatprep.subr.bf16.mxu0 %v2813
    %3334 = vmatpush1.bf16.msra.mxu0 %v2812
    %3335 = vmatprep.subr.bf16.mxu0 %v2845
    %3336 = vmatpush1.bf16.msra.mxu0 %v2844
    %3337 = vmatprep.subr.bf16.mxu0 0
    %3338 = vmatpush1.bf16.msra.mxu0 0
    %3339 = vmatprep.subr.bf16.mxu0 0
    %3340 = vmatpush1.bf16.msra.mxu0 0
    %3341 = vmatprep.subr.bf16.mxu0 0
    %3342 = vmatpush1.bf16.msra.mxu0 0
    %3343 = vmatprep.subr.bf16.mxu0 0
    %3344 = vmatpush1.bf16.msra.mxu0 0
    %3345 = vmatprep.subr.bf16.mxu0 0
    %3346 = vmatpush1.bf16.msra.mxu0 0
    %3347 = vmatprep.subr.bf16.mxu0 0
    %3348 = vmatpush1.bf16.msra.mxu0 0
    %3349 = vmatprep.subr.bf16.mxu0 0
    %3350 = vmatpush1.bf16.msra.mxu0 0
    %3351 = vmatprep.subr.bf16.mxu0 0
    %3352 = vmatpush1.bf16.msra.mxu0 0
    %3353 = vmatprep.subr.bf16.mxu0 0
    %3354 = vmatpush1.bf16.msra.mxu0 0
    %3355 = vmatprep.subr.bf16.mxu0 0
    %3356 = vmatpush1.bf16.msra.mxu0 0
    %3357 = vmatprep.subr.bf16.mxu0 0
    %3358 = vmatpush1.bf16.msra.mxu0 0
    %3359 = vmatprep.subr.bf16.mxu0 0
    %3360 = vmatpush1.bf16.msra.mxu0 0
    %3361 = vmatprep.subr.bf16.mxu0 0
    %3362 = vmatpush1.bf16.msra.mxu0 0
    %3363 = vmatprep.subr.bf16.mxu0 0
    %3364 = vmatpush1.bf16.msra.mxu0 0
    %3365 = vmatprep.mubr.bf16.mxu0 0
    %3366 = vmatmul.mubr.bf16.gmra.mrb[0].mxu0 %v2921
    %v3367 = vpop.f32.mrb[0].mxu0
    %v3368 = vadd.f32 %v2523, %v3367
    %v3369 = vpop.f32.mrb[0].mxu0
    %v3370 = vadd.f32 %v2527, %v3369
    %v3371 = vpop.f32.mrb[0].mxu0
    %v3372 = vpop.f32.mrb[0].mxu0
    %3373 = vdwg.mxu0
    %3374 = vmatprep.subr.bf16.mxu0 %v2815
    %3375 = vmatpush1.bf16.msra.mxu0 %v2814
    %3376 = vmatprep.subr.bf16.mxu0 %v2847
    %3377 = vmatpush1.bf16.msra.mxu0 %v2846
    %3378 = vmatprep.subr.bf16.mxu0 0
    %3379 = vmatpush1.bf16.msra.mxu0 0
    %3380 = vmatprep.subr.bf16.mxu0 0
    %3381 = vmatpush1.bf16.msra.mxu0 0
    %3382 = vmatprep.subr.bf16.mxu0 0
    %3383 = vmatpush1.bf16.msra.mxu0 0
    %3384 = vmatprep.subr.bf16.mxu0 0
    %3385 = vmatpush1.bf16.msra.mxu0 0
    %3386 = vmatprep.subr.bf16.mxu0 0
    %3387 = vmatpush1.bf16.msra.mxu0 0
    %3388 = vmatprep.subr.bf16.mxu0 0
    %3389 = vmatpush1.bf16.msra.mxu0 0
    %3390 = vmatprep.subr.bf16.mxu0 0
    %3391 = vmatpush1.bf16.msra.mxu0 0
    %3392 = vmatprep.subr.bf16.mxu0 0
    %3393 = vmatpush1.bf16.msra.mxu0 0
    %3394 = vmatprep.subr.bf16.mxu0 0
    %3395 = vmatpush1.bf16.msra.mxu0 0
    %3396 = vmatprep.subr.bf16.mxu0 0
    %3397 = vmatpush1.bf16.msra.mxu0 0
    %3398 = vmatprep.subr.bf16.mxu0 0
    %3399 = vmatpush1.bf16.msra.mxu0 0
    %3400 = vmatprep.subr.bf16.mxu0 0
    %3401 = vmatpush1.bf16.msra.mxu0 0
    %3402 = vmatprep.subr.bf16.mxu0 0
    %3403 = vmatpush1.bf16.msra.mxu0 0
    %3404 = vmatprep.subr.bf16.mxu0 0
    %3405 = vmatpush1.bf16.msra.mxu0 0
    %3406 = vmatprep.mubr.bf16.mxu0 0
    %3407 = vmatmul.mubr.bf16.gmra.mrb[0].mxu0 %v2921
    %v3408 = vpop.f32.mrb[0].mxu0
    %v3409 = vadd.f32 %v2531, %v3408
    %v3410 = vpop.f32.mrb[0].mxu0
    %v3411 = vadd.f32 %v2535, %v3410
    %v3412 = vpop.f32.mrb[0].mxu0
    %v3413 = vpop.f32.mrb[0].mxu0
    %3414 = vdwg.mxu0
    %3415 = vmatprep.subr.bf16.mxu0 %v2817
    %3416 = vmatpush1.bf16.msra.mxu0 %v2816
    %3417 = vmatprep.subr.bf16.mxu0 %v2849
    %3418 = vmatpush1.bf16.msra.mxu0 %v2848
    %3419 = vmatprep.subr.bf16.mxu0 0
    %3420 = vmatpush1.bf16.msra.mxu0 0
    %3421 = vmatprep.subr.bf16.mxu0 0
    %3422 = vmatpush1.bf16.msra.mxu0 0
    %3423 = vmatprep.subr.bf16.mxu0 0
    %3424 = vmatpush1.bf16.msra.mxu0 0
    %3425 = vmatprep.subr.bf16.mxu0 0
    %3426 = vmatpush1.bf16.msra.mxu0 0
    %3427 = vmatprep.subr.bf16.mxu0 0
    %3428 = vmatpush1.bf16.msra.mxu0 0
    %3429 = vmatprep.subr.bf16.mxu0 0
    %3430 = vmatpush1.bf16.msra.mxu0 0
    %3431 = vmatprep.subr.bf16.mxu0 0
    %3432 = vmatpush1.bf16.msra.mxu0 0
    %3433 = vmatprep.subr.bf16.mxu0 0
    %3434 = vmatpush1.bf16.msra.mxu0 0
    %3435 = vmatprep.subr.bf16.mxu0 0
    %3436 = vmatpush1.bf16.msra.mxu0 0
    %3437 = vmatprep.subr.bf16.mxu0 0
    %3438 = vmatpush1.bf16.msra.mxu0 0
    %3439 = vmatprep.subr.bf16.mxu0 0
    %3440 = vmatpush1.bf16.msra.mxu0 0
    %3441 = vmatprep.subr.bf16.mxu0 0
    %3442 = vmatpush1.bf16.msra.mxu0 0
    %3443 = vmatprep.subr.bf16.mxu0 0
    %3444 = vmatpush1.bf16.msra.mxu0 0
    %3445 = vmatprep.subr.bf16.mxu0 0
    %3446 = vmatpush1.bf16.msra.mxu0 0
    %3447 = vmatprep.mubr.bf16.mxu0 0
    %3448 = vmatmul.mubr.bf16.gmra.mrb[0].mxu0 %v2921
    %v3449 = vpop.f32.mrb[0].mxu0
    %v3450 = vadd.f32 %v2539, %v3449
    %v3451 = vpop.f32.mrb[0].mxu0
    %v3452 = vadd.f32 %v2543, %v3451
    %v3453 = vpop.f32.mrb[0].mxu0
    %v3454 = vpop.f32.mrb[0].mxu0
    %3455 = vdwg.mxu0
    %3456 = vmatprep.subr.bf16.mxu0 %v2819
    %3457 = vmatpush1.bf16.msra.mxu0 %v2818
    %3458 = vmatprep.subr.bf16.mxu0 %v2851
    %3459 = vmatpush1.bf16.msra.mxu0 %v2850
    %3460 = vmatprep.subr.bf16.mxu0 0
    %3461 = vmatpush1.bf16.msra.mxu0 0
    %3462 = vmatprep.subr.bf16.mxu0 0
    %3463 = vmatpush1.bf16.msra.mxu0 0
    %3464 = vmatprep.subr.bf16.mxu0 0
    %3465 = vmatpush1.bf16.msra.mxu0 0
    %3466 = vmatprep.subr.bf16.mxu0 0
    %3467 = vmatpush1.bf16.msra.mxu0 0
    %3468 = vmatprep.subr.bf16.mxu0 0
    %3469 = vmatpush1.bf16.msra.mxu0 0
    %3470 = vmatprep.subr.bf16.mxu0 0
    %3471 = vmatpush1.bf16.msra.mxu0 0
    %3472 = vmatprep.subr.bf16.mxu0 0
    %3473 = vmatpush1.bf16.msra.mxu0 0
    %3474 = vmatprep.subr.bf16.mxu0 0
    %3475 = vmatpush1.bf16.msra.mxu0 0
    %3476 = vmatprep.subr.bf16.mxu0 0
    %3477 = vmatpush1.bf16.msra.mxu0 0
    %3478 = vmatprep.subr.bf16.mxu0 0
    %3479 = vmatpush1.bf16.msra.mxu0 0
    %3480 = vmatprep.subr.bf16.mxu0 0
    %3481 = vmatpush1.bf16.msra.mxu0 0
    %3482 = vmatprep.subr.bf16.mxu0 0
    %3483 = vmatpush1.bf16.msra.mxu0 0
    %3484 = vmatprep.subr.bf16.mxu0 0
    %3485 = vmatpush1.bf16.msra.mxu0 0
    %3486 = vmatprep.subr.bf16.mxu0 0
    %3487 = vmatpush1.bf16.msra.mxu0 0
    %3488 = vmatprep.mubr.bf16.mxu0 0
    %3489 = vmatmul.mubr.bf16.gmra.mrb[0].mxu0 %v2921
    %v3490 = vpop.f32.mrb[0].mxu0
    %v3491 = vadd.f32 %v2547, %v3490
    %v3492 = vpop.f32.mrb[0].mxu0
    %v3493 = vadd.f32 %v2551, %v3492
    %v3494 = vpop.f32.mrb[0].mxu0
    %v3495 = vpop.f32.mrb[0].mxu0
    %3496 = vdwg.mxu0
    %3497 = vmatprep.subr.bf16.mxu0 %v2821
    %3498 = vmatpush1.bf16.msra.mxu0 %v2820
    %3499 = vmatprep.subr.bf16.mxu0 %v2853
    %3500 = vmatpush1.bf16.msra.mxu0 %v2852
    %3501 = vmatprep.subr.bf16.mxu0 0
    %3502 = vmatpush1.bf16.msra.mxu0 0
    %3503 = vmatprep.subr.bf16.mxu0 0
    %3504 = vmatpush1.bf16.msra.mxu0 0
    %3505 = vmatprep.subr.bf16.mxu0 0
    %3506 = vmatpush1.bf16.msra.mxu0 0
    %3507 = vmatprep.subr.bf16.mxu0 0
    %3508 = vmatpush1.bf16.msra.mxu0 0
    %3509 = vmatprep.subr.bf16.mxu0 0
    %3510 = vmatpush1.bf16.msra.mxu0 0
    %3511 = vmatprep.subr.bf16.mxu0 0
    %3512 = vmatpush1.bf16.msra.mxu0 0
    %3513 = vmatprep.subr.bf16.mxu0 0
    %3514 = vmatpush1.bf16.msra.mxu0 0
    %3515 = vmatprep.subr.bf16.mxu0 0
    %3516 = vmatpush1.bf16.msra.mxu0 0
    %3517 = vmatprep.subr.bf16.mxu0 0
    %3518 = vmatpush1.bf16.msra.mxu0 0
    %3519 = vmatprep.subr.bf16.mxu0 0
    %3520 = vmatpush1.bf16.msra.mxu0 0
    %3521 = vmatprep.subr.bf16.mxu0 0
    %3522 = vmatpush1.bf16.msra.mxu0 0
    %3523 = vmatprep.subr.bf16.mxu0 0
    %3524 = vmatpush1.bf16.msra.mxu0 0
    %3525 = vmatprep.subr.bf16.mxu0 0
    %3526 = vmatpush1.bf16.msra.mxu0 0
    %3527 = vmatprep.subr.bf16.mxu0 0
    %3528 = vmatpush1.bf16.msra.mxu0 0
    %3529 = vmatprep.mubr.bf16.mxu0 0
    %3530 = vmatmul.mubr.bf16.gmra.mrb[0].mxu0 %v2921
    %v3531 = vpop.f32.mrb[0].mxu0
    %v3532 = vadd.f32 %v2555, %v3531
    %v3533 = vpop.f32.mrb[0].mxu0
    %v3534 = vadd.f32 %v2559, %v3533
    %v3535 = vpop.f32.mrb[0].mxu0
    %v3536 = vpop.f32.mrb[0].mxu0
    %3537 = vdwg.mxu0
    %3538 = vmatprep.subr.bf16.mxu0 %v2823
    %3539 = vmatpush1.bf16.msra.mxu0 %v2822
    %3540 = vmatprep.subr.bf16.mxu0 %v2855
    %3541 = vmatpush1.bf16.msra.mxu0 %v2854
    %3542 = vmatprep.subr.bf16.mxu0 0
    %3543 = vmatpush1.bf16.msra.mxu0 0
    %3544 = vmatprep.subr.bf16.mxu0 0
    %3545 = vmatpush1.bf16.msra.mxu0 0
    %3546 = vmatprep.subr.bf16.mxu0 0
    %3547 = vmatpush1.bf16.msra.mxu0 0
    %3548 = vmatprep.subr.bf16.mxu0 0
    %3549 = vmatpush1.bf16.msra.mxu0 0
    %3550 = vmatprep.subr.bf16.mxu0 0
    %3551 = vmatpush1.bf16.msra.mxu0 0
    %3552 = vmatprep.subr.bf16.mxu0 0
    %3553 = vmatpush1.bf16.msra.mxu0 0
    %3554 = vmatprep.subr.bf16.mxu0 0
    %3555 = vmatpush1.bf16.msra.mxu0 0
    %3556 = vmatprep.subr.bf16.mxu0 0
    %3557 = vmatpush1.bf16.msra.mxu0 0
    %3558 = vmatprep.subr.bf16.mxu0 0
    %3559 = vmatpush1.bf16.msra.mxu0 0
    %3560 = vmatprep.subr.bf16.mxu0 0
    %3561 = vmatpush1.bf16.msra.mxu0 0
    %3562 = vmatprep.subr.bf16.mxu0 0
    %3563 = vmatpush1.bf16.msra.mxu0 0
    %3564 = vmatprep.subr.bf16.mxu0 0
    %3565 = vmatpush1.bf16.msra.mxu0 0
    %3566 = vmatprep.subr.bf16.mxu0 0
    %3567 = vmatpush1.bf16.msra.mxu0 0
    %3568 = vmatprep.subr.bf16.mxu0 0
    %3569 = vmatpush1.bf16.msra.mxu0 0
    %3570 = vmatprep.mubr.bf16.mxu0 0
    %3571 = vmatmul.mubr.bf16.gmra.mrb[0].mxu0 %v2921
    %v3572 = vpop.f32.mrb[0].mxu0
    %v3573 = vadd.f32 %v2563, %v3572
    %v3574 = vpop.f32.mrb[0].mxu0
    %v3575 = vadd.f32 %v2567, %v3574
    %v3576 = vpop.f32.mrb[0].mxu0
    %v3577 = vpop.f32.mrb[0].mxu0
    %3578 = vdwg.mxu0
    %3579 = vst [vmem:[#allocation3] sm:$0x1] %v2958
    %3580 = vst [vmem:[#allocation3 + $0x1] sm:$0x1] %v2960
    %3581 = vst [vmem:[#allocation3 + $0x2] sm:$0x1] %v2999
    %3582 = vst [vmem:[#allocation3 + $0x3] sm:$0x1] %v3001
    %3583 = vst [vmem:[#allocation3 + $0x4] sm:$0x1] %v3040
    %3584 = vst [vmem:[#allocation3 + $0x5] sm:$0x1] %v3042
    %3585 = vst [vmem:[#allocation3 + $0x6] sm:$0x1] %v3081
    %3586 = vst [vmem:[#allocation3 + $0x7] sm:$0x1] %v3083
    %3587 = vst [vmem:[#allocation3 + $0x10] sm:$0x1] %v3122
    %3588 = vst [vmem:[#allocation3 + $0x11] sm:$0x1] %v3124
    %3589 = vst [vmem:[#allocation3 + $0x12] sm:$0x1] %v3163
    %3590 = vst [vmem:[#allocation3 + $0x13] sm:$0x1] %v3165
    %3591 = vst [vmem:[#allocation3 + $0x14] sm:$0x1] %v3204
    %3592 = vst [vmem:[#allocation3 + $0x15] sm:$0x1] %v3206
    %3593 = vst [vmem:[#allocation3 + $0x16] sm:$0x1] %v3245
    %3594 = vst [vmem:[#allocation3 + $0x17] sm:$0x1] %v3247
    %3595 = vst [vmem:[#allocation3 + $0x20] sm:$0x1] %v3286
    %3596 = vst [vmem:[#allocation3 + $0x21] sm:$0x1] %v3288
    %3597 = vst [vmem:[#allocation3 + $0x22] sm:$0x1] %v3327
    %3598 = vst [vmem:[#allocation3 + $0x23] sm:$0x1] %v3329
    %3599 = vst [vmem:[#allocation3 + $0x24] sm:$0x1] %v3368
    %3600 = vst [vmem:[#allocation3 + $0x25] sm:$0x1] %v3370
    %3601 = vst [vmem:[#allocation3 + $0x26] sm:$0x1] %v3409
    %3602 = vst [vmem:[#allocation3 + $0x27] sm:$0x1] %v3411
    %3603 = vst [vmem:[#allocation3 + $0x30] sm:$0x1] %v3450
    %3604 = vst [vmem:[#allocation3 + $0x31] sm:$0x1] %v3452
    %3605 = vst [vmem:[#allocation3 + $0x32] sm:$0x1] %v3491
    %3606 = vst [vmem:[#allocation3 + $0x33] sm:$0x1] %v3493
    %3607 = vst [vmem:[#allocation3 + $0x34] sm:$0x1] %v3532
    %3608 = vst [vmem:[#allocation3 + $0x35] sm:$0x1] %v3534
    %3609 = vst [vmem:[#allocation3 + $0x36] sm:$0x1] %v3573
    %3610 = vst [vmem:[#allocation3 + $0x37] sm:$0x1] %v3575
    %v3612 = vrot.slane %v2958, 1
    %3614 = vst [vmem:[#allocation3 + $0x8] sm:$0x1] %v3612
    %v3616 = vrot.slane %v2960, 1
    %3618 = vst [vmem:[#allocation3 + $0x9] sm:$0x1] %v3616
    %v3620 = vrot.slane %v2999, 1
    %3622 = vst [vmem:[#allocation3 + $0xa] sm:$0x1] %v3620
    %v3624 = vrot.slane %v3001, 1
    %3626 = vst [vmem:[#allocation3 + $0xb] sm:$0x1] %v3624
    %v3628 = vrot.slane %v3040, 1
    %3630 = vst [vmem:[#allocation3 + $0xc] sm:$0x1] %v3628
    %v3632 = vrot.slane %v3042, 1
    %3634 = vst [vmem:[#allocation3 + $0xd] sm:$0x1] %v3632
    %v3636 = vrot.slane %v3081, 1
    %3638 = vst [vmem:[#allocation3 + $0xe] sm:$0x1] %v3636
    %v3640 = vrot.slane %v3083, 1
    %3642 = vst [vmem:[#allocation3 + $0xf] sm:$0x1] %v3640
    %v3644 = vrot.slane %v3122, 1
    %3646 = vst [vmem:[#allocation3 + $0x18] sm:$0x1] %v3644
    %v3648 = vrot.slane %v3124, 1
    %3650 = vst [vmem:[#allocation3 + $0x19] sm:$0x1] %v3648
    %v3652 = vrot.slane %v3163, 1
    %3654 = vst [vmem:[#allocation3 + $0x1a] sm:$0x1] %v3652
    %v3656 = vrot.slane %v3165, 1
    %3658 = vst [vmem:[#allocation3 + $0x1b] sm:$0x1] %v3656
    %v3660 = vrot.slane %v3204, 1
    %3662 = vst [vmem:[#allocation3 + $0x1c] sm:$0x1] %v3660
    %v3664 = vrot.slane %v3206, 1
    %3666 = vst [vmem:[#allocation3 + $0x1d] sm:$0x1] %v3664
    %v3668 = vrot.slane %v3245, 1
    %3670 = vst [vmem:[#allocation3 + $0x1e] sm:$0x1] %v3668
    %v3672 = vrot.slane %v3247, 1
    %3674 = vst [vmem:[#allocation3 + $0x1f] sm:$0x1] %v3672
    %v3676 = vrot.slane %v3286, 1
    %3678 = vst [vmem:[#allocation3 + $0x28] sm:$0x1] %v3676
    %v3680 = vrot.slane %v3288, 1
    %3682 = vst [vmem:[#allocation3 + $0x29] sm:$0x1] %v3680
    %v3684 = vrot.slane %v3327, 1
    %3686 = vst [vmem:[#allocation3 + $0x2a] sm:$0x1] %v3684
    %v3688 = vrot.slane %v3329, 1
    %3690 = vst [vmem:[#allocation3 + $0x2b] sm:$0x1] %v3688
    %v3692 = vrot.slane %v3368, 1
    %3694 = vst [vmem:[#allocation3 + $0x2c] sm:$0x1] %v3692
    %v3696 = vrot.slane %v3370, 1
    %3698 = vst [vmem:[#allocation3 + $0x2d] sm:$0x1] %v3696
    %v3700 = vrot.slane %v3409, 1
    %3702 = vst [vmem:[#allocation3 + $0x2e] sm:$0x1] %v3700
    %v3704 = vrot.slane %v3411, 1
    %3706 = vst [vmem:[#allocation3 + $0x2f] sm:$0x1] %v3704
    %v3708 = vrot.slane %v3450, 1
    %3710 = vst [vmem:[#allocation3 + $0x38] sm:$0x1] %v3708
    %v3712 = vrot.slane %v3452, 1
    %3714 = vst [vmem:[#allocation3 + $0x39] sm:$0x1] %v3712
    %v3716 = vrot.slane %v3491, 1
    %3718 = vst [vmem:[#allocation3 + $0x3a] sm:$0x1] %v3716
    %v3720 = vrot.slane %v3493, 1
    %3722 = vst [vmem:[#allocation3 + $0x3b] sm:$0x1] %v3720
    %v3724 = vrot.slane %v3532, 1
    %3726 = vst [vmem:[#allocation3 + $0x3c] sm:$0x1] %v3724
    %v3728 = vrot.slane %v3534, 1
    %3730 = vst [vmem:[#allocation3 + $0x3d] sm:$0x1] %v3728
    %v3732 = vrot.slane %v3573, 1
    %3734 = vst [vmem:[#allocation3 + $0x3e] sm:$0x1] %v3732
    %v3736 = vrot.slane %v3575, 1
    %3738 = vst [vmem:[#allocation3 + $0x3f] sm:$0x1] %v3736
    %v3739 = vld [vmem:[#allocation3] sm:$0xff]
    %v3740 = vld [vmem:[#allocation3 + $0x8] sm:$0xff]
    %v3741 = vld [vmem:[#allocation3 + $0x10] sm:$0xff]
    %v3742 = vld [vmem:[#allocation3 + $0x18] sm:$0xff]
    %v3743 = vld [vmem:[#allocation3 + $0x20] sm:$0xff]
    %v3744 = vld [vmem:[#allocation3 + $0x28] sm:$0xff]
    %v3745 = vld [vmem:[#allocation3 + $0x30] sm:$0xff]
    %v3746 = vld [vmem:[#allocation3 + $0x38] sm:$0xff]
    %3747 = vrot.lane.b32.xlu0 %v3739, 1
    %v3748 = vpop.permute.xlu0 %3747
    %3749 = vrot.lane.b32.xlu0 %v3741, 1
    %v3750 = vpop.permute.xlu0 %3749
    %3751 = vrot.lane.b32.xlu0 %v3743, 1
    %v3752 = vpop.permute.xlu0 %3751
    %3753 = vrot.lane.b32.xlu0 %v3745, 1
    %v3754 = vpop.permute.xlu0 %3753
    %3755 = vrot.lane.b32.xlu0 %v3740, 1
    %v3756 = vpop.permute.xlu0 %3755
    %3757 = vrot.lane.b32.xlu0 %v3742, 1
    %v3758 = vpop.permute.xlu0 %3757
    %3759 = vrot.lane.b32.xlu0 %v3744, 1
    %v3760 = vpop.permute.xlu0 %3759
    %3761 = vrot.lane.b32.xlu0 %v3746, 1
    %v3762 = vpop.permute.xlu0 %3761
    %v3763 = vsel %vm112, %v3748, %v3756
    %v3764 = vsel %vm112, %v3750, %v3758
    %v3765 = vsel %vm112, %v3752, %v3760
    %v3766 = vsel %vm112, %v3754, %v3762
    %v3767 = vsel %vm112, %v3756, %v3748
    %v3768 = vsel %vm112, %v3758, %v3750
    %v3769 = vsel %vm112, %v3760, %v3752
    %v3770 = vsel %vm112, %v3762, %v3754
    %v3771 = vsel %vm117, 0.0, %v3767
    %v3772 = vsel %vm118, 0.0, %v3763
    %v3773 = vsel %vm117, 0.0, %v3768
    %v3774 = vsel %vm118, 0.0, %v3764
    %v3775 = vsel %vm117, 0.0, %v3769
    %v3776 = vsel %vm118, 0.0, %v3765
    %v3777 = vsel %vm117, 0.0, %v3770
    %v3778 = vsel %vm118, 0.0, %v3766
    %3779 = vrot.lane.b32.xlu0 %v3739, 127
    %v3780 = vpop.permute.xlu0 %3779
    %3781 = vrot.lane.b32.xlu0 %v3741, 127
    %v3782 = vpop.permute.xlu0 %3781
    %3783 = vrot.lane.b32.xlu0 %v3743, 127
    %v3784 = vpop.permute.xlu0 %3783
    %3785 = vrot.lane.b32.xlu0 %v3745, 127
    %v3786 = vpop.permute.xlu0 %3785
    %3787 = vrot.lane.b32.xlu0 %v3740, 127
    %v3788 = vpop.permute.xlu0 %3787
    %3789 = vrot.lane.b32.xlu0 %v3742, 127
    %v3790 = vpop.permute.xlu0 %3789
    %3791 = vrot.lane.b32.xlu0 %v3744, 127
    %v3792 = vpop.permute.xlu0 %3791
    %3793 = vrot.lane.b32.xlu0 %v3746, 127
    %v3794 = vpop.permute.xlu0 %3793
    %v3795 = vsel %vm125, %v3780, %v3788
    %v3796 = vsel %vm125, %v3782, %v3790
    %v3797 = vsel %vm125, %v3784, %v3792
    %v3798 = vsel %vm125, %v3786, %v3794
    %v3799 = vsel %vm125, %v3788, %v3780
    %v3800 = vsel %vm125, %v3790, %v3782
    %v3801 = vsel %vm125, %v3792, %v3784
    %v3802 = vsel %vm125, %v3794, %v3786
    %v3803 = vsel %vm130, 0.0, %v3795
    %v3804 = vsel %vm131, 0.0, %v3799
    %v3805 = vsel %vm130, 0.0, %v3796
    %v3806 = vsel %vm131, 0.0, %v3800
    %v3807 = vsel %vm130, 0.0, %v3797
    %v3808 = vsel %vm131, 0.0, %v3801
    %v3809 = vsel %vm130, 0.0, %v3798
    %v3810 = vsel %vm131, 0.0, %v3802
    %v3811 = vld [vmem:[%s9] sm:$0xff]
    %v3812 = vld [vmem:[%s9 + $0x8] sm:$0xff]
    %v3813 = vld [vmem:[%s9 + $0x10] sm:$0xff]
    %v3814 = vld [vmem:[%s9 + $0x18] sm:$0xff]
    %v3815 = vld [vmem:[%s9 + $0x20] sm:$0xff]
    %v3816 = vld [vmem:[%s9 + $0x28] sm:$0xff]
    %v3817 = vld [vmem:[%s9 + $0x30] sm:$0xff]
    %v3818 = vld [vmem:[%s9 + $0x38] sm:$0xff]
    %v3819 = vld [vmem:[%s10] sm:$0xff]
    %v3820 = vld [vmem:[%s10 + $0x8] sm:$0xff]
    %v3821 = vld [vmem:[%s10 + $0x10] sm:$0xff]
    %v3822 = vld [vmem:[%s10 + $0x18] sm:$0xff]
    %v3823 = vld [vmem:[%s10 + $0x20] sm:$0xff]
    %v3824 = vld [vmem:[%s10 + $0x28] sm:$0xff]
    %v3825 = vld [vmem:[%s10 + $0x30] sm:$0xff]
    %v3826 = vld [vmem:[%s10 + $0x38] sm:$0xff]
    %3828 = vset.pattern.permute.xlu0 0
    %3829 = vperm.xlu0 %3828, %v3819
    %v3830 = vpop.permute.xlu0 %3829
    %3833 = vset.pattern.permute.xlu0 0
    %3834 = vperm.xlu0 %3833, %v3820
    %v3835 = vpop.permute.xlu0 %3834
    %3838 = vset.pattern.permute.xlu0 0
    %3839 = vperm.xlu0 %3838, %v3821
    %v3840 = vpop.permute.xlu0 %3839
    %3843 = vset.pattern.permute.xlu0 0
    %3844 = vperm.xlu0 %3843, %v3822
    %v3845 = vpop.permute.xlu0 %3844
    %3848 = vset.pattern.permute.xlu0 0
    %3849 = vperm.xlu0 %3848, %v3823
    %v3850 = vpop.permute.xlu0 %3849
    %3853 = vset.pattern.permute.xlu0 0
    %3854 = vperm.xlu0 %3853, %v3824
    %v3855 = vpop.permute.xlu0 %3854
    %3858 = vset.pattern.permute.xlu0 0
    %3859 = vperm.xlu0 %3858, %v3825
    %v3860 = vpop.permute.xlu0 %3859
    %3863 = vset.pattern.permute.xlu0 0
    %3864 = vperm.xlu0 %3863, %v3826
    %v3865 = vpop.permute.xlu0 %3864
    %vm3867 = vcmask 785408
    %v3869 = vsel %vm3867, %v3811, 0
    %v3872 = vsel %vm3867, %v3812, 0
    %v3875 = vsel %vm3867, %v3813, 0
    %v3878 = vsel %vm3867, %v3814, 0
    %v3881 = vsel %vm3867, %v3815, 0
    %v3884 = vsel %vm3867, %v3816, 0
    %v3887 = vsel %vm3867, %v3817, 0
    %v3890 = vsel %vm3867, %v3818, 0
    %3892 = vmatprep.subr.mxu0 %v3772
    %3893 = vmatpush1.msra.mxu0 %v3771
    %3894 = vmatprep.subr.mxu0 %v3774
    %3895 = vmatpush1.msra.mxu0 %v3773
    %3896 = vmatprep.subr.mxu0 %v3776
    %3897 = vmatpush1.msra.mxu0 %v3775
    %3898 = vmatprep.subr.mxu0 %v3778
    %3899 = vmatpush1.msra.mxu0 %v3777
    %3900 = vmatprep.subr.mxu0 %v3740
    %3901 = vmatpush1.msra.mxu0 %v3739
    %3902 = vmatprep.subr.mxu0 %v3742
    %3903 = vmatpush1.msra.mxu0 %v3741
    %3904 = vmatprep.subr.mxu0 %v3744
    %3905 = vmatpush1.msra.mxu0 %v3743
    %3906 = vmatprep.subr.mxu0 %v3746
    %3907 = vmatpush1.msra.mxu0 %v3745
    %3908 = vmatprep.subr.mxu0 %v3804
    %3909 = vmatpush1.msra.mxu0 %v3803
    %3910 = vmatprep.subr.mxu0 %v3806
    %3911 = vmatpush1.msra.mxu0 %v3805
    %3912 = vmatprep.subr.mxu0 %v3808
    %3913 = vmatpush1.msra.mxu0 %v3807
    %3914 = vmatprep.subr.mxu0 %v3810
    %3915 = vmatpush1.msra.mxu0 %v3809
    %3916 = vmatprep.subr.mxu0 0.0
    %3917 = vmatpush1.msra.mxu0 0.0
    %3918 = vmatprep.subr.mxu0 0.0
    %3919 = vmatpush1.msra.mxu0 0.0
    %3920 = vmatprep.subr.mxu0 0.0
    %3921 = vmatpush1.msra.mxu0 0.0
    %3922 = vmatprep.subr.mxu0 0.0
    %3923 = vmatpush1.msra.mxu0 0.0
    %3924 = vmatprep.subr.mxu0 0.0
    %3925 = vmatpush1.msra.mxu0 0.0
    %3926 = vmatprep.subr.mxu0 0.0
    %3927 = vmatpush1.msra.mxu0 0.0
    %3928 = vmatprep.subr.mxu0 0.0
    %3929 = vmatpush1.msra.mxu0 0.0
    %3930 = vmatprep.subr.mxu0 0.0
    %3931 = vmatpush1.msra.mxu0 0.0
    %3932 = vmatprep.subr.mxu0 0.0
    %3933 = vmatpush1.msra.mxu0 0.0
    %3934 = vmatprep.subr.mxu0 0.0
    %3935 = vmatpush1.msra.mxu0 0.0
    %3936 = vmatprep.subr.mxu0 0.0
    %3937 = vmatpush1.msra.mxu0 0.0
    %3938 = vmatprep.subr.mxu0 0.0
    %3939 = vmatpush1.msra.mxu0 0.0
    %3940 = vmatprep.subr.mxu0 0.0
    %3941 = vmatpush1.msra.mxu0 0.0
    %3942 = vmatprep.subr.mxu0 0.0
    %3943 = vmatpush1.msra.mxu0 0.0
    %3944 = vmatprep.subr.mxu0 0.0
    %3945 = vmatpush1.msra.mxu0 0.0
    %3946 = vmatprep.subr.mxu0 0.0
    %3947 = vmatpush1.msra.mxu0 0.0
    %3948 = vmatprep.subr.mxu0 0.0
    %3949 = vmatpush1.msra.mxu0 0.0
    %3950 = vmatprep.subr.mxu0 0.0
    %3951 = vmatpush1.msra.mxu0 0.0
    %3952 = vmatprep.subr.mxu0 0.0
    %3953 = vmatpush1.msra.mxu0 0.0
    %3954 = vmatprep.subr.mxu0 0.0
    %3955 = vmatpush1.msra.mxu0 0.0
    %3956 = vmatprep.mubr.f32.mxu0 0.0
    %3957 = vmatmul.mubr.f32.gmra.mrb[0].mxu0 %v3869
    %v3958 = vpop.f32.mrb[0].mxu0
    %v3959 = vadd.f32 %v3830, %v3958
    %v3960 = vpop.f32.mrb[0].mxu0
    %v3961 = vadd.f32 %v3830, %v3960
    %3962 = vmatprep.mubr.f32.mxu0 0.0
    %3963 = vmatmul.mubr.f32.gmra.mrb[0].mxu0 %v3872
    %v3964 = vpop.f32.mrb[0].mxu0
    %v3965 = vadd.f32 %v3835, %v3964
    %v3966 = vpop.f32.mrb[0].mxu0
    %v3967 = vadd.f32 %v3835, %v3966
    %3968 = vmatprep.mubr.f32.mxu0 0.0
    %3969 = vmatmul.mubr.f32.gmra.mrb[0].mxu0 %v3875
    %v3970 = vpop.f32.mrb[0].mxu0
    %v3971 = vadd.f32 %v3840, %v3970
    %v3972 = vpop.f32.mrb[0].mxu0
    %v3973 = vadd.f32 %v3840, %v3972
    %3974 = vmatprep.mubr.f32.mxu0 0.0
    %3975 = vmatmul.mubr.f32.gmra.mrb[0].mxu0 %v3878
    %v3976 = vpop.f32.mrb[0].mxu0
    %v3977 = vadd.f32 %v3845, %v3976
    %v3978 = vpop.f32.mrb[0].mxu0
    %v3979 = vadd.f32 %v3845, %v3978
    %3980 = vmatprep.mubr.f32.mxu0 0.0
    %3981 = vmatmul.mubr.f32.gmra.mrb[0].mxu0 %v3881
    %v3982 = vpop.f32.mrb[0].mxu0
    %v3983 = vadd.f32 %v3850, %v3982
    %v3984 = vpop.f32.mrb[0].mxu0
    %v3985 = vadd.f32 %v3850, %v3984
    %3986 = vmatprep.mubr.f32.mxu0 0.0
    %3987 = vmatmul.mubr.f32.gmra.mrb[0].mxu0 %v3884
    %v3988 = vpop.f32.mrb[0].mxu0
    %v3989 = vadd.f32 %v3855, %v3988
    %v3990 = vpop.f32.mrb[0].mxu0
    %v3991 = vadd.f32 %v3855, %v3990
    %3992 = vmatprep.mubr.f32.mxu0 0.0
    %3993 = vmatmul.mubr.f32.gmra.mrb[0].mxu0 %v3887
    %v3994 = vpop.f32.mrb[0].mxu0
    %v3995 = vadd.f32 %v3860, %v3994
    %v3996 = vpop.f32.mrb[0].mxu0
    %v3997 = vadd.f32 %v3860, %v3996
    %3998 = vmatprep.mubr.f32.mxu0 0.0
    %3999 = vmatmul.mubr.f32.gmra.mrb[0].mxu0 %v3890
    %v4000 = vpop.f32.mrb[0].mxu0
    %v4001 = vadd.f32 %v3865, %v4000
    %v4002 = vpop.f32.mrb[0].mxu0
    %v4003 = vadd.f32 %v3865, %v4002
    %4004 = vdwg.mxu0
    %v4005 = vmax.f32 %v3959, 0.0
    %v4006 = vmax.f32 %v3961, 0.0
    %v4007 = vmax.f32 %v3965, 0.0
    %v4008 = vmax.f32 %v3967, 0.0
    %v4009 = vmax.f32 %v3971, 0.0
    %v4010 = vmax.f32 %v3973, 0.0
    %v4011 = vmax.f32 %v3977, 0.0
    %v4012 = vmax.f32 %v3979, 0.0
    %v4013 = vmax.f32 %v3983, 0.0
    %v4014 = vmax.f32 %v3985, 0.0
    %v4015 = vmax.f32 %v3989, 0.0
    %v4016 = vmax.f32 %v3991, 0.0
    %v4017 = vmax.f32 %v3995, 0.0
    %v4018 = vmax.f32 %v3997, 0.0
    %v4019 = vmax.f32 %v4001, 0.0
    %v4020 = vmax.f32 %v4003, 0.0
    %4021 = vrot.lane.b32.xlu0 %v4005, 1
    %v4022 = vpop.permute.xlu0 %4021
    %4023 = vrot.lane.b32.xlu0 %v4007, 1
    %v4024 = vpop.permute.xlu0 %4023
    %4025 = vrot.lane.b32.xlu0 %v4009, 1
    %v4026 = vpop.permute.xlu0 %4025
    %4027 = vrot.lane.b32.xlu0 %v4011, 1
    %v4028 = vpop.permute.xlu0 %4027
    %4029 = vrot.lane.b32.xlu0 %v4013, 1
    %v4030 = vpop.permute.xlu0 %4029
    %4031 = vrot.lane.b32.xlu0 %v4015, 1
    %v4032 = vpop.permute.xlu0 %4031
    %4033 = vrot.lane.b32.xlu0 %v4017, 1
    %v4034 = vpop.permute.xlu0 %4033
    %4035 = vrot.lane.b32.xlu0 %v4019, 1
    %v4036 = vpop.permute.xlu0 %4035
    %4037 = vrot.lane.b32.xlu0 %v4006, 1
    %v4038 = vpop.permute.xlu0 %4037
    %4039 = vrot.lane.b32.xlu0 %v4008, 1
    %v4040 = vpop.permute.xlu0 %4039
    %4041 = vrot.lane.b32.xlu0 %v4010, 1
    %v4042 = vpop.permute.xlu0 %4041
    %4043 = vrot.lane.b32.xlu0 %v4012, 1
    %v4044 = vpop.permute.xlu0 %4043
    %4045 = vrot.lane.b32.xlu0 %v4014, 1
    %v4046 = vpop.permute.xlu0 %4045
    %4047 = vrot.lane.b32.xlu0 %v4016, 1
    %v4048 = vpop.permute.xlu0 %4047
    %4049 = vrot.lane.b32.xlu0 %v4018, 1
    %v4050 = vpop.permute.xlu0 %4049
    %4051 = vrot.lane.b32.xlu0 %v4020, 1
    %v4052 = vpop.permute.xlu0 %4051
    %v4053 = vsel %vm112, %v4022, %v4038
    %v4054 = vsel %vm112, %v4024, %v4040
    %v4055 = vsel %vm112, %v4026, %v4042
    %v4056 = vsel %vm112, %v4028, %v4044
    %v4057 = vsel %vm112, %v4030, %v4046
    %v4058 = vsel %vm112, %v4032, %v4048
    %v4059 = vsel %vm112, %v4034, %v4050
    %v4060 = vsel %vm112, %v4036, %v4052
    %v4061 = vsel %vm112, %v4038, %v4022
    %v4062 = vsel %vm112, %v4040, %v4024
    %v4063 = vsel %vm112, %v4042, %v4026
    %v4064 = vsel %vm112, %v4044, %v4028
    %v4065 = vsel %vm112, %v4046, %v4030
    %v4066 = vsel %vm112, %v4048, %v4032
    %v4067 = vsel %vm112, %v4050, %v4034
    %v4068 = vsel %vm112, %v4052, %v4036
    %v4069 = vsel %vm117, 0.0, %v4061
    %v4070 = vsel %vm118, 0.0, %v4053
    %v4071 = vsel %vm117, 0.0, %v4062
    %v4072 = vsel %vm118, 0.0, %v4054
    %v4073 = vsel %vm117, 0.0, %v4063
    %v4074 = vsel %vm118, 0.0, %v4055
    %v4075 = vsel %vm117, 0.0, %v4064
    %v4076 = vsel %vm118, 0.0, %v4056
    %v4077 = vsel %vm117, 0.0, %v4065
    %v4078 = vsel %vm118, 0.0, %v4057
    %v4079 = vsel %vm117, 0.0, %v4066
    %v4080 = vsel %vm118, 0.0, %v4058
    %v4081 = vsel %vm117, 0.0, %v4067
    %v4082 = vsel %vm118, 0.0, %v4059
    %v4083 = vsel %vm117, 0.0, %v4068
    %v4084 = vsel %vm118, 0.0, %v4060
    %4085 = vrot.lane.b32.xlu0 %v4005, 127
    %v4086 = vpop.permute.xlu0 %4085
    %4087 = vrot.lane.b32.xlu0 %v4007, 127
    %v4088 = vpop.permute.xlu0 %4087
    %4089 = vrot.lane.b32.xlu0 %v4009, 127
    %v4090 = vpop.permute.xlu0 %4089
    %4091 = vrot.lane.b32.xlu0 %v4011, 127
    %v4092 = vpop.permute.xlu0 %4091
    %4093 = vrot.lane.b32.xlu0 %v4013, 127
    %v4094 = vpop.permute.xlu0 %4093
    %4095 = vrot.lane.b32.xlu0 %v4015, 127
    %v4096 = vpop.permute.xlu0 %4095
    %4097 = vrot.lane.b32.xlu0 %v4017, 127
    %v4098 = vpop.permute.xlu0 %4097
    %4099 = vrot.lane.b32.xlu0 %v4019, 127
    %v4100 = vpop.permute.xlu0 %4099
    %4101 = vrot.lane.b32.xlu0 %v4006, 127
    %v4102 = vpop.permute.xlu0 %4101
    %4103 = vrot.lane.b32.xlu0 %v4008, 127
    %v4104 = vpop.permute.xlu0 %4103
    %4105 = vrot.lane.b32.xlu0 %v4010, 127
    %v4106 = vpop.permute.xlu0 %4105
    %4107 = vrot.lane.b32.xlu0 %v4012, 127
    %v4108 = vpop.permute.xlu0 %4107
    %4109 = vrot.lane.b32.xlu0 %v4014, 127
    %v4110 = vpop.permute.xlu0 %4109
    %4111 = vrot.lane.b32.xlu0 %v4016, 127
    %v4112 = vpop.permute.xlu0 %4111
    %4113 = vrot.lane.b32.xlu0 %v4018, 127
    %v4114 = vpop.permute.xlu0 %4113
    %4115 = vrot.lane.b32.xlu0 %v4020, 127
    %v4116 = vpop.permute.xlu0 %4115
    %v4117 = vsel %vm125, %v4086, %v4102
    %v4118 = vsel %vm125, %v4088, %v4104
    %v4119 = vsel %vm125, %v4090, %v4106
    %v4120 = vsel %vm125, %v4092, %v4108
    %v4121 = vsel %vm125, %v4094, %v4110
    %v4122 = vsel %vm125, %v4096, %v4112
    %v4123 = vsel %vm125, %v4098, %v4114
    %v4124 = vsel %vm125, %v4100, %v4116
    %v4125 = vsel %vm125, %v4102, %v4086
    %v4126 = vsel %vm125, %v4104, %v4088
    %v4127 = vsel %vm125, %v4106, %v4090
    %v4128 = vsel %vm125, %v4108, %v4092
    %v4129 = vsel %vm125, %v4110, %v4094
    %v4130 = vsel %vm125, %v4112, %v4096
    %v4131 = vsel %vm125, %v4114, %v4098
    %v4132 = vsel %vm125, %v4116, %v4100
    %v4133 = vsel %vm130, 0.0, %v4117
    %v4134 = vsel %vm131, 0.0, %v4125
    %v4135 = vsel %vm130, 0.0, %v4118
    %v4136 = vsel %vm131, 0.0, %v4126
    %v4137 = vsel %vm130, 0.0, %v4119
    %v4138 = vsel %vm131, 0.0, %v4127
    %v4139 = vsel %vm130, 0.0, %v4120
    %v4140 = vsel %vm131, 0.0, %v4128
    %v4141 = vsel %vm130, 0.0, %v4121
    %v4142 = vsel %vm131, 0.0, %v4129
    %v4143 = vsel %vm130, 0.0, %v4122
    %v4144 = vsel %vm131, 0.0, %v4130
    %v4145 = vsel %vm130, 0.0, %v4123
    %v4146 = vsel %vm131, 0.0, %v4131
    %v4147 = vsel %vm130, 0.0, %v4124
    %v4148 = vsel %vm131, 0.0, %v4132
    %v4149 = vld [vmem:[%s11] sm:$0xff]
    %v4150 = vld [vmem:[%s11 + $0x8] sm:$0xff]
    %v4151 = vld [vmem:[%s12] sm:$0xff]
    %4153 = vset.pattern.permute.xlu0 0
    %4154 = vperm.xlu0 %4153, %v4151
    %v4155 = vpop.permute.xlu0 %4154
    %v4158 = vsel %vm504, %v4150, 0
    %4160 = vmatprep.subr.mxu0 %v4070
    %4161 = vmatpush1.msra.mxu0 %v4069
    %4162 = vmatprep.subr.mxu0 %v4072
    %4163 = vmatpush1.msra.mxu0 %v4071
    %4164 = vmatprep.subr.mxu0 %v4074
    %4165 = vmatpush1.msra.mxu0 %v4073
    %4166 = vmatprep.subr.mxu0 %v4076
    %4167 = vmatpush1.msra.mxu0 %v4075
    %4168 = vmatprep.subr.mxu0 %v4078
    %4169 = vmatpush1.msra.mxu0 %v4077
    %4170 = vmatprep.subr.mxu0 %v4080
    %4171 = vmatpush1.msra.mxu0 %v4079
    %4172 = vmatprep.subr.mxu0 %v4082
    %4173 = vmatpush1.msra.mxu0 %v4081
    %4174 = vmatprep.subr.mxu0 %v4084
    %4175 = vmatpush1.msra.mxu0 %v4083
    %4176 = vmatprep.subr.mxu0 %v4006
    %4177 = vmatpush1.msra.mxu0 %v4005
    %4178 = vmatprep.subr.mxu0 %v4008
    %4179 = vmatpush1.msra.mxu0 %v4007
    %4180 = vmatprep.subr.mxu0 %v4010
    %4181 = vmatpush1.msra.mxu0 %v4009
    %4182 = vmatprep.subr.mxu0 %v4012
    %4183 = vmatpush1.msra.mxu0 %v4011
    %4184 = vmatprep.subr.mxu0 %v4014
    %4185 = vmatpush1.msra.mxu0 %v4013
    %4186 = vmatprep.subr.mxu0 %v4016
    %4187 = vmatpush1.msra.mxu0 %v4015
    %4188 = vmatprep.subr.mxu0 %v4018
    %4189 = vmatpush1.msra.mxu0 %v4017
    %4190 = vmatprep.subr.mxu0 %v4020
    %4191 = vmatpush1.msra.mxu0 %v4019
    %4192 = vmatprep.subr.mxu0 %v4134
    %4193 = vmatpush1.msra.mxu0 %v4133
    %4194 = vmatprep.subr.mxu0 %v4136
    %4195 = vmatpush1.msra.mxu0 %v4135
    %4196 = vmatprep.subr.mxu0 %v4138
    %4197 = vmatpush1.msra.mxu0 %v4137
    %4198 = vmatprep.subr.mxu0 %v4140
    %4199 = vmatpush1.msra.mxu0 %v4139
    %4200 = vmatprep.subr.mxu0 %v4142
    %4201 = vmatpush1.msra.mxu0 %v4141
    %4202 = vmatprep.subr.mxu0 %v4144
    %4203 = vmatpush1.msra.mxu0 %v4143
    %4204 = vmatprep.subr.mxu0 %v4146
    %4205 = vmatpush1.msra.mxu0 %v4145
    %4206 = vmatprep.subr.mxu0 %v4148
    %4207 = vmatpush1.msra.mxu0 %v4147
    %4208 = vmatprep.subr.mxu0 0.0
    %4209 = vmatpush1.msra.mxu0 0.0
    %4210 = vmatprep.subr.mxu0 0.0
    %4211 = vmatpush1.msra.mxu0 0.0
    %4212 = vmatprep.subr.mxu0 0.0
    %4213 = vmatpush1.msra.mxu0 0.0
    %4214 = vmatprep.subr.mxu0 0.0
    %4215 = vmatpush1.msra.mxu0 0.0
    %4216 = vmatprep.subr.mxu0 0.0
    %4217 = vmatpush1.msra.mxu0 0.0
    %4218 = vmatprep.subr.mxu0 0.0
    %4219 = vmatpush1.msra.mxu0 0.0
    %4220 = vmatprep.subr.mxu0 0.0
    %4221 = vmatpush1.msra.mxu0 0.0
    %4222 = vmatprep.subr.mxu0 0.0
    %4223 = vmatpush1.msra.mxu0 0.0
    %4224 = vmatprep.mubr.f32.mxu0 %v4158
    %4225 = vmatmul.mubr.f32.gmra.mrb[0].mxu0 %v4149
    %v4226 = vpop.f32.mrb[0].mxu0
    %v4227 = vadd.f32 %v4155, %v4226
    %v4228 = vpop.f32.mrb[0].mxu0
    %v4229 = vadd.f32 %v4155, %v4228
    %4230 = vdwg.mxu0
    %4231 = vst [vmem:[#allocation10] sm:$0xff] %v4227
    %s4232 = scalar_lea.vmem [#allocation10], 8
    %4233 = vst [vmem:[%s4232] sm:$0xff] %v4229
    // Predicated region
    $region78: #{tpu_custom_call.1} parent=1 // pred_check
      _
    $region79: #{tpu_custom_call.1} parent=1 // pred_check_branch
      %4235 = sbr.rel (0) target = $region81
    $region80: #{tpu_custom_call.1} parent=1 // pred_region
      %s4237 = ssub.s32 32, 32
      %4238 = vsyncadd [#allocation6], %s4237
      %s4240 = sshll.u32 [#allocation9], 4
      %s4241 = int_to_ptr.vmem [resolvable:$true] %s4240
      %4243 = dma.vmem_to_hbm [thread:$0]  %s4241, 32, %s17, [#allocation6]
    $region81: #{tpu_custom_call.1} parent=1 // pred_fallthru
      _
    // Predicated region
    $region82: #{tpu_custom_call.1} parent=1 // pred_check
      _
    $region83: #{tpu_custom_call.1} parent=1 // pred_check_branch
      %4245 = sbr.rel (0) target = $region85
    $region84: #{tpu_custom_call.1} parent=1 // pred_region
      %s4247 = ssub.s32 256, 256
      %4248 = vsyncadd [#allocation11], %s4247
      %s4249 = sshll.u32 [#allocation10], 4
      %s4250 = int_to_ptr.vmem [resolvable:$true] %s4249
      %4255 = dma.vmem_to_hbm [thread:$0]  %s4250, 256, %s18, [#allocation11], 128, 128, 8
    $region85: #{tpu_custom_call.1} parent=1 // pred_fallthru
      _
    // Predicated region
    $region86: #{tpu_custom_call.1} parent=1 // pred_check
      _
    $region87: #{tpu_custom_call.1} parent=1 // pred_check_branch
      %4257 = sbr.rel (0) target = $region89
    $region88: #{tpu_custom_call.1} parent=1 // pred_region
      %s4259 = ssub.s32 32, 32
      %4260 = vsyncadd [#allocation11], %s4259
      %s4262 = sshll.u32 [#allocation12], 4
      %s4263 = int_to_ptr.vmem [resolvable:$true] %s4262
      %4265 = dma.vmem_to_hbm [thread:$0]  %s4263, 32, %s19, [#allocation11]
    $region89: #{tpu_custom_call.1} parent=1 // pred_fallthru
      _
    // Predicated region
    $region90: #{tpu_custom_call.1} parent=1 // pred_check
      _
    $region91: #{tpu_custom_call.1} parent=1 // pred_check_branch
      %4267 = sbr.rel (0) target = $region93
    $region92: #{tpu_custom_call.1} parent=1 // pred_region
      %4268 = dma.done [#allocation6], 32
    $region93: #{tpu_custom_call.1} parent=1 // pred_fallthru
      _
    // Predicated region
    $region94: #{tpu_custom_call.1} parent=1 // pred_check
      _
    $region95: #{tpu_custom_call.1} parent=1 // pred_check_branch
      %4270 = sbr.rel (0) target = $region97
    $region96: #{tpu_custom_call.1} parent=1 // pred_region
      %4271 = dma.done [#allocation11], 256
    $region97: #{tpu_custom_call.1} parent=1 // pred_fallthru
      _
    // Predicated region
    $region98: #{tpu_custom_call.1} parent=1 // pred_check
      _
    $region99: #{tpu_custom_call.1} parent=1 // pred_check_branch
      %4273 = sbr.rel (0) target = $region101
    $region100: #{tpu_custom_call.1} parent=1 // pred_region
      %4274 = dma.done [#allocation11], 32
    $region101: #{tpu_custom_call.1} parent=1 // pred_fallthru
      _
    %4275 = vsyncpa [#allocation5], 1
    %4276 = vsyncpa [#allocation8], 1
    %4277 = vsyncpa [#allocation6], 1
    %4278 = vsyncpa [#allocation11], 1

</llo_original>
